<compile_context>
chip_gen: v5e
topology: v5e:2x2
jax: 0.10.0
libtpu: 0.0.40
codegen_flags: <defaults>
</compile_context>

<pallas_src>
import functools

import jax
import jax.numpy as jnp
from jax import lax
from jax.experimental import pallas as pl
from jax.experimental.pallas import tpu as pltpu


def _rnncell_kernel(x_ref, w_ref, b_ref, c_ref, h_out_ref, c_out_ref, *,
                    hid, wp, mi):
    """One batch element of the fused ConvLSTM cell.

    x_ref    : (1, Ctot, L)      bf16  zero-padded concat(x, h), flattened
                                       padded spatial, L = (H+3)*Wp
    w_ref    : (9, 4*hid, Ctot)  bf16  per-tap fused gate weights, t = dy*3+dx,
                                       gate order [in, forget, out, cell]
    b_ref    : (4*hid, 1)        f32   fused gate bias
    c_ref    : (1, hid, Mi)      f32   previous cell state (padded layout)
    h_out_ref: (1, hid, Mi)      bf16  new hidden state
    c_out_ref: (1, hid, Mi)      f32   new cell state
    """
    # On-chip "im2col": nine shifted K=Ctot matmuls accumulated in f32.
    acc = None
    for dy in range(3):
        for dx in range(3):
            t = dy * 3 + dx
            off = dy * wp + dx                       # static flat shift
            patch = x_ref[0, :, off:off + mi]        # (Ctot, Mi) bf16, static
            d = jnp.dot(w_ref[t], patch, preferred_element_type=jnp.float32)
            acc = d if acc is None else acc + d
    gates = acc + b_ref[...]                         # (4*hid, Mi) f32

    # Gate order matches the PyTorch module: in, forget, out, cell.
    # Sigmoid on the full 3*hid slab in one EUP pass; slices are
    # sublane-aligned (hid = 32 rows) and lane-dense (Mi % 128 == 0).
    sig = jax.nn.sigmoid(gates[0:3 * hid, :])
    i_g = sig[0 * hid:1 * hid, :]
    f_g = sig[1 * hid:2 * hid, :]
    o_g = sig[2 * hid:3 * hid, :]
    g_g = jnp.tanh(gates[3 * hid:4 * hid, :])

    c_prev = c_ref[0]
    c_new = f_g * c_prev + i_g * g_g                 # f32 state update
    h_new = o_g * jnp.tanh(c_new)

    c_out_ref[0] = c_new.astype(c_out_ref.dtype)     # f32
    h_out_ref[0] = h_new.astype(h_out_ref.dtype)     # bf16 writeback


def _pick_padded_width(h, w):
    """Padded image width: >= W+2 (conv halo), preferring H*Wp % 128 == 0."""
    wp_min = w + 2
    limit = max(wp_min + 8, (5 * wp_min) // 4)       # cap padding inflation
    for wp in range(wp_min, limit + 1):
        if (h * wp) % 128 == 0:
            return wp
    for wp in range(wp_min, limit + 1):
        if (h * wp) % 8 == 0:
            return wp
    return wp_min


def prepare_rnncell_params(w_oihw, b):
    """One-time (per model, not per timestep) weight/bias preparation.

    w_oihw : (4*hid, Ctot, 3, 3) fused gate conv weight, gate order
             [in, forget, out, cell] along the output-channel axis.
    b      : (4*hid,)
    Returns (w_taps bf16 (9, 4*hid, Ctot), b_col f32 (4*hid, 1)).
    """
    hid4, ctot, kh, kw = w_oihw.shape
    w_taps = jnp.transpose(w_oihw, (2, 3, 0, 1)).reshape(kh * kw, hid4, ctot)
    return w_taps.astype(jnp.bfloat16), b.reshape(hid4, 1).astype(jnp.float32)


@functools.partial(jax.jit, static_argnames=("hidden_size",))
def rnn_cell_forward(x_nchw, h_nchw, c_nchw, w_taps, b_col, *, hidden_size):
    """ConvLSTM cell forward matching the PyTorch RNNCell.

    x_nchw : (N, Cin, H, W)
    h_nchw : (N, hid, H, W)     c_nchw : (N, hid, H, W)
    w_taps : (9, 4*hid, Cin+hid) bf16   from prepare_rnncell_params
    b_col  : (4*hid, 1)          f32    from prepare_rnncell_params
    Returns (h_new, c_new) in NCHW float32.
    """
    n, cin, hh, ww = x_nchw.shape
    hid = hidden_size
    ctot = cin + hid
    wp = _pick_padded_width(hh, ww)
    mi = hh * wp                      # per-image gate columns (lane dim)
    l = (hh + 3) * wp                 # padded-input flat length

    # Concat input + hidden along channels, bf16 GEMM operands, zero halo for
    # the 3x3 SAME conv (1 row top / 2 rows bottom, 1 col left / wp-W-1 right).
    xh = jnp.concatenate([x_nchw, h_nchw], axis=1).astype(jnp.bfloat16)
    xh_pad = jnp.pad(xh, ((0, 0), (0, 0), (1, 2), (1, wp - ww - 1)))
    x_flat = xh_pad.reshape(n, ctot, l)

    # Cell state in the same padded column layout as the gates output.
    c_pad = jnp.pad(c_nchw.astype(jnp.float32),
                    ((0, 0), (0, 0), (0, 0), (0, wp - ww)))
    c_flat = c_pad.reshape(n, hid, mi)

    kernel = functools.partial(_rnncell_kernel, hid=hid, wp=wp, mi=mi)
    h_out, c_out = pl.pallas_call(
        kernel,
        out_shape=(
            jax.ShapeDtypeStruct((n, hid, mi), jnp.bfloat16),
            jax.ShapeDtypeStruct((n, hid, mi), jnp.float32),
        ),
        grid_spec=pltpu.PrefetchScalarGridSpec(
            num_scalar_prefetch=0,
            grid=(n,),
            in_specs=[
                pl.BlockSpec((1, ctot, l), lambda i: (i, 0, 0)),
                pl.BlockSpec((9, 4 * hid, ctot), lambda i: (0, 0, 0)),
                pl.BlockSpec((4 * hid, 1), lambda i: (0, 0)),
                pl.BlockSpec((1, hid, mi), lambda i: (i, 0, 0)),
            ],
            out_specs=[
                pl.BlockSpec((1, hid, mi), lambda i: (i, 0, 0)),
                pl.BlockSpec((1, hid, mi), lambda i: (i, 0, 0)),
            ],
        ),
        # Donate c to c_new (in-place state update when scanned over time).
        input_output_aliases={3: 1},
        compiler_params=pltpu.CompilerParams(
            dimension_semantics=("parallel",)),
        # NOTE: demo working set is < 1 MiB/step; set vmem_limit_bytes here
        # only if images grow large enough to approach the scoped default.
    )(x_flat, w_taps, b_col, c_flat)

    # Drop the padded columns; zero-copy reshapes otherwise.  A scanned caller
    # should instead keep h (bf16) / c (f32) in the padded layout across steps.
    h_new = h_out.reshape(n, hid, hh, wp)[:, :, :, :ww].astype(jnp.float32)
    c_new = c_out.reshape(n, hid, hh, wp)[:, :, :, :ww]
    return h_new, c_new


def _reference_forward(x_nchw, h_nchw, c_nchw, w_oihw, b, hid):
    """Pure-JAX f32 reference reproducing the PyTorch module semantics."""
    xh = jnp.concatenate([x_nchw, h_nchw], axis=1)
    gates = lax.conv_general_dilated(
        xh, w_oihw, window_strides=(1, 1), padding="SAME",
        dimension_numbers=("NCHW", "OIHW", "NCHW"))
    gates = gates + b[None, :, None, None]
    i_g = jax.nn.sigmoid(gates[:, 0 * hid:1 * hid])
    f_g = jax.nn.sigmoid(gates[:, 1 * hid:2 * hid])
    o_g = jax.nn.sigmoid(gates[:, 2 * hid:3 * hid])
    g_g = jnp.tanh(gates[:, 3 * hid:4 * hid])
    c_new = f_g * c_nchw + i_g * g_g
    h_new = o_g * jnp.tanh(c_new)
    return h_new, c_new


if __name__ == "__main__":
    # Small, module-consistent shapes.
    N, Cin, H, W = 2, 4, 16, 16
    hid = 32
    ctot = Cin + hid

    key = jax.random.PRNGKey(0)
    kx, kh, kc, kw, kb = jax.random.split(key, 5)

    x = jax.random.normal(kx, (N, Cin, H, W), jnp.float32)
    h0 = jax.random.normal(kh, (N, hid, H, W), jnp.float32)
    c0 = jax.random.normal(kc, (N, hid, H, W), jnp.float32)

    # Fused gate conv weights: PyTorch holds 4 x Conv2d(ctot, hid, 3); here
    # fused along output channels in gate order [in, forget, out, cell], OIHW.
    fan_in = ctot * 3 * 3
    w = jax.random.normal(kw, (4 * hid, ctot, 3, 3), jnp.float32) / jnp.sqrt(fan_in)
    b = 0.01 * jax.random.normal(kb, (4 * hid,), jnp.float32)

    # One-time weight preparation (hoisted out of the per-timestep path).
    w_taps, b_col = prepare_rnncell_params(w, b)

    h_new, c_new = rnn_cell_forward(x, h0, c0, w_taps, b_col, hidden_size=hid)
    jax.block_until_ready((h_new, c_new))

    h_ref, c_ref = _reference_forward(x, h0, c0, w, b, hid)
    assert h_new.shape == (N, hid, H, W) and c_new.shape == (N, hid, H, W)
    # Tolerance accounts for bf16 GEMM operands and bf16 h writeback
    # (accumulation and the c/h state math stay f32).
    assert jnp.allclose(h_new, h_ref, atol=5e-2, rtol=5e-2)
    assert jnp.allclose(c_new, c_ref, atol=5e-2, rtol=5e-2)

    print("KERNEL_OK")
</pallas_src>

<mosaic_0001>
module attributes {stable_mosaic.version = 11 : i64} {
  func.func @_rnncell_kernel(%arg0: i32, %arg1: memref<1x36x456xbf16, #tpu.memory_space<vmem>>, %arg2: memref<9x128x36xbf16, #tpu.memory_space<vmem>>, %arg3: memref<128x1xf32, #tpu.memory_space<vmem>>, %arg4: memref<1x32x384xf32, #tpu.memory_space<vmem>>, %arg5: memref<1x32x384xbf16, #tpu.memory_space<vmem>>, %arg6: memref<1x32x384xf32, #tpu.memory_space<vmem>>) attributes {dimension_semantics = [#tpu.dimension_semantics<parallel>], iteration_bounds = array<i64: 2>, scalar_prefetch = 0 : i64, scratch_operands = 0 : i64, tpu.core_type = #tpu.core_type<tc>, window_params = [{transform_indices = @transform_0, window_bounds = array<i64: 1, 36, 456>}, {pipeline_mode = #tpu.pipeline_mode<synchronous>, transform_indices = @transform_1, window_bounds = array<i64: 9, 128, 36>}, {pipeline_mode = #tpu.pipeline_mode<synchronous>, transform_indices = @transform_2, window_bounds = array<i64: 128, 1>}, {transform_indices = @transform_3, window_bounds = array<i64: 1, 32, 384>}, {transform_indices = @transform_4, window_bounds = array<i64: 1, 32, 384>}, {transform_indices = @transform_5, window_bounds = array<i64: 1, 32, 384>}]} {
    %c0 = arith.constant 0 : index
    %c0_0 = arith.constant 0 : index
    %c0_1 = arith.constant 0 : index
    %0 = vector.load %arg1[%c0, %c0_0, %c0_1] : memref<1x36x456xbf16, #tpu.memory_space<vmem>>, vector<1x36x384xbf16>
    %1 = vector.shape_cast %0 : vector<1x36x384xbf16> to vector<36x384xbf16>
    %c0_2 = arith.constant 0 : index
    %c0_3 = arith.constant 0 : index
    %c0_4 = arith.constant 0 : index
    %2 = vector.load %arg2[%c0_2, %c0_3, %c0_4] : memref<9x128x36xbf16, #tpu.memory_space<vmem>>, vector<1x128x36xbf16>
    %3 = vector.shape_cast %2 : vector<1x128x36xbf16> to vector<128x36xbf16>
    %cst = arith.constant dense<0.000000e+00> : vector<128x384xf32>
    %4 = tpu.matmul %3, %1, %cst {dimension_numbers = #tpu.dot_dimension_numbers<[1], [0], [0], [1], [0, 0, 1, 1], [], []>} : vector<128x36xbf16>, vector<36x384xbf16>, vector<128x384xf32> -> vector<128x384xf32>
    %c0_5 = arith.constant 0 : index
    %c0_6 = arith.constant 0 : index
    %c1 = arith.constant 1 : index
    %5 = vector.load %arg1[%c0_5, %c0_6, %c1] : memref<1x36x456xbf16, #tpu.memory_space<vmem>>, vector<1x36x384xbf16>
    %6 = vector.shape_cast %5 : vector<1x36x384xbf16> to vector<36x384xbf16>
    %c1_7 = arith.constant 1 : index
    %c0_8 = arith.constant 0 : index
    %c0_9 = arith.constant 0 : index
    %7 = vector.load %arg2[%c1_7, %c0_8, %c0_9] : memref<9x128x36xbf16, #tpu.memory_space<vmem>>, vector<1x128x36xbf16>
    %8 = vector.shape_cast %7 : vector<1x128x36xbf16> to vector<128x36xbf16>
    %cst_10 = arith.constant dense<0.000000e+00> : vector<128x384xf32>
    %9 = tpu.matmul %8, %6, %cst_10 {dimension_numbers = #tpu.dot_dimension_numbers<[1], [0], [0], [1], [0, 0, 1, 1], [], []>} : vector<128x36xbf16>, vector<36x384xbf16>, vector<128x384xf32> -> vector<128x384xf32>
    %10 = arith.addf %4, %9 : vector<128x384xf32>
    %c0_11 = arith.constant 0 : index
    %c0_12 = arith.constant 0 : index
    %c2 = arith.constant 2 : index
    %11 = vector.load %arg1[%c0_11, %c0_12, %c2] : memref<1x36x456xbf16, #tpu.memory_space<vmem>>, vector<1x36x384xbf16>
    %12 = vector.shape_cast %11 : vector<1x36x384xbf16> to vector<36x384xbf16>
    %c2_13 = arith.constant 2 : index
    %c0_14 = arith.constant 0 : index
    %c0_15 = arith.constant 0 : index
    %13 = vector.load %arg2[%c2_13, %c0_14, %c0_15] : memref<9x128x36xbf16, #tpu.memory_space<vmem>>, vector<1x128x36xbf16>
    %14 = vector.shape_cast %13 : vector<1x128x36xbf16> to vector<128x36xbf16>
    %cst_16 = arith.constant dense<0.000000e+00> : vector<128x384xf32>
    %15 = tpu.matmul %14, %12, %cst_16 {dimension_numbers = #tpu.dot_dimension_numbers<[1], [0], [0], [1], [0, 0, 1, 1], [], []>} : vector<128x36xbf16>, vector<36x384xbf16>, vector<128x384xf32> -> vector<128x384xf32>
    %16 = arith.addf %10, %15 : vector<128x384xf32>
    %c0_17 = arith.constant 0 : index
    %c0_18 = arith.constant 0 : index
    %c24 = arith.constant 24 : index
    %17 = vector.load %arg1[%c0_17, %c0_18, %c24] : memref<1x36x456xbf16, #tpu.memory_space<vmem>>, vector<1x36x384xbf16>
    %18 = vector.shape_cast %17 : vector<1x36x384xbf16> to vector<36x384xbf16>
    %c3 = arith.constant 3 : index
    %c0_19 = arith.constant 0 : index
    %c0_20 = arith.constant 0 : index
    %19 = vector.load %arg2[%c3, %c0_19, %c0_20] : memref<9x128x36xbf16, #tpu.memory_space<vmem>>, vector<1x128x36xbf16>
    %20 = vector.shape_cast %19 : vector<1x128x36xbf16> to vector<128x36xbf16>
    %cst_21 = arith.constant dense<0.000000e+00> : vector<128x384xf32>
    %21 = tpu.matmul %20, %18, %cst_21 {dimension_numbers = #tpu.dot_dimension_numbers<[1], [0], [0], [1], [0, 0, 1, 1], [], []>} : vector<128x36xbf16>, vector<36x384xbf16>, vector<128x384xf32> -> vector<128x384xf32>
    %22 = arith.addf %16, %21 : vector<128x384xf32>
    %c0_22 = arith.constant 0 : index
    %c0_23 = arith.constant 0 : index
    %c25 = arith.constant 25 : index
    %23 = vector.load %arg1[%c0_22, %c0_23, %c25] : memref<1x36x456xbf16, #tpu.memory_space<vmem>>, vector<1x36x384xbf16>
    %24 = vector.shape_cast %23 : vector<1x36x384xbf16> to vector<36x384xbf16>
    %c4 = arith.constant 4 : index
    %c0_24 = arith.constant 0 : index
    %c0_25 = arith.constant 0 : index
    %25 = vector.load %arg2[%c4, %c0_24, %c0_25] : memref<9x128x36xbf16, #tpu.memory_space<vmem>>, vector<1x128x36xbf16>
    %26 = vector.shape_cast %25 : vector<1x128x36xbf16> to vector<128x36xbf16>
    %cst_26 = arith.constant dense<0.000000e+00> : vector<128x384xf32>
    %27 = tpu.matmul %26, %24, %cst_26 {dimension_numbers = #tpu.dot_dimension_numbers<[1], [0], [0], [1], [0, 0, 1, 1], [], []>} : vector<128x36xbf16>, vector<36x384xbf16>, vector<128x384xf32> -> vector<128x384xf32>
    %28 = arith.addf %22, %27 : vector<128x384xf32>
    %c0_27 = arith.constant 0 : index
    %c0_28 = arith.constant 0 : index
    %c26 = arith.constant 26 : index
    %29 = vector.load %arg1[%c0_27, %c0_28, %c26] : memref<1x36x456xbf16, #tpu.memory_space<vmem>>, vector<1x36x384xbf16>
    %30 = vector.shape_cast %29 : vector<1x36x384xbf16> to vector<36x384xbf16>
    %c5 = arith.constant 5 : index
    %c0_29 = arith.constant 0 : index
    %c0_30 = arith.constant 0 : index
    %31 = vector.load %arg2[%c5, %c0_29, %c0_30] : memref<9x128x36xbf16, #tpu.memory_space<vmem>>, vector<1x128x36xbf16>
    %32 = vector.shape_cast %31 : vector<1x128x36xbf16> to vector<128x36xbf16>
    %cst_31 = arith.constant dense<0.000000e+00> : vector<128x384xf32>
    %33 = tpu.matmul %32, %30, %cst_31 {dimension_numbers = #tpu.dot_dimension_numbers<[1], [0], [0], [1], [0, 0, 1, 1], [], []>} : vector<128x36xbf16>, vector<36x384xbf16>, vector<128x384xf32> -> vector<128x384xf32>
    %34 = arith.addf %28, %33 : vector<128x384xf32>
    %c0_32 = arith.constant 0 : index
    %c0_33 = arith.constant 0 : index
    %c48 = arith.constant 48 : index
    %35 = vector.load %arg1[%c0_32, %c0_33, %c48] : memref<1x36x456xbf16, #tpu.memory_space<vmem>>, vector<1x36x384xbf16>
    %36 = vector.shape_cast %35 : vector<1x36x384xbf16> to vector<36x384xbf16>
    %c6 = arith.constant 6 : index
    %c0_34 = arith.constant 0 : index
    %c0_35 = arith.constant 0 : index
    %37 = vector.load %arg2[%c6, %c0_34, %c0_35] : memref<9x128x36xbf16, #tpu.memory_space<vmem>>, vector<1x128x36xbf16>
    %38 = vector.shape_cast %37 : vector<1x128x36xbf16> to vector<128x36xbf16>
    %cst_36 = arith.constant dense<0.000000e+00> : vector<128x384xf32>
    %39 = tpu.matmul %38, %36, %cst_36 {dimension_numbers = #tpu.dot_dimension_numbers<[1], [0], [0], [1], [0, 0, 1, 1], [], []>} : vector<128x36xbf16>, vector<36x384xbf16>, vector<128x384xf32> -> vector<128x384xf32>
    %40 = arith.addf %34, %39 : vector<128x384xf32>
    %c0_37 = arith.constant 0 : index
    %c0_38 = arith.constant 0 : index
    %c49 = arith.constant 49 : index
    %41 = vector.load %arg1[%c0_37, %c0_38, %c49] : memref<1x36x456xbf16, #tpu.memory_space<vmem>>, vector<1x36x384xbf16>
    %42 = vector.shape_cast %41 : vector<1x36x384xbf16> to vector<36x384xbf16>
    %c7 = arith.constant 7 : index
    %c0_39 = arith.constant 0 : index
    %c0_40 = arith.constant 0 : index
    %43 = vector.load %arg2[%c7, %c0_39, %c0_40] : memref<9x128x36xbf16, #tpu.memory_space<vmem>>, vector<1x128x36xbf16>
    %44 = vector.shape_cast %43 : vector<1x128x36xbf16> to vector<128x36xbf16>
    %cst_41 = arith.constant dense<0.000000e+00> : vector<128x384xf32>
    %45 = tpu.matmul %44, %42, %cst_41 {dimension_numbers = #tpu.dot_dimension_numbers<[1], [0], [0], [1], [0, 0, 1, 1], [], []>} : vector<128x36xbf16>, vector<36x384xbf16>, vector<128x384xf32> -> vector<128x384xf32>
    %46 = arith.addf %40, %45 : vector<128x384xf32>
    %c0_42 = arith.constant 0 : index
    %c0_43 = arith.constant 0 : index
    %c50 = arith.constant 50 : index
    %47 = vector.load %arg1[%c0_42, %c0_43, %c50] : memref<1x36x456xbf16, #tpu.memory_space<vmem>>, vector<1x36x384xbf16>
    %48 = vector.shape_cast %47 : vector<1x36x384xbf16> to vector<36x384xbf16>
    %c8 = arith.constant 8 : index
    %c0_44 = arith.constant 0 : index
    %c0_45 = arith.constant 0 : index
    %49 = vector.load %arg2[%c8, %c0_44, %c0_45] : memref<9x128x36xbf16, #tpu.memory_space<vmem>>, vector<1x128x36xbf16>
    %50 = vector.shape_cast %49 : vector<1x128x36xbf16> to vector<128x36xbf16>
    %cst_46 = arith.constant dense<0.000000e+00> : vector<128x384xf32>
    %51 = tpu.matmul %50, %48, %cst_46 {dimension_numbers = #tpu.dot_dimension_numbers<[1], [0], [0], [1], [0, 0, 1, 1], [], []>} : vector<128x36xbf16>, vector<36x384xbf16>, vector<128x384xf32> -> vector<128x384xf32>
    %52 = arith.addf %46, %51 : vector<128x384xf32>
    %c0_47 = arith.constant 0 : index
    %c0_48 = arith.constant 0 : index
    %53 = vector.load %arg3[%c0_47, %c0_48] : memref<128x1xf32, #tpu.memory_space<vmem>>, vector<128x1xf32>
    %54 = vector.broadcast %53 : vector<128x1xf32> to vector<128x384xf32>
    %55 = arith.addf %52, %54 : vector<128x384xf32>
    %56 = vector.extract_strided_slice %55 {offsets = [0, 0], sizes = [96, 384], strides = [1, 1]} : vector<128x384xf32> to vector<96x384xf32>
    %57 = arith.negf %56 : vector<96x384xf32>
    %58 = math.exp %57 : vector<96x384xf32>
    %cst_49 = arith.constant 1.000000e+00 : f32
    %59 = vector.broadcast %cst_49 : f32 to vector<96x384xf32>
    %60 = arith.addf %59, %58 : vector<96x384xf32>
    %61 = arith.divf %59, %60 : vector<96x384xf32>
    %62 = vector.extract_strided_slice %61 {offsets = [0, 0], sizes = [32, 384], strides = [1, 1]} : vector<96x384xf32> to vector<32x384xf32>
    %63 = vector.extract_strided_slice %61 {offsets = [32, 0], sizes = [32, 384], strides = [1, 1]} : vector<96x384xf32> to vector<32x384xf32>
    %64 = vector.extract_strided_slice %61 {offsets = [64, 0], sizes = [32, 384], strides = [1, 1]} : vector<96x384xf32> to vector<32x384xf32>
    %65 = vector.extract_strided_slice %55 {offsets = [96, 0], sizes = [32, 384], strides = [1, 1]} : vector<128x384xf32> to vector<32x384xf32>
    %66 = math.tanh %65 : vector<32x384xf32>
    %c0_50 = arith.constant 0 : index
    %c0_51 = arith.constant 0 : index
    %c0_52 = arith.constant 0 : index
    %67 = vector.load %arg4[%c0_50, %c0_51, %c0_52] : memref<1x32x384xf32, #tpu.memory_space<vmem>>, vector<1x32x384xf32>
    %68 = vector.shape_cast %67 : vector<1x32x384xf32> to vector<32x384xf32>
    %69 = arith.mulf %63, %68 : vector<32x384xf32>
    %70 = arith.mulf %62, %66 : vector<32x384xf32>
    %71 = arith.addf %69, %70 : vector<32x384xf32>
    %72 = math.tanh %71 : vector<32x384xf32>
    %73 = arith.mulf %64, %72 : vector<32x384xf32>
    %c0_53 = arith.constant 0 : index
    %c0_54 = arith.constant 0 : index
    %c0_55 = arith.constant 0 : index
    %74 = vector.load %arg6[%c0_53, %c0_54, %c0_55] : memref<1x32x384xf32, #tpu.memory_space<vmem>>, vector<1x32x384xf32>
    %75 = vector.shape_cast %74 : vector<1x32x384xf32> to vector<32x384xf32>
    %76 = vector.shape_cast %71 : vector<32x384xf32> to vector<1x32x384xf32>
    tpu.vector_store %arg6[%c0_53, %c0_54, %c0_55], %76 {strides = array<i32>} : memref<1x32x384xf32, #tpu.memory_space<vmem>>, vector<1x32x384xf32>,
    %77 = arith.truncf %73 : vector<32x384xf32> to vector<32x384xbf16>
    %c0_56 = arith.constant 0 : index
    %c0_57 = arith.constant 0 : index
    %c0_58 = arith.constant 0 : index
    %78 = vector.load %arg5[%c0_56, %c0_57, %c0_58] : memref<1x32x384xbf16, #tpu.memory_space<vmem>>, vector<1x32x384xbf16>
    %79 = vector.shape_cast %78 : vector<1x32x384xbf16> to vector<32x384xbf16>
    %80 = vector.shape_cast %77 : vector<32x384xbf16> to vector<1x32x384xbf16>
    tpu.vector_store %arg5[%c0_56, %c0_57, %c0_58], %80 {strides = array<i32>} : memref<1x32x384xbf16, #tpu.memory_space<vmem>>, vector<1x32x384xbf16>,
    return
  }
  func.func @transform_0(%arg0: i32) -> (i32, i32, i32) {
    %c0_i32 = arith.constant 0 : i32
    %c0_i32_0 = arith.constant 0 : i32
    %c0_i32_1 = arith.constant 0 : i32
    return %arg0, %c0_i32, %c0_i32_0 : i32, i32, i32
  }
  func.func @transform_1(%arg0: i32) -> (i32, i32, i32) {
    %c0_i32 = arith.constant 0 : i32
    %c0_i32_0 = arith.constant 0 : i32
    %c0_i32_1 = arith.constant 0 : i32
    %c0_i32_2 = arith.constant 0 : i32
    return %c0_i32, %c0_i32_0, %c0_i32_1 : i32, i32, i32
  }
  func.func @transform_2(%arg0: i32) -> (i32, i32) {
    %c0_i32 = arith.constant 0 : i32
    %c0_i32_0 = arith.constant 0 : i32
    %c0_i32_1 = arith.constant 0 : i32
    return %c0_i32, %c0_i32_0 : i32, i32
  }
  func.func @transform_3(%arg0: i32) -> (i32, i32, i32) {
    %c0_i32 = arith.constant 0 : i32
    %c0_i32_0 = arith.constant 0 : i32
    %c0_i32_1 = arith.constant 0 : i32
    return %arg0, %c0_i32, %c0_i32_0 : i32, i32, i32
  }
  func.func @transform_4(%arg0: i32) -> (i32, i32, i32) {
    %c0_i32 = arith.constant 0 : i32
    %c0_i32_0 = arith.constant 0 : i32
    %c0_i32_1 = arith.constant 0 : i32
    return %arg0, %c0_i32, %c0_i32_0 : i32, i32, i32
  }
  func.func @transform_5(%arg0: i32) -> (i32, i32, i32) {
    %c0_i32 = arith.constant 0 : i32
    %c0_i32_0 = arith.constant 0 : i32
    %c0_i32_1 = arith.constant 0 : i32
    return %arg0, %c0_i32, %c0_i32_0 : i32, i32, i32
  }
}

</mosaic_0001>

<llo_original>
// kernel: rnn_cell_forward.1
$region0: #{rnn_cell_forward.1}
  #allocation0 [shape = 'u32[]', space=smem, size = 0x4, offset = 0x4, fixed_abs, tag = 'smem constant byte address 0x4 - core index']
  #allocation1 [shape = 'u32[72,128]{1,0:T(1,128)}', space=vmem, size = 0x9000, scoped, tag = 'internal scratch']
  %s0 = inlined_call_operand.vmem [shape: bf16[2,36,456], index: 0, kind: input, shape index: {}]
  %s1 = inlined_call_operand.vmem [shape: bf16[9,128,36], index: 1, kind: input, shape index: {}]
  %s2 = inlined_call_operand.vmem [shape: f32[128,1], index: 2, kind: input, shape index: {}]
  %s3 = inlined_call_operand.vmem [shape: f32[2,32,384], index: 3, kind: input, shape index: {}, may-alias: {3,5}]
  %s4 = inlined_call_operand.vmem [shape: bf16[2,32,384], index: 4, kind: output, shape index: {0}]
  %s5 = inlined_call_operand.vmem [shape: f32[2,32,384], index: 5, kind: output, shape index: {1}, may-alias: {3,5}]
  %6 = xla_tuple %s4, %s5
  %s7 = sld [smem:[#allocation0]]
  $region57: #{rnn_cell_forward.1} parent=0
    _
  %s9 = ssub.s32 1, %s7
  %s10 = scalar_select 0, %s9, %s7
  loop: start=0, step=1, limit=4
  $region2: #{rnn_cell_forward.1} parent=0 // loop_pre_header
    _
  $region3: #{rnn_cell_forward.1} parent=0 // loop_header
    %s12 = sphi 0, %s16
    %p13 = scmp.ge.s32.totalorder %s12, 4
    %s22 = sphi 0, %s24
    %s25 = sphi 0, %s22
    %s26 = sphi 0, %s25
    %s42 = sphi 0, %s26
    %s46 = sphi 0, %s46
    %s48 = sphi 0, %s46
    %s49 = sphi 0, %s48
    %s63 = sphi 0, %s49
    %s67 = sphi 0, %s67
    %s69 = sphi 0, %s67
    %s70 = sphi 0, %s69
    %s84 = sphi 0, %s70
    %s90 = sphi 0, %s92
    %s93 = sphi 0, %s90
    %s94 = sphi 0, %s93
    %s110 = sphi 0, %s94
    %s116 = sphi 0, %s118
    %s119 = sphi 0, %s116
    %s120 = sphi 0, %s119
    %s136 = sphi 0, %s120
    %s142 = sphi 0, %s144
    %s145 = sphi 0, %s142
    %s146 = sphi 0, %s145
    %s162 = sphi 0, %s146
  $region4: #{rnn_cell_forward.1} parent=0 // loop_header_branch
    %15 = sbr.rel (%p13) target = $region8
  $region5: #{rnn_cell_forward.1} parent=0 // loop_body
    %s17 = ssub.s32 %s12, 1
    %s18 = ssub.s32 %s12, 2
    %s19 = sadd.s32 %s12, 1
    %s20 = ssub.s32 %s12, %s19
    %p21 = scmp.eq.s32.totalorder %s20, 0
    %s23 = sadd.s32 %s22, 1
    %s24 = scalar_select %p21, %s22, %s23
    %p27 = pneg %p21
    %p28 = scmp.eq.s32.totalorder %s12, 1
    %p29 = por %p27, %p28
    %p30 = scmp.ne.s32.totalorder %s22, %s25
    %p31 = scmp.eq.s32.totalorder %s12, 0
    %p32 = por %p30, %p31
    %p33 = scmp.ne.s32.totalorder %s22, %s25
    %p34 = scmp.eq.s32.totalorder %s17, 1
    %p35 = por %p33, %p34
    %p36 = scmp.ne.s32.totalorder %s25, %s26
    %p37 = scmp.eq.s32.totalorder %s17, 0
    %p38 = por %p36, %p37
    %p39 = scmp.ne.s32.totalorder %s25, %s26
    %p40 = scmp.eq.s32.totalorder %s18, 1
    %p41 = por %p39, %p40
    %p43 = scmp.ne.s32.totalorder %s26, %s42
    %p44 = scmp.eq.s32.totalorder %s18, 0
    %p45 = por %p43, %p44
    %s47 = sadd.s32 %s46, 1
    %p50 = scmp.eq.s32.totalorder %s12, 1
    %p51 = scmp.ne.s32.totalorder %s46, %s48
    %p52 = scmp.eq.s32.totalorder %s12, 0
    %p53 = por %p51, %p52
    %p54 = scmp.ne.s32.totalorder %s46, %s48
    %p55 = scmp.eq.s32.totalorder %s17, 1
    %p56 = por %p54, %p55
    %p57 = scmp.ne.s32.totalorder %s48, %s49
    %p58 = scmp.eq.s32.totalorder %s17, 0
    %p59 = por %p57, %p58
    %p60 = scmp.ne.s32.totalorder %s48, %s49
    %p61 = scmp.eq.s32.totalorder %s18, 1
    %p62 = por %p60, %p61
    %p64 = scmp.ne.s32.totalorder %s49, %s63
    %p65 = scmp.eq.s32.totalorder %s18, 0
    %p66 = por %p64, %p65
    %s68 = sadd.s32 %s67, 1
    %p71 = scmp.eq.s32.totalorder %s12, 1
    %p72 = scmp.ne.s32.totalorder %s67, %s69
    %p73 = scmp.eq.s32.totalorder %s12, 0
    %p74 = por %p72, %p73
    %p75 = scmp.ne.s32.totalorder %s67, %s69
    %p76 = scmp.eq.s32.totalorder %s17, 1
    %p77 = por %p75, %p76
    %p78 = scmp.ne.s32.totalorder %s69, %s70
    %p79 = scmp.eq.s32.totalorder %s17, 0
    %p80 = por %p78, %p79
    %p81 = scmp.ne.s32.totalorder %s69, %s70
    %p82 = scmp.eq.s32.totalorder %s18, 1
    %p83 = por %p81, %p82
    %p85 = scmp.ne.s32.totalorder %s70, %s84
    %p86 = scmp.eq.s32.totalorder %s18, 0
    %p87 = por %p85, %p86
    %s88 = ssub.s32 %s12, %s19
    %p89 = scmp.eq.s32.totalorder %s88, 0
    %s91 = sadd.s32 %s90, 1
    %s92 = scalar_select %p89, %s90, %s91
    %p95 = pneg %p89
    %p96 = scmp.eq.s32.totalorder %s12, 1
    %p97 = por %p95, %p96
    %p98 = scmp.ne.s32.totalorder %s90, %s93
    %p99 = scmp.eq.s32.totalorder %s12, 0
    %p100 = por %p98, %p99
    %p101 = scmp.ne.s32.totalorder %s90, %s93
    %p102 = scmp.eq.s32.totalorder %s17, 1
    %p103 = por %p101, %p102
    %p104 = scmp.ne.s32.totalorder %s93, %s94
    %p105 = scmp.eq.s32.totalorder %s17, 0
    %p106 = por %p104, %p105
    %p107 = scmp.ne.s32.totalorder %s93, %s94
    %p108 = scmp.eq.s32.totalorder %s18, 1
    %p109 = por %p107, %p108
    %p111 = scmp.ne.s32.totalorder %s94, %s110
    %p112 = scmp.eq.s32.totalorder %s18, 0
    %p113 = por %p111, %p112
    %s114 = ssub.s32 %s12, %s19
    %p115 = scmp.eq.s32.totalorder %s114, 0
    %s117 = sadd.s32 %s116, 1
    %s118 = scalar_select %p115, %s116, %s117
    %p121 = pneg %p115
    %p122 = scmp.eq.s32.totalorder %s12, 1
    %p123 = por %p121, %p122
    %p124 = scmp.ne.s32.totalorder %s116, %s119
    %p125 = scmp.eq.s32.totalorder %s12, 0
    %p126 = por %p124, %p125
    %p127 = scmp.ne.s32.totalorder %s116, %s119
    %p128 = scmp.eq.s32.totalorder %s17, 1
    %p129 = por %p127, %p128
    %p130 = scmp.ne.s32.totalorder %s119, %s120
    %p131 = scmp.eq.s32.totalorder %s17, 0
    %p132 = por %p130, %p131
    %p133 = scmp.ne.s32.totalorder %s119, %s120
    %p134 = scmp.eq.s32.totalorder %s18, 1
    %p135 = por %p133, %p134
    %p137 = scmp.ne.s32.totalorder %s120, %s136
    %p138 = scmp.eq.s32.totalorder %s18, 0
    %p139 = por %p137, %p138
    %s140 = ssub.s32 %s12, %s19
    %p141 = scmp.eq.s32.totalorder %s140, 0
    %s143 = sadd.s32 %s142, 1
    %s144 = scalar_select %p141, %s142, %s143
    %p147 = pneg %p141
    %p148 = scmp.eq.s32.totalorder %s12, 1
    %p149 = por %p147, %p148
    %p150 = scmp.ne.s32.totalorder %s142, %s145
    %p151 = scmp.eq.s32.totalorder %s12, 0
    %p152 = por %p150, %p151
    %p153 = scmp.ne.s32.totalorder %s142, %s145
    %p154 = scmp.eq.s32.totalorder %s17, 1
    %p155 = por %p153, %p154
    %p156 = scmp.ne.s32.totalorder %s145, %s146
    %p157 = scmp.eq.s32.totalorder %s17, 0
    %p158 = por %p156, %p157
    %p159 = scmp.ne.s32.totalorder %s145, %s146
    %p160 = scmp.eq.s32.totalorder %s18, 1
    %p161 = por %p159, %p160
    %p163 = scmp.ne.s32.totalorder %s146, %s162
    %p164 = scmp.eq.s32.totalorder %s18, 0
    %p165 = por %p163, %p164
    %p166 = scmp.le.s32.totalorder 1, %s12
    %p167 = scmp.lt.s32.totalorder %s12, 3
    %p168 = pnand %p166, %p167
    %p169 = pneg %p168
    // Predicated region
    $region9: #{rnn_cell_forward.1} parent=5 // pred_check
      _
    $region10: #{rnn_cell_forward.1} parent=5 // pred_check_branch
      %171 = sbr.rel (%p168) target = $region12
    $region11: #{rnn_cell_forward.1} parent=5 // pred_region
      %s172 = ssub.s32 %s12, 1
      // Predicated region
      $region13: #{rnn_cell_forward.1} parent=11 // pred_check
        %p173 = pneg %p59
      $region14: #{rnn_cell_forward.1} parent=11 // pred_check_branch
        %175 = sbr.rel (%p173) target = $region16
      $region15: #{rnn_cell_forward.1} parent=11 // pred_region
        _
      $region16: #{rnn_cell_forward.1} parent=11 // pred_fallthru
        _
      // Predicated region
      $region17: #{rnn_cell_forward.1} parent=11 // pred_check
        %p176 = pneg %p80
      $region18: #{rnn_cell_forward.1} parent=11 // pred_check_branch
        %178 = sbr.rel (%p176) target = $region20
      $region19: #{rnn_cell_forward.1} parent=11 // pred_region
        _
      $region20: #{rnn_cell_forward.1} parent=11 // pred_fallthru
        _
    $region12: #{rnn_cell_forward.1} parent=5 // pred_fallthru
      _
    %p179 = scmp.lt.s32.totalorder %s12, 2
    // Predicated region
    $region21: #{rnn_cell_forward.1} parent=5 // pred_check
      %p180 = pneg %p179
    $region22: #{rnn_cell_forward.1} parent=5 // pred_check_branch
      %182 = sbr.rel (%p180) target = $region24
    $region23: #{rnn_cell_forward.1} parent=5 // pred_region
      // Predicated region
      $region25: #{rnn_cell_forward.1} parent=23 // pred_check
        %p183 = pneg %p32
      $region26: #{rnn_cell_forward.1} parent=23 // pred_check_branch
        %185 = sbr.rel (%p183) target = $region28
      $region27: #{rnn_cell_forward.1} parent=23 // pred_region
        %p186 = scmp.lt.s32.totalorder %s12, 1
        %s187 = scalar_select %p186, %s12, 1
        %s188 = smul.addr %s187, 20
        %s189 = smul.addr %s188, 4
        %s190 = scalar_lea.vmem %s0, %s189
      $region28: #{rnn_cell_forward.1} parent=23 // pred_fallthru
        _
      // Predicated region
      $region29: #{rnn_cell_forward.1} parent=23 // pred_check
        %p191 = pneg %p100
      $region30: #{rnn_cell_forward.1} parent=23 // pred_check_branch
        %193 = sbr.rel (%p191) target = $region32
      $region31: #{rnn_cell_forward.1} parent=23 // pred_region
        %p194 = scmp.lt.s32.totalorder %s12, 1
        %s195 = scalar_select %p194, %s12, 1
        %s196 = smul.addr %s195, 12
        %s197 = smul.addr %s196, 8
        %s198 = scalar_lea.vmem %s3, %s197
      $region32: #{rnn_cell_forward.1} parent=23 // pred_fallthru
        _
    $region24: #{rnn_cell_forward.1} parent=5 // pred_fallthru
      _
    %p199 = scmp.le.s32.totalorder 1, %s12
    %p200 = scmp.lt.s32.totalorder %s12, 3
    %p201 = pnand %p199, %p200
    %p202 = pneg %p201
    // Predicated region
    $region33: #{rnn_cell_forward.1} parent=5 // pred_check
      _
    $region34: #{rnn_cell_forward.1} parent=5 // pred_check_branch
      %204 = sbr.rel (%p201) target = $region36
    $region35: #{rnn_cell_forward.1} parent=5 // pred_region
      %s205 = ssub.s32 %s12, 1
      %p206 = scmp.lt.s32.totalorder %s17, 1
      %s207 = scalar_select %p206, %s17, 1
      %s208 = smul.addr %s207, 20
      %s209 = smul.addr %s208, 4
      %s210 = scalar_lea.vmem %s0, %s209
      %p211 = pneg %p38
      %p212 = pneg %p35
      %p213 = pneg %p59
      %p214 = pneg %p56
      %p215 = pneg %p80
      %p216 = pneg %p77
      %p217 = scmp.lt.s32.totalorder %s17, 1
      %s218 = scalar_select %p217, %s17, 1
      %s219 = smul.addr %s218, 12
      %s220 = smul.addr %s219, 8
      %s221 = scalar_lea.vmem %s3, %s220
      %p222 = pneg %p106
      %p223 = pneg %p103
      %p224 = pneg %p132
      %p225 = pneg %p129
      %p226 = scmp.lt.s32.totalorder %s17, 1
      %s227 = scalar_select %p226, %s17, 1
      %s228 = smul.addr %s227, 12
      %s229 = smul.addr %s228, 4
      %s230 = scalar_lea.vmem %s4, %s229
      %p231 = pneg %p158
      %p232 = pneg %p155
      %p233 = scmp.lt.s32.totalorder %s17, 1
      %s234 = scalar_select %p233, %s17, 1
      %s235 = smul.addr %s234, 12
      %s236 = smul.addr %s235, 8
      %s237 = scalar_lea.vmem %s5, %s236
      %p238 = scmp.lt.s32.totalorder %s17, 1
      %s239 = scalar_select %p238, %s17, 1
      %s240 = smul.addr %s239, 20
      %s241 = smul.addr %s240, 4
      %s242 = scalar_lea.vmem %s0, %s241
      %p243 = scmp.lt.s32.totalorder %s17, 1
      %s244 = scalar_select %p243, %s17, 1
      %s245 = smul.addr %s244, 12
      %s246 = smul.addr %s245, 8
      %s247 = scalar_lea.vmem %s3, %s246
      %p248 = scmp.lt.s32.totalorder %s17, 1
      %s249 = scalar_select %p248, %s17, 1
      %s250 = smul.addr %s249, 12
      %s251 = smul.addr %s250, 4
      %s252 = scalar_lea.vmem %s4, %s251
      %p253 = scmp.lt.s32.totalorder %s17, 1
      %s254 = scalar_select %p253, %s17, 1
      %s255 = smul.addr %s254, 12
      %s256 = smul.addr %s255, 8
      %s257 = scalar_lea.vmem %s5, %s256
      %v259 = vld [vmem:[%s242] sm:$0xff]
      %v260 = vld [vmem:[%s242 + $0x8] sm:$0xf]
      %v261 = vld [vmem:[%s242 + $0x10] sm:$0xff]
      %v262 = vld [vmem:[%s242 + $0x18] sm:$0xf]
      %v263 = vld [vmem:[%s242 + $0x20] sm:$0xff]
      %v264 = vld [vmem:[%s242 + $0x28] sm:$0xf]
      %v265 = vld [vmem:[%s242 + $0x30] sm:$0xff]
      %v266 = vld [vmem:[%s242 + $0x38] sm:$0xf]
      %v267 = vld [vmem:[%s242 + $0x40] sm:$0x33]
      %v268 = vld [vmem:[%s242 + $0x48] sm:$0x3]
      %v269 = vld [vmem:[%s1] sm:$0xf]
      %v270 = vld [vmem:[%s1 + $0x4] sm:$0xf]
      %v271 = vld [vmem:[%s1 + $0x8] sm:$0xf]
      %v272 = vld [vmem:[%s1 + $0xc] sm:$0xf]
      %v273 = vld [vmem:[%s1 + $0x10] sm:$0xf]
      %v274 = vld [vmem:[%s1 + $0x14] sm:$0xf]
      %v275 = vld [vmem:[%s1 + $0x18] sm:$0xf]
      %v276 = vld [vmem:[%s1 + $0x1c] sm:$0xf]
      %v277 = vld [vmem:[%s1 + $0x20] sm:$0xf]
      %v278 = vld [vmem:[%s1 + $0x24] sm:$0xf]
      %v279 = vld [vmem:[%s1 + $0x28] sm:$0xf]
      %v280 = vld [vmem:[%s1 + $0x2c] sm:$0xf]
      %v281 = vld [vmem:[%s1 + $0x30] sm:$0xf]
      %v282 = vld [vmem:[%s1 + $0x34] sm:$0xf]
      %v283 = vld [vmem:[%s1 + $0x38] sm:$0xf]
      %v284 = vld [vmem:[%s1 + $0x3c] sm:$0xf]
      %v285 = vld [vmem:[%s242 + $0x8] sm:$0xff]
      %v286 = vld [vmem:[%s242 + $0x18] sm:$0xff]
      %v287 = vld [vmem:[%s242 + $0x28] sm:$0xff]
      %v288 = vld [vmem:[%s242 + $0x38] sm:$0xff]
      %v289 = vld [vmem:[%s242 + $0x48] sm:$0x33]
      %s290 = scalar_lea.vmem %s1, 64
      %v291 = vld [vmem:[%s290] sm:$0xf]
      %v292 = vld [vmem:[%s290 + $0x4] sm:$0xf]
      %v293 = vld [vmem:[%s290 + $0x8] sm:$0xf]
      %v294 = vld [vmem:[%s290 + $0xc] sm:$0xf]
      %v295 = vld [vmem:[%s290 + $0x10] sm:$0xf]
      %v296 = vld [vmem:[%s290 + $0x14] sm:$0xf]
      %v297 = vld [vmem:[%s290 + $0x18] sm:$0xf]
      %v298 = vld [vmem:[%s290 + $0x1c] sm:$0xf]
      %v299 = vld [vmem:[%s290 + $0x20] sm:$0xf]
      %v300 = vld [vmem:[%s290 + $0x24] sm:$0xf]
      %v301 = vld [vmem:[%s290 + $0x28] sm:$0xf]
      %v302 = vld [vmem:[%s290 + $0x2c] sm:$0xf]
      %v303 = vld [vmem:[%s290 + $0x30] sm:$0xf]
      %v304 = vld [vmem:[%s290 + $0x34] sm:$0xf]
      %v305 = vld [vmem:[%s290 + $0x38] sm:$0xf]
      %v306 = vld [vmem:[%s290 + $0x3c] sm:$0xf]
      %v323 = vunpack.c.l.b16 %v291
      %v324 = vunpack.c.l.b16 %v292
      %v325 = vunpack.c.l.b16 %v293
      %v326 = vunpack.c.l.b16 %v294
      %v327 = vunpack.c.l.b16 %v295
      %v328 = vunpack.c.l.b16 %v296
      %v329 = vunpack.c.l.b16 %v297
      %v330 = vunpack.c.l.b16 %v298
      %v331 = vunpack.c.l.b16 %v299
      %v332 = vunpack.c.l.b16 %v300
      %v333 = vunpack.c.l.b16 %v301
      %v334 = vunpack.c.l.b16 %v302
      %v335 = vunpack.c.l.b16 %v303
      %v336 = vunpack.c.l.b16 %v304
      %v337 = vunpack.c.l.b16 %v305
      %v338 = vunpack.c.l.b16 %v306
      %v339 = vpack.c.b16 %v324, %v323
      %v340 = vpack.c.b16 %v326, %v325
      %v341 = vpack.c.b16 %v328, %v327
      %v342 = vpack.c.b16 %v330, %v329
      %v343 = vpack.c.b16 %v332, %v331
      %v344 = vpack.c.b16 %v334, %v333
      %v345 = vpack.c.b16 %v336, %v335
      %v346 = vpack.c.b16 %v338, %v337
      %v357 = vunpack.c.l.b16 %v259
      %v358 = vunpack.c.h.b16 %v259
      %v359 = vunpack.c.l.b16 %v285
      %v360 = vunpack.c.h.b16 %v285
      %v361 = vunpack.c.l.b16 %v261
      %v362 = vunpack.c.h.b16 %v261
      %v363 = vunpack.c.l.b16 %v286
      %v364 = vunpack.c.h.b16 %v286
      %v365 = vunpack.c.l.b16 %v263
      %v366 = vunpack.c.h.b16 %v263
      %v367 = vunpack.c.l.b16 %v287
      %v368 = vunpack.c.h.b16 %v287
      %v369 = vunpack.c.l.b16 %v265
      %v370 = vunpack.c.h.b16 %v265
      %v371 = vunpack.c.l.b16 %v288
      %v372 = vunpack.c.h.b16 %v288
      %v373 = vunpack.c.l.b16 %v267
      %v374 = vunpack.c.h.b16 %v267
      %v375 = vunpack.c.l.b16 %v289
      %v376 = vunpack.c.h.b16 %v289
      %v377 = vpack.c.b16 %v361, %v357
      %v378 = vpack.c.b16 %v362, %v358
      %v379 = vpack.c.b16 %v363, %v359
      %v380 = vpack.c.b16 %v364, %v360
      %v381 = vpack.c.b16 %v369, %v365
      %v382 = vpack.c.b16 %v370, %v366
      %v383 = vpack.c.b16 %v371, %v367
      %v384 = vpack.c.b16 %v372, %v368
      %v385 = vpack.c.b16 %v373, %v373
      %v386 = vpack.c.b16 %v374, %v374
      %v387 = vpack.c.b16 %v375, %v375
      %v388 = vpack.c.b16 %v376, %v376
      %389 = vrot.lane.b32.xlu0 %v377, 127
      %v390 = vpop.permute.xlu0 %389
      %391 = vrot.lane.b32.xlu0 %v378, 127
      %v392 = vpop.permute.xlu0 %391
      %393 = vrot.lane.b32.xlu0 %v379, 127
      %v394 = vpop.permute.xlu0 %393
      %395 = vrot.lane.b32.xlu0 %v380, 127
      %v396 = vpop.permute.xlu0 %395
      %397 = vrot.lane.b32.xlu0 %v381, 127
      %v398 = vpop.permute.xlu0 %397
      %399 = vrot.lane.b32.xlu0 %v382, 127
      %v400 = vpop.permute.xlu0 %399
      %401 = vrot.lane.b32.xlu0 %v383, 127
      %v402 = vpop.permute.xlu0 %401
      %403 = vrot.lane.b32.xlu0 %v384, 127
      %v404 = vpop.permute.xlu0 %403
      %405 = vrot.lane.b32.xlu0 %v385, 127
      %v406 = vpop.permute.xlu0 %405
      %407 = vrot.lane.b32.xlu0 %v386, 127
      %v408 = vpop.permute.xlu0 %407
      %409 = vrot.lane.b32.xlu0 %v387, 127
      %v410 = vpop.permute.xlu0 %409
      %411 = vrot.lane.b32.xlu0 %v388, 127
      %v412 = vpop.permute.xlu0 %411
      %vm413 = vcmask 1039360
      %v414 = vsel %vm413, %v390, %v392
      %v415 = vsel %vm413, %v392, %v394
      %v416 = vsel %vm413, %v394, %v396
      %v417 = vsel %vm413, %v398, %v400
      %v418 = vsel %vm413, %v400, %v402
      %v419 = vsel %vm413, %v402, %v404
      %v420 = vsel %vm413, %v406, %v408
      %v421 = vsel %vm413, %v408, %v410
      %v422 = vsel %vm413, %v410, %v412
      %vm429 = vcmask 293888
      %v431 = vsel %vm429, %v339, 0
      %v434 = vsel %vm429, %v340, 0
      %v437 = vsel %vm429, %v341, 0
      %v440 = vsel %vm429, %v342, 0
      %v443 = vsel %vm429, %v343, 0
      %v446 = vsel %vm429, %v344, 0
      %v449 = vsel %vm429, %v345, 0
      %v452 = vsel %vm429, %v346, 0
      %vm454 = vcmask 1041408
      %v456 = vsel %vm454, %v420, 0
      %v459 = vsel %vm454, %v421, 0
      %v462 = vsel %vm454, %v422, 0
      %464 = vmatpush.bf16.msra.mxu0 0
      %465 = vmatpush.bf16.msra.mxu0 0
      %466 = vmatpush.bf16.msra.mxu0 0
      %467 = vmatpush.bf16.msra.mxu0 0
      %468 = vmatpush.bf16.msra.mxu0 0
      %469 = vmatpush.bf16.msra.mxu0 %v456
      %470 = vmatpush.bf16.msra.mxu0 %v417
      %471 = vmatpush.bf16.msra.mxu0 %v414
      %472 = vmatmul.bf16.gmra.mxu0 %v431
      %v473 = vpop.f32.mrf.mxu0
      %v474 = vadd.f32 0.0, %v473
      %v475 = vpop.f32.mrf.mxu0
      %v476 = vadd.f32 0.0, %v475
      %477 = vmatmul.bf16.gmra.mxu0 %v434
      %v478 = vpop.f32.mrf.mxu0
      %v479 = vadd.f32 0.0, %v478
      %v480 = vpop.f32.mrf.mxu0
      %v481 = vadd.f32 0.0, %v480
      %482 = vmatmul.bf16.gmra.mxu0 %v437
      %v483 = vpop.f32.mrf.mxu0
      %v484 = vadd.f32 0.0, %v483
      %v485 = vpop.f32.mrf.mxu0
      %v486 = vadd.f32 0.0, %v485
      %487 = vmatmul.bf16.gmra.mxu0 %v440
      %v488 = vpop.f32.mrf.mxu0
      %v489 = vadd.f32 0.0, %v488
      %v490 = vpop.f32.mrf.mxu0
      %v491 = vadd.f32 0.0, %v490
      %492 = vmatmul.bf16.gmra.mxu0 %v443
      %v493 = vpop.f32.mrf.mxu0
      %v494 = vadd.f32 0.0, %v493
      %v495 = vpop.f32.mrf.mxu0
      %v496 = vadd.f32 0.0, %v495
      %497 = vmatmul.bf16.gmra.mxu0 %v446
      %v498 = vpop.f32.mrf.mxu0
      %v499 = vadd.f32 0.0, %v498
      %v500 = vpop.f32.mrf.mxu0
      %v501 = vadd.f32 0.0, %v500
      %502 = vmatmul.bf16.gmra.mxu0 %v449
      %v503 = vpop.f32.mrf.mxu0
      %v504 = vadd.f32 0.0, %v503
      %v505 = vpop.f32.mrf.mxu0
      %v506 = vadd.f32 0.0, %v505
      %507 = vmatmul.bf16.gmra.mxu0 %v452
      %v508 = vpop.f32.mrf.mxu0
      %v509 = vadd.f32 0.0, %v508
      %v510 = vpop.f32.mrf.mxu0
      %v511 = vadd.f32 0.0, %v510
      %512 = vdwg.mxu0
      %513 = vmatpush.bf16.msra.mxu0 0
      %514 = vmatpush.bf16.msra.mxu0 0
      %515 = vmatpush.bf16.msra.mxu0 0
      %516 = vmatpush.bf16.msra.mxu0 0
      %517 = vmatpush.bf16.msra.mxu0 0
      %518 = vmatpush.bf16.msra.mxu0 %v459
      %519 = vmatpush.bf16.msra.mxu0 %v418
      %520 = vmatpush.bf16.msra.mxu0 %v415
      %521 = vmatmul.bf16.gmra.mxu0 %v431
      %v522 = vpop.f32.mrf.mxu0
      %v523 = vadd.f32 0.0, %v522
      %v524 = vpop.f32.mrf.mxu0
      %v525 = vadd.f32 0.0, %v524
      %526 = vmatmul.bf16.gmra.mxu0 %v434
      %v527 = vpop.f32.mrf.mxu0
      %v528 = vadd.f32 0.0, %v527
      %v529 = vpop.f32.mrf.mxu0
      %v530 = vadd.f32 0.0, %v529
      %531 = vmatmul.bf16.gmra.mxu0 %v437
      %v532 = vpop.f32.mrf.mxu0
      %v533 = vadd.f32 0.0, %v532
      %v534 = vpop.f32.mrf.mxu0
      %v535 = vadd.f32 0.0, %v534
      %536 = vmatmul.bf16.gmra.mxu0 %v440
      %v537 = vpop.f32.mrf.mxu0
      %v538 = vadd.f32 0.0, %v537
      %v539 = vpop.f32.mrf.mxu0
      %v540 = vadd.f32 0.0, %v539
      %541 = vmatmul.bf16.gmra.mxu0 %v443
      %v542 = vpop.f32.mrf.mxu0
      %v543 = vadd.f32 0.0, %v542
      %v544 = vpop.f32.mrf.mxu0
      %v545 = vadd.f32 0.0, %v544
      %546 = vmatmul.bf16.gmra.mxu0 %v446
      %v547 = vpop.f32.mrf.mxu0
      %v548 = vadd.f32 0.0, %v547
      %v549 = vpop.f32.mrf.mxu0
      %v550 = vadd.f32 0.0, %v549
      %551 = vmatmul.bf16.gmra.mxu0 %v449
      %v552 = vpop.f32.mrf.mxu0
      %v553 = vadd.f32 0.0, %v552
      %v554 = vpop.f32.mrf.mxu0
      %v555 = vadd.f32 0.0, %v554
      %556 = vmatmul.bf16.gmra.mxu0 %v452
      %v557 = vpop.f32.mrf.mxu0
      %v558 = vadd.f32 0.0, %v557
      %v559 = vpop.f32.mrf.mxu0
      %v560 = vadd.f32 0.0, %v559
      %561 = vdwg.mxu0
      %562 = vmatpush.bf16.msra.mxu0 0
      %563 = vmatpush.bf16.msra.mxu0 0
      %564 = vmatpush.bf16.msra.mxu0 0
      %565 = vmatpush.bf16.msra.mxu0 0
      %566 = vmatpush.bf16.msra.mxu0 0
      %567 = vmatpush.bf16.msra.mxu0 %v462
      %568 = vmatpush.bf16.msra.mxu0 %v419
      %569 = vmatpush.bf16.msra.mxu0 %v416
      %570 = vmatmul.bf16.gmra.mxu0 %v431
      %v571 = vpop.f32.mrf.mxu0
      %v572 = vadd.f32 0.0, %v571
      %v573 = vpop.f32.mrf.mxu0
      %v574 = vadd.f32 0.0, %v573
      %575 = vmatmul.bf16.gmra.mxu0 %v434
      %v576 = vpop.f32.mrf.mxu0
      %v577 = vadd.f32 0.0, %v576
      %v578 = vpop.f32.mrf.mxu0
      %v579 = vadd.f32 0.0, %v578
      %580 = vmatmul.bf16.gmra.mxu0 %v437
      %v581 = vpop.f32.mrf.mxu0
      %v582 = vadd.f32 0.0, %v581
      %v583 = vpop.f32.mrf.mxu0
      %v584 = vadd.f32 0.0, %v583
      %585 = vmatmul.bf16.gmra.mxu0 %v440
      %v586 = vpop.f32.mrf.mxu0
      %v587 = vadd.f32 0.0, %v586
      %v588 = vpop.f32.mrf.mxu0
      %v589 = vadd.f32 0.0, %v588
      %590 = vmatmul.bf16.gmra.mxu0 %v443
      %v591 = vpop.f32.mrf.mxu0
      %v592 = vadd.f32 0.0, %v591
      %v593 = vpop.f32.mrf.mxu0
      %v594 = vadd.f32 0.0, %v593
      %595 = vmatmul.bf16.gmra.mxu0 %v446
      %v596 = vpop.f32.mrf.mxu0
      %v597 = vadd.f32 0.0, %v596
      %v598 = vpop.f32.mrf.mxu0
      %v599 = vadd.f32 0.0, %v598
      %600 = vmatmul.bf16.gmra.mxu0 %v449
      %v601 = vpop.f32.mrf.mxu0
      %v602 = vadd.f32 0.0, %v601
      %v603 = vpop.f32.mrf.mxu0
      %v604 = vadd.f32 0.0, %v603
      %605 = vmatmul.bf16.gmra.mxu0 %v452
      %v606 = vpop.f32.mrf.mxu0
      %v607 = vadd.f32 0.0, %v606
      %v608 = vpop.f32.mrf.mxu0
      %v609 = vadd.f32 0.0, %v608
      %610 = vdwg.mxu0
      %v627 = vunpack.c.l.b16 %v269
      %v628 = vunpack.c.l.b16 %v270
      %v629 = vunpack.c.l.b16 %v271
      %v630 = vunpack.c.l.b16 %v272
      %v631 = vunpack.c.l.b16 %v273
      %v632 = vunpack.c.l.b16 %v274
      %v633 = vunpack.c.l.b16 %v275
      %v634 = vunpack.c.l.b16 %v276
      %v635 = vunpack.c.l.b16 %v277
      %v636 = vunpack.c.l.b16 %v278
      %v637 = vunpack.c.l.b16 %v279
      %v638 = vunpack.c.l.b16 %v280
      %v639 = vunpack.c.l.b16 %v281
      %v640 = vunpack.c.l.b16 %v282
      %v641 = vunpack.c.l.b16 %v283
      %v642 = vunpack.c.l.b16 %v284
      %v643 = vpack.c.b16 %v628, %v627
      %v644 = vpack.c.b16 %v630, %v629
      %v645 = vpack.c.b16 %v632, %v631
      %v646 = vpack.c.b16 %v634, %v633
      %v647 = vpack.c.b16 %v636, %v635
      %v648 = vpack.c.b16 %v638, %v637
      %v649 = vpack.c.b16 %v640, %v639
      %v650 = vpack.c.b16 %v642, %v641
      %v656 = vunpack.c.l.b16 %v260
      %v657 = vunpack.c.l.b16 %v262
      %v658 = vunpack.c.l.b16 %v264
      %v659 = vunpack.c.l.b16 %v266
      %v660 = vunpack.c.l.b16 %v268
      %v661 = vpack.c.b16 %v657, %v656
      %v662 = vpack.c.b16 %v659, %v658
      %v663 = vpack.c.b16 %v660, %v660
      %v671 = vsel %vm429, %v643, 0
      %v674 = vsel %vm429, %v644, 0
      %v677 = vsel %vm429, %v645, 0
      %v680 = vsel %vm429, %v646, 0
      %v683 = vsel %vm429, %v647, 0
      %v686 = vsel %vm429, %v648, 0
      %v689 = vsel %vm429, %v649, 0
      %v692 = vsel %vm429, %v650, 0
      %v695 = vsel %vm454, %v385, 0
      %v698 = vsel %vm454, %v386, 0
      %v701 = vsel %vm454, %v663, 0
      %703 = vmatpush.bf16.msra.mxu0 0
      %704 = vmatpush.bf16.msra.mxu0 0
      %705 = vmatpush.bf16.msra.mxu0 0
      %706 = vmatpush.bf16.msra.mxu0 0
      %707 = vmatpush.bf16.msra.mxu0 0
      %708 = vmatpush.bf16.msra.mxu0 %v695
      %709 = vmatpush.bf16.msra.mxu0 %v381
      %710 = vmatpush.bf16.msra.mxu0 %v377
      %711 = vmatmul.bf16.gmra.mxu0 %v671
      %v712 = vpop.f32.mrf.mxu0
      %v713 = vadd.f32 %v474, %v712
      %v714 = vpop.f32.mrf.mxu0
      %v715 = vadd.f32 %v476, %v714
      %716 = vmatmul.bf16.gmra.mxu0 %v674
      %v717 = vpop.f32.mrf.mxu0
      %v718 = vadd.f32 %v479, %v717
      %v719 = vpop.f32.mrf.mxu0
      %v720 = vadd.f32 %v481, %v719
      %721 = vmatmul.bf16.gmra.mxu0 %v677
      %v722 = vpop.f32.mrf.mxu0
      %v723 = vadd.f32 %v484, %v722
      %v724 = vpop.f32.mrf.mxu0
      %v725 = vadd.f32 %v486, %v724
      %726 = vmatmul.bf16.gmra.mxu0 %v680
      %v727 = vpop.f32.mrf.mxu0
      %v728 = vadd.f32 %v489, %v727
      %v729 = vpop.f32.mrf.mxu0
      %v730 = vadd.f32 %v491, %v729
      %731 = vmatmul.bf16.gmra.mxu0 %v683
      %v732 = vpop.f32.mrf.mxu0
      %v733 = vadd.f32 %v494, %v732
      %v734 = vpop.f32.mrf.mxu0
      %v735 = vadd.f32 %v496, %v734
      %736 = vmatmul.bf16.gmra.mxu0 %v686
      %v737 = vpop.f32.mrf.mxu0
      %v738 = vadd.f32 %v499, %v737
      %v739 = vpop.f32.mrf.mxu0
      %v740 = vadd.f32 %v501, %v739
      %741 = vmatmul.bf16.gmra.mxu0 %v689
      %v742 = vpop.f32.mrf.mxu0
      %v743 = vadd.f32 %v504, %v742
      %v744 = vpop.f32.mrf.mxu0
      %v745 = vadd.f32 %v506, %v744
      %746 = vmatmul.bf16.gmra.mxu0 %v692
      %v747 = vpop.f32.mrf.mxu0
      %v748 = vadd.f32 %v509, %v747
      %v749 = vpop.f32.mrf.mxu0
      %v750 = vadd.f32 %v511, %v749
      %751 = vdwg.mxu0
      %752 = vmatpush.bf16.msra.mxu0 0
      %753 = vmatpush.bf16.msra.mxu0 0
      %754 = vmatpush.bf16.msra.mxu0 0
      %755 = vmatpush.bf16.msra.mxu0 0
      %756 = vmatpush.bf16.msra.mxu0 0
      %757 = vmatpush.bf16.msra.mxu0 %v698
      %758 = vmatpush.bf16.msra.mxu0 %v382
      %759 = vmatpush.bf16.msra.mxu0 %v378
      %760 = vmatmul.bf16.gmra.mxu0 %v671
      %v761 = vpop.f32.mrf.mxu0
      %v762 = vadd.f32 %v523, %v761
      %v763 = vpop.f32.mrf.mxu0
      %v764 = vadd.f32 %v525, %v763
      %765 = vmatmul.bf16.gmra.mxu0 %v674
      %v766 = vpop.f32.mrf.mxu0
      %v767 = vadd.f32 %v528, %v766
      %v768 = vpop.f32.mrf.mxu0
      %v769 = vadd.f32 %v530, %v768
      %770 = vmatmul.bf16.gmra.mxu0 %v677
      %v771 = vpop.f32.mrf.mxu0
      %v772 = vadd.f32 %v533, %v771
      %v773 = vpop.f32.mrf.mxu0
      %v774 = vadd.f32 %v535, %v773
      %775 = vmatmul.bf16.gmra.mxu0 %v680
      %v776 = vpop.f32.mrf.mxu0
      %v777 = vadd.f32 %v538, %v776
      %v778 = vpop.f32.mrf.mxu0
      %v779 = vadd.f32 %v540, %v778
      %780 = vmatmul.bf16.gmra.mxu0 %v683
      %v781 = vpop.f32.mrf.mxu0
      %v782 = vadd.f32 %v543, %v781
      %v783 = vpop.f32.mrf.mxu0
      %v784 = vadd.f32 %v545, %v783
      %785 = vmatmul.bf16.gmra.mxu0 %v686
      %v786 = vpop.f32.mrf.mxu0
      %v787 = vadd.f32 %v548, %v786
      %v788 = vpop.f32.mrf.mxu0
      %v789 = vadd.f32 %v550, %v788
      %790 = vmatmul.bf16.gmra.mxu0 %v689
      %v791 = vpop.f32.mrf.mxu0
      %v792 = vadd.f32 %v553, %v791
      %v793 = vpop.f32.mrf.mxu0
      %v794 = vadd.f32 %v555, %v793
      %795 = vmatmul.bf16.gmra.mxu0 %v692
      %v796 = vpop.f32.mrf.mxu0
      %v797 = vadd.f32 %v558, %v796
      %v798 = vpop.f32.mrf.mxu0
      %v799 = vadd.f32 %v560, %v798
      %800 = vdwg.mxu0
      %801 = vmatpush.bf16.msra.mxu0 0
      %802 = vmatpush.bf16.msra.mxu0 0
      %803 = vmatpush.bf16.msra.mxu0 0
      %804 = vmatpush.bf16.msra.mxu0 0
      %805 = vmatpush.bf16.msra.mxu0 0
      %806 = vmatpush.bf16.msra.mxu0 %v701
      %807 = vmatpush.bf16.msra.mxu0 %v662
      %808 = vmatpush.bf16.msra.mxu0 %v661
      %809 = vmatmul.bf16.gmra.mxu0 %v671
      %v810 = vpop.f32.mrf.mxu0
      %v811 = vadd.f32 %v572, %v810
      %v812 = vpop.f32.mrf.mxu0
      %v813 = vadd.f32 %v574, %v812
      %814 = vmatmul.bf16.gmra.mxu0 %v674
      %v815 = vpop.f32.mrf.mxu0
      %v816 = vadd.f32 %v577, %v815
      %v817 = vpop.f32.mrf.mxu0
      %v818 = vadd.f32 %v579, %v817
      %819 = vmatmul.bf16.gmra.mxu0 %v677
      %v820 = vpop.f32.mrf.mxu0
      %v821 = vadd.f32 %v582, %v820
      %v822 = vpop.f32.mrf.mxu0
      %v823 = vadd.f32 %v584, %v822
      %824 = vmatmul.bf16.gmra.mxu0 %v680
      %v825 = vpop.f32.mrf.mxu0
      %v826 = vadd.f32 %v587, %v825
      %v827 = vpop.f32.mrf.mxu0
      %v828 = vadd.f32 %v589, %v827
      %829 = vmatmul.bf16.gmra.mxu0 %v683
      %v830 = vpop.f32.mrf.mxu0
      %v831 = vadd.f32 %v592, %v830
      %v832 = vpop.f32.mrf.mxu0
      %v833 = vadd.f32 %v594, %v832
      %834 = vmatmul.bf16.gmra.mxu0 %v686
      %v835 = vpop.f32.mrf.mxu0
      %v836 = vadd.f32 %v597, %v835
      %v837 = vpop.f32.mrf.mxu0
      %v838 = vadd.f32 %v599, %v837
      %839 = vmatmul.bf16.gmra.mxu0 %v689
      %v840 = vpop.f32.mrf.mxu0
      %v841 = vadd.f32 %v602, %v840
      %v842 = vpop.f32.mrf.mxu0
      %v843 = vadd.f32 %v604, %v842
      %844 = vmatmul.bf16.gmra.mxu0 %v692
      %v845 = vpop.f32.mrf.mxu0
      %v846 = vadd.f32 %v607, %v845
      %v847 = vpop.f32.mrf.mxu0
      %v848 = vadd.f32 %v609, %v847
      %849 = vdwg.mxu0
      %s850 = scalar_lea.vmem %s1, 128
      %v851 = vld [vmem:[%s850] sm:$0xf]
      %v852 = vld [vmem:[%s850 + $0x4] sm:$0xf]
      %v853 = vld [vmem:[%s850 + $0x8] sm:$0xf]
      %v854 = vld [vmem:[%s850 + $0xc] sm:$0xf]
      %v855 = vld [vmem:[%s850 + $0x10] sm:$0xf]
      %v856 = vld [vmem:[%s850 + $0x14] sm:$0xf]
      %v857 = vld [vmem:[%s850 + $0x18] sm:$0xf]
      %v858 = vld [vmem:[%s850 + $0x1c] sm:$0xf]
      %v859 = vld [vmem:[%s850 + $0x20] sm:$0xf]
      %v860 = vld [vmem:[%s850 + $0x24] sm:$0xf]
      %v861 = vld [vmem:[%s850 + $0x28] sm:$0xf]
      %v862 = vld [vmem:[%s850 + $0x2c] sm:$0xf]
      %v863 = vld [vmem:[%s850 + $0x30] sm:$0xf]
      %v864 = vld [vmem:[%s850 + $0x34] sm:$0xf]
      %v865 = vld [vmem:[%s850 + $0x38] sm:$0xf]
      %v866 = vld [vmem:[%s850 + $0x3c] sm:$0xf]
      %v883 = vunpack.c.l.b16 %v851
      %v884 = vunpack.c.l.b16 %v852
      %v885 = vunpack.c.l.b16 %v853
      %v886 = vunpack.c.l.b16 %v854
      %v887 = vunpack.c.l.b16 %v855
      %v888 = vunpack.c.l.b16 %v856
      %v889 = vunpack.c.l.b16 %v857
      %v890 = vunpack.c.l.b16 %v858
      %v891 = vunpack.c.l.b16 %v859
      %v892 = vunpack.c.l.b16 %v860
      %v893 = vunpack.c.l.b16 %v861
      %v894 = vunpack.c.l.b16 %v862
      %v895 = vunpack.c.l.b16 %v863
      %v896 = vunpack.c.l.b16 %v864
      %v897 = vunpack.c.l.b16 %v865
      %v898 = vunpack.c.l.b16 %v866
      %v899 = vpack.c.b16 %v884, %v883
      %v900 = vpack.c.b16 %v886, %v885
      %v901 = vpack.c.b16 %v888, %v887
      %v902 = vpack.c.b16 %v890, %v889
      %v903 = vpack.c.b16 %v892, %v891
      %v904 = vpack.c.b16 %v894, %v893
      %v905 = vpack.c.b16 %v896, %v895
      %v906 = vpack.c.b16 %v898, %v897
      %907 = vrot.lane.b32.xlu0 %v377, 126
      %v908 = vpop.permute.xlu0 %907
      %909 = vrot.lane.b32.xlu0 %v378, 126
      %v910 = vpop.permute.xlu0 %909
      %911 = vrot.lane.b32.xlu0 %v379, 126
      %v912 = vpop.permute.xlu0 %911
      %913 = vrot.lane.b32.xlu0 %v380, 126
      %v914 = vpop.permute.xlu0 %913
      %915 = vrot.lane.b32.xlu0 %v381, 126
      %v916 = vpop.permute.xlu0 %915
      %917 = vrot.lane.b32.xlu0 %v382, 126
      %v918 = vpop.permute.xlu0 %917
      %919 = vrot.lane.b32.xlu0 %v383, 126
      %v920 = vpop.permute.xlu0 %919
      %921 = vrot.lane.b32.xlu0 %v384, 126
      %v922 = vpop.permute.xlu0 %921
      %923 = vrot.lane.b32.xlu0 %v385, 126
      %v924 = vpop.permute.xlu0 %923
      %925 = vrot.lane.b32.xlu0 %v386, 126
      %v926 = vpop.permute.xlu0 %925
      %927 = vrot.lane.b32.xlu0 %v387, 126
      %v928 = vpop.permute.xlu0 %927
      %929 = vrot.lane.b32.xlu0 %v388, 126
      %v930 = vpop.permute.xlu0 %929
      %vm931 = vcmask 1031168
      %v932 = vsel %vm931, %v908, %v910
      %v933 = vsel %vm931, %v910, %v912
      %v934 = vsel %vm931, %v912, %v914
      %v935 = vsel %vm931, %v916, %v918
      %v936 = vsel %vm931, %v918, %v920
      %v937 = vsel %vm931, %v920, %v922
      %v938 = vsel %vm931, %v924, %v926
      %v939 = vsel %vm931, %v926, %v928
      %v940 = vsel %vm931, %v928, %v930
      %v948 = vsel %vm429, %v899, 0
      %v951 = vsel %vm429, %v900, 0
      %v954 = vsel %vm429, %v901, 0
      %v957 = vsel %vm429, %v902, 0
      %v960 = vsel %vm429, %v903, 0
      %v963 = vsel %vm429, %v904, 0
      %v966 = vsel %vm429, %v905, 0
      %v969 = vsel %vm429, %v906, 0
      %v972 = vsel %vm454, %v938, 0
      %v975 = vsel %vm454, %v939, 0
      %v978 = vsel %vm454, %v940, 0
      %980 = vmatpush.bf16.msra.mxu0 0
      %981 = vmatpush.bf16.msra.mxu0 0
      %982 = vmatpush.bf16.msra.mxu0 0
      %983 = vmatpush.bf16.msra.mxu0 0
      %984 = vmatpush.bf16.msra.mxu0 0
      %985 = vmatpush.bf16.msra.mxu0 %v972
      %986 = vmatpush.bf16.msra.mxu0 %v935
      %987 = vmatpush.bf16.msra.mxu0 %v932
      %988 = vmatmul.bf16.gmra.mxu0 %v948
      %v989 = vpop.f32.mrf.mxu0
      %v990 = vadd.f32 0.0, %v989
      %v991 = vpop.f32.mrf.mxu0
      %v992 = vadd.f32 0.0, %v991
      %993 = vmatmul.bf16.gmra.mxu0 %v951
      %v994 = vpop.f32.mrf.mxu0
      %v995 = vadd.f32 0.0, %v994
      %v996 = vpop.f32.mrf.mxu0
      %v997 = vadd.f32 0.0, %v996
      %998 = vmatmul.bf16.gmra.mxu0 %v954
      %v999 = vpop.f32.mrf.mxu0
      %v1000 = vadd.f32 0.0, %v999
      %v1001 = vpop.f32.mrf.mxu0
      %v1002 = vadd.f32 0.0, %v1001
      %1003 = vmatmul.bf16.gmra.mxu0 %v957
      %v1004 = vpop.f32.mrf.mxu0
      %v1005 = vadd.f32 0.0, %v1004
      %v1006 = vpop.f32.mrf.mxu0
      %v1007 = vadd.f32 0.0, %v1006
      %1008 = vmatmul.bf16.gmra.mxu0 %v960
      %v1009 = vpop.f32.mrf.mxu0
      %v1010 = vadd.f32 0.0, %v1009
      %v1011 = vpop.f32.mrf.mxu0
      %v1012 = vadd.f32 0.0, %v1011
      %1013 = vmatmul.bf16.gmra.mxu0 %v963
      %v1014 = vpop.f32.mrf.mxu0
      %v1015 = vadd.f32 0.0, %v1014
      %v1016 = vpop.f32.mrf.mxu0
      %v1017 = vadd.f32 0.0, %v1016
      %1018 = vmatmul.bf16.gmra.mxu0 %v966
      %v1019 = vpop.f32.mrf.mxu0
      %v1020 = vadd.f32 0.0, %v1019
      %v1021 = vpop.f32.mrf.mxu0
      %v1022 = vadd.f32 0.0, %v1021
      %1023 = vmatmul.bf16.gmra.mxu0 %v969
      %v1024 = vpop.f32.mrf.mxu0
      %v1025 = vadd.f32 0.0, %v1024
      %v1026 = vpop.f32.mrf.mxu0
      %v1027 = vadd.f32 0.0, %v1026
      %1028 = vdwg.mxu0
      %1029 = vmatpush.bf16.msra.mxu0 0
      %1030 = vmatpush.bf16.msra.mxu0 0
      %1031 = vmatpush.bf16.msra.mxu0 0
      %1032 = vmatpush.bf16.msra.mxu0 0
      %1033 = vmatpush.bf16.msra.mxu0 0
      %1034 = vmatpush.bf16.msra.mxu0 %v975
      %1035 = vmatpush.bf16.msra.mxu0 %v936
      %1036 = vmatpush.bf16.msra.mxu0 %v933
      %1037 = vmatmul.bf16.gmra.mxu0 %v948
      %v1038 = vpop.f32.mrf.mxu0
      %v1039 = vadd.f32 0.0, %v1038
      %v1040 = vpop.f32.mrf.mxu0
      %v1041 = vadd.f32 0.0, %v1040
      %1042 = vmatmul.bf16.gmra.mxu0 %v951
      %v1043 = vpop.f32.mrf.mxu0
      %v1044 = vadd.f32 0.0, %v1043
      %v1045 = vpop.f32.mrf.mxu0
      %v1046 = vadd.f32 0.0, %v1045
      %1047 = vmatmul.bf16.gmra.mxu0 %v954
      %v1048 = vpop.f32.mrf.mxu0
      %v1049 = vadd.f32 0.0, %v1048
      %v1050 = vpop.f32.mrf.mxu0
      %v1051 = vadd.f32 0.0, %v1050
      %1052 = vmatmul.bf16.gmra.mxu0 %v957
      %v1053 = vpop.f32.mrf.mxu0
      %v1054 = vadd.f32 0.0, %v1053
      %v1055 = vpop.f32.mrf.mxu0
      %v1056 = vadd.f32 0.0, %v1055
      %1057 = vmatmul.bf16.gmra.mxu0 %v960
      %v1058 = vpop.f32.mrf.mxu0
      %v1059 = vadd.f32 0.0, %v1058
      %v1060 = vpop.f32.mrf.mxu0
      %v1061 = vadd.f32 0.0, %v1060
      %1062 = vmatmul.bf16.gmra.mxu0 %v963
      %v1063 = vpop.f32.mrf.mxu0
      %v1064 = vadd.f32 0.0, %v1063
      %v1065 = vpop.f32.mrf.mxu0
      %v1066 = vadd.f32 0.0, %v1065
      %1067 = vmatmul.bf16.gmra.mxu0 %v966
      %v1068 = vpop.f32.mrf.mxu0
      %v1069 = vadd.f32 0.0, %v1068
      %v1070 = vpop.f32.mrf.mxu0
      %v1071 = vadd.f32 0.0, %v1070
      %1072 = vmatmul.bf16.gmra.mxu0 %v969
      %v1073 = vpop.f32.mrf.mxu0
      %v1074 = vadd.f32 0.0, %v1073
      %v1075 = vpop.f32.mrf.mxu0
      %v1076 = vadd.f32 0.0, %v1075
      %1077 = vdwg.mxu0
      %1078 = vmatpush.bf16.msra.mxu0 0
      %1079 = vmatpush.bf16.msra.mxu0 0
      %1080 = vmatpush.bf16.msra.mxu0 0
      %1081 = vmatpush.bf16.msra.mxu0 0
      %1082 = vmatpush.bf16.msra.mxu0 0
      %1083 = vmatpush.bf16.msra.mxu0 %v978
      %1084 = vmatpush.bf16.msra.mxu0 %v937
      %1085 = vmatpush.bf16.msra.mxu0 %v934
      %1086 = vmatmul.bf16.gmra.mxu0 %v948
      %v1087 = vpop.f32.mrf.mxu0
      %v1088 = vadd.f32 0.0, %v1087
      %v1089 = vpop.f32.mrf.mxu0
      %v1090 = vadd.f32 0.0, %v1089
      %1091 = vmatmul.bf16.gmra.mxu0 %v951
      %v1092 = vpop.f32.mrf.mxu0
      %v1093 = vadd.f32 0.0, %v1092
      %v1094 = vpop.f32.mrf.mxu0
      %v1095 = vadd.f32 0.0, %v1094
      %1096 = vmatmul.bf16.gmra.mxu0 %v954
      %v1097 = vpop.f32.mrf.mxu0
      %v1098 = vadd.f32 0.0, %v1097
      %v1099 = vpop.f32.mrf.mxu0
      %v1100 = vadd.f32 0.0, %v1099
      %1101 = vmatmul.bf16.gmra.mxu0 %v957
      %v1102 = vpop.f32.mrf.mxu0
      %v1103 = vadd.f32 0.0, %v1102
      %v1104 = vpop.f32.mrf.mxu0
      %v1105 = vadd.f32 0.0, %v1104
      %1106 = vmatmul.bf16.gmra.mxu0 %v960
      %v1107 = vpop.f32.mrf.mxu0
      %v1108 = vadd.f32 0.0, %v1107
      %v1109 = vpop.f32.mrf.mxu0
      %v1110 = vadd.f32 0.0, %v1109
      %1111 = vmatmul.bf16.gmra.mxu0 %v963
      %v1112 = vpop.f32.mrf.mxu0
      %v1113 = vadd.f32 0.0, %v1112
      %v1114 = vpop.f32.mrf.mxu0
      %v1115 = vadd.f32 0.0, %v1114
      %1116 = vmatmul.bf16.gmra.mxu0 %v966
      %v1117 = vpop.f32.mrf.mxu0
      %v1118 = vadd.f32 0.0, %v1117
      %v1119 = vpop.f32.mrf.mxu0
      %v1120 = vadd.f32 0.0, %v1119
      %1121 = vmatmul.bf16.gmra.mxu0 %v969
      %v1122 = vpop.f32.mrf.mxu0
      %v1123 = vadd.f32 0.0, %v1122
      %v1124 = vpop.f32.mrf.mxu0
      %v1125 = vadd.f32 0.0, %v1124
      %1126 = vdwg.mxu0
      %v1127 = vadd.f32 %v713, %v990
      %v1128 = vadd.f32 %v762, %v1039
      %v1129 = vadd.f32 %v811, %v1088
      %v1130 = vadd.f32 %v715, %v992
      %v1131 = vadd.f32 %v764, %v1041
      %v1132 = vadd.f32 %v813, %v1090
      %v1133 = vadd.f32 %v718, %v995
      %v1134 = vadd.f32 %v767, %v1044
      %v1135 = vadd.f32 %v816, %v1093
      %v1136 = vadd.f32 %v720, %v997
      %v1137 = vadd.f32 %v769, %v1046
      %v1138 = vadd.f32 %v818, %v1095
      %v1139 = vadd.f32 %v723, %v1000
      %v1140 = vadd.f32 %v772, %v1049
      %v1141 = vadd.f32 %v821, %v1098
      %v1142 = vadd.f32 %v725, %v1002
      %v1143 = vadd.f32 %v774, %v1051
      %v1144 = vadd.f32 %v823, %v1100
      %v1145 = vadd.f32 %v728, %v1005
      %v1146 = vadd.f32 %v777, %v1054
      %v1147 = vadd.f32 %v826, %v1103
      %v1148 = vadd.f32 %v730, %v1007
      %v1149 = vadd.f32 %v779, %v1056
      %v1150 = vadd.f32 %v828, %v1105
      %v1151 = vadd.f32 %v733, %v1010
      %v1152 = vadd.f32 %v782, %v1059
      %v1153 = vadd.f32 %v831, %v1108
      %v1154 = vadd.f32 %v735, %v1012
      %v1155 = vadd.f32 %v784, %v1061
      %v1156 = vadd.f32 %v833, %v1110
      %v1157 = vadd.f32 %v738, %v1015
      %v1158 = vadd.f32 %v787, %v1064
      %v1159 = vadd.f32 %v836, %v1113
      %v1160 = vadd.f32 %v740, %v1017
      %v1161 = vadd.f32 %v789, %v1066
      %v1162 = vadd.f32 %v838, %v1115
      %v1163 = vadd.f32 %v743, %v1020
      %v1164 = vadd.f32 %v792, %v1069
      %v1165 = vadd.f32 %v841, %v1118
      %v1166 = vadd.f32 %v745, %v1022
      %v1167 = vadd.f32 %v794, %v1071
      %v1168 = vadd.f32 %v843, %v1120
      %v1169 = vadd.f32 %v748, %v1025
      %v1170 = vadd.f32 %v797, %v1074
      %v1171 = vadd.f32 %v846, %v1123
      %v1172 = vadd.f32 %v750, %v1027
      %v1173 = vadd.f32 %v799, %v1076
      %v1174 = vadd.f32 %v848, %v1125
      %s1175 = scalar_lea.vmem %s1, 192
      %v1176 = vld [vmem:[%s1175] sm:$0xf]
      %v1177 = vld [vmem:[%s1175 + $0x4] sm:$0xf]
      %v1178 = vld [vmem:[%s1175 + $0x8] sm:$0xf]
      %v1179 = vld [vmem:[%s1175 + $0xc] sm:$0xf]
      %v1180 = vld [vmem:[%s1175 + $0x10] sm:$0xf]
      %v1181 = vld [vmem:[%s1175 + $0x14] sm:$0xf]
      %v1182 = vld [vmem:[%s1175 + $0x18] sm:$0xf]
      %v1183 = vld [vmem:[%s1175 + $0x1c] sm:$0xf]
      %v1184 = vld [vmem:[%s1175 + $0x20] sm:$0xf]
      %v1185 = vld [vmem:[%s1175 + $0x24] sm:$0xf]
      %v1186 = vld [vmem:[%s1175 + $0x28] sm:$0xf]
      %v1187 = vld [vmem:[%s1175 + $0x2c] sm:$0xf]
      %v1188 = vld [vmem:[%s1175 + $0x30] sm:$0xf]
      %v1189 = vld [vmem:[%s1175 + $0x34] sm:$0xf]
      %v1190 = vld [vmem:[%s1175 + $0x38] sm:$0xf]
      %v1191 = vld [vmem:[%s1175 + $0x3c] sm:$0xf]
      %v1208 = vunpack.c.l.b16 %v1176
      %v1209 = vunpack.c.l.b16 %v1177
      %v1210 = vunpack.c.l.b16 %v1178
      %v1211 = vunpack.c.l.b16 %v1179
      %v1212 = vunpack.c.l.b16 %v1180
      %v1213 = vunpack.c.l.b16 %v1181
      %v1214 = vunpack.c.l.b16 %v1182
      %v1215 = vunpack.c.l.b16 %v1183
      %v1216 = vunpack.c.l.b16 %v1184
      %v1217 = vunpack.c.l.b16 %v1185
      %v1218 = vunpack.c.l.b16 %v1186
      %v1219 = vunpack.c.l.b16 %v1187
      %v1220 = vunpack.c.l.b16 %v1188
      %v1221 = vunpack.c.l.b16 %v1189
      %v1222 = vunpack.c.l.b16 %v1190
      %v1223 = vunpack.c.l.b16 %v1191
      %v1224 = vpack.c.b16 %v1209, %v1208
      %v1225 = vpack.c.b16 %v1211, %v1210
      %v1226 = vpack.c.b16 %v1213, %v1212
      %v1227 = vpack.c.b16 %v1215, %v1214
      %v1228 = vpack.c.b16 %v1217, %v1216
      %v1229 = vpack.c.b16 %v1219, %v1218
      %v1230 = vpack.c.b16 %v1221, %v1220
      %v1231 = vpack.c.b16 %v1223, %v1222
      %1232 = vrot.lane.b32.xlu0 %v377, 104
      %v1233 = vpop.permute.xlu0 %1232
      %1234 = vrot.lane.b32.xlu0 %v378, 104
      %v1235 = vpop.permute.xlu0 %1234
      %1236 = vrot.lane.b32.xlu0 %v379, 104
      %v1237 = vpop.permute.xlu0 %1236
      %1238 = vrot.lane.b32.xlu0 %v380, 104
      %v1239 = vpop.permute.xlu0 %1238
      %1240 = vrot.lane.b32.xlu0 %v381, 104
      %v1241 = vpop.permute.xlu0 %1240
      %1242 = vrot.lane.b32.xlu0 %v382, 104
      %v1243 = vpop.permute.xlu0 %1242
      %1244 = vrot.lane.b32.xlu0 %v383, 104
      %v1245 = vpop.permute.xlu0 %1244
      %1246 = vrot.lane.b32.xlu0 %v384, 104
      %v1247 = vpop.permute.xlu0 %1246
      %1248 = vrot.lane.b32.xlu0 %v385, 104
      %v1249 = vpop.permute.xlu0 %1248
      %1250 = vrot.lane.b32.xlu0 %v386, 104
      %v1251 = vpop.permute.xlu0 %1250
      %1252 = vrot.lane.b32.xlu0 %v387, 104
      %v1253 = vpop.permute.xlu0 %1252
      %1254 = vrot.lane.b32.xlu0 %v388, 104
      %v1255 = vpop.permute.xlu0 %1254
      %vm1256 = vcmask 850944
      %v1257 = vsel %vm1256, %v1233, %v1235
      %v1258 = vsel %vm1256, %v1235, %v1237
      %v1259 = vsel %vm1256, %v1237, %v1239
      %v1260 = vsel %vm1256, %v1241, %v1243
      %v1261 = vsel %vm1256, %v1243, %v1245
      %v1262 = vsel %vm1256, %v1245, %v1247
      %v1263 = vsel %vm1256, %v1249, %v1251
      %v1264 = vsel %vm1256, %v1251, %v1253
      %v1265 = vsel %vm1256, %v1253, %v1255
      %v1273 = vsel %vm429, %v1224, 0
      %v1276 = vsel %vm429, %v1225, 0
      %v1279 = vsel %vm429, %v1226, 0
      %v1282 = vsel %vm429, %v1227, 0
      %v1285 = vsel %vm429, %v1228, 0
      %v1288 = vsel %vm429, %v1229, 0
      %v1291 = vsel %vm429, %v1230, 0
      %v1294 = vsel %vm429, %v1231, 0
      %v1297 = vsel %vm454, %v1263, 0
      %v1300 = vsel %vm454, %v1264, 0
      %v1303 = vsel %vm454, %v1265, 0
      %1305 = vmatpush.bf16.msra.mxu0 0
      %1306 = vmatpush.bf16.msra.mxu0 0
      %1307 = vmatpush.bf16.msra.mxu0 0
      %1308 = vmatpush.bf16.msra.mxu0 0
      %1309 = vmatpush.bf16.msra.mxu0 0
      %1310 = vmatpush.bf16.msra.mxu0 %v1297
      %1311 = vmatpush.bf16.msra.mxu0 %v1260
      %1312 = vmatpush.bf16.msra.mxu0 %v1257
      %1313 = vmatmul.bf16.gmra.mxu0 %v1273
      %v1314 = vpop.f32.mrf.mxu0
      %v1315 = vadd.f32 0.0, %v1314
      %v1316 = vpop.f32.mrf.mxu0
      %v1317 = vadd.f32 0.0, %v1316
      %1318 = vmatmul.bf16.gmra.mxu0 %v1276
      %v1319 = vpop.f32.mrf.mxu0
      %v1320 = vadd.f32 0.0, %v1319
      %v1321 = vpop.f32.mrf.mxu0
      %v1322 = vadd.f32 0.0, %v1321
      %1323 = vmatmul.bf16.gmra.mxu0 %v1279
      %v1324 = vpop.f32.mrf.mxu0
      %v1325 = vadd.f32 0.0, %v1324
      %v1326 = vpop.f32.mrf.mxu0
      %v1327 = vadd.f32 0.0, %v1326
      %1328 = vmatmul.bf16.gmra.mxu0 %v1282
      %v1329 = vpop.f32.mrf.mxu0
      %v1330 = vadd.f32 0.0, %v1329
      %v1331 = vpop.f32.mrf.mxu0
      %v1332 = vadd.f32 0.0, %v1331
      %1333 = vmatmul.bf16.gmra.mxu0 %v1285
      %v1334 = vpop.f32.mrf.mxu0
      %v1335 = vadd.f32 0.0, %v1334
      %v1336 = vpop.f32.mrf.mxu0
      %v1337 = vadd.f32 0.0, %v1336
      %1338 = vmatmul.bf16.gmra.mxu0 %v1288
      %v1339 = vpop.f32.mrf.mxu0
      %v1340 = vadd.f32 0.0, %v1339
      %v1341 = vpop.f32.mrf.mxu0
      %v1342 = vadd.f32 0.0, %v1341
      %1343 = vmatmul.bf16.gmra.mxu0 %v1291
      %v1344 = vpop.f32.mrf.mxu0
      %v1345 = vadd.f32 0.0, %v1344
      %v1346 = vpop.f32.mrf.mxu0
      %v1347 = vadd.f32 0.0, %v1346
      %1348 = vmatmul.bf16.gmra.mxu0 %v1294
      %v1349 = vpop.f32.mrf.mxu0
      %v1350 = vadd.f32 0.0, %v1349
      %v1351 = vpop.f32.mrf.mxu0
      %v1352 = vadd.f32 0.0, %v1351
      %1353 = vdwg.mxu0
      %1354 = vmatpush.bf16.msra.mxu0 0
      %1355 = vmatpush.bf16.msra.mxu0 0
      %1356 = vmatpush.bf16.msra.mxu0 0
      %1357 = vmatpush.bf16.msra.mxu0 0
      %1358 = vmatpush.bf16.msra.mxu0 0
      %1359 = vmatpush.bf16.msra.mxu0 %v1300
      %1360 = vmatpush.bf16.msra.mxu0 %v1261
      %1361 = vmatpush.bf16.msra.mxu0 %v1258
      %1362 = vmatmul.bf16.gmra.mxu0 %v1273
      %v1363 = vpop.f32.mrf.mxu0
      %v1364 = vadd.f32 0.0, %v1363
      %v1365 = vpop.f32.mrf.mxu0
      %v1366 = vadd.f32 0.0, %v1365
      %1367 = vmatmul.bf16.gmra.mxu0 %v1276
      %v1368 = vpop.f32.mrf.mxu0
      %v1369 = vadd.f32 0.0, %v1368
      %v1370 = vpop.f32.mrf.mxu0
      %v1371 = vadd.f32 0.0, %v1370
      %1372 = vmatmul.bf16.gmra.mxu0 %v1279
      %v1373 = vpop.f32.mrf.mxu0
      %v1374 = vadd.f32 0.0, %v1373
      %v1375 = vpop.f32.mrf.mxu0
      %v1376 = vadd.f32 0.0, %v1375
      %1377 = vmatmul.bf16.gmra.mxu0 %v1282
      %v1378 = vpop.f32.mrf.mxu0
      %v1379 = vadd.f32 0.0, %v1378
      %v1380 = vpop.f32.mrf.mxu0
      %v1381 = vadd.f32 0.0, %v1380
      %1382 = vmatmul.bf16.gmra.mxu0 %v1285
      %v1383 = vpop.f32.mrf.mxu0
      %v1384 = vadd.f32 0.0, %v1383
      %v1385 = vpop.f32.mrf.mxu0
      %v1386 = vadd.f32 0.0, %v1385
      %1387 = vmatmul.bf16.gmra.mxu0 %v1288
      %v1388 = vpop.f32.mrf.mxu0
      %v1389 = vadd.f32 0.0, %v1388
      %v1390 = vpop.f32.mrf.mxu0
      %v1391 = vadd.f32 0.0, %v1390
      %1392 = vmatmul.bf16.gmra.mxu0 %v1291
      %v1393 = vpop.f32.mrf.mxu0
      %v1394 = vadd.f32 0.0, %v1393
      %v1395 = vpop.f32.mrf.mxu0
      %v1396 = vadd.f32 0.0, %v1395
      %1397 = vmatmul.bf16.gmra.mxu0 %v1294
      %v1398 = vpop.f32.mrf.mxu0
      %v1399 = vadd.f32 0.0, %v1398
      %v1400 = vpop.f32.mrf.mxu0
      %v1401 = vadd.f32 0.0, %v1400
      %1402 = vdwg.mxu0
      %1403 = vmatpush.bf16.msra.mxu0 0
      %1404 = vmatpush.bf16.msra.mxu0 0
      %1405 = vmatpush.bf16.msra.mxu0 0
      %1406 = vmatpush.bf16.msra.mxu0 0
      %1407 = vmatpush.bf16.msra.mxu0 0
      %1408 = vmatpush.bf16.msra.mxu0 %v1303
      %1409 = vmatpush.bf16.msra.mxu0 %v1262
      %1410 = vmatpush.bf16.msra.mxu0 %v1259
      %1411 = vmatmul.bf16.gmra.mxu0 %v1273
      %v1412 = vpop.f32.mrf.mxu0
      %v1413 = vadd.f32 0.0, %v1412
      %v1414 = vpop.f32.mrf.mxu0
      %v1415 = vadd.f32 0.0, %v1414
      %1416 = vmatmul.bf16.gmra.mxu0 %v1276
      %v1417 = vpop.f32.mrf.mxu0
      %v1418 = vadd.f32 0.0, %v1417
      %v1419 = vpop.f32.mrf.mxu0
      %v1420 = vadd.f32 0.0, %v1419
      %1421 = vmatmul.bf16.gmra.mxu0 %v1279
      %v1422 = vpop.f32.mrf.mxu0
      %v1423 = vadd.f32 0.0, %v1422
      %v1424 = vpop.f32.mrf.mxu0
      %v1425 = vadd.f32 0.0, %v1424
      %1426 = vmatmul.bf16.gmra.mxu0 %v1282
      %v1427 = vpop.f32.mrf.mxu0
      %v1428 = vadd.f32 0.0, %v1427
      %v1429 = vpop.f32.mrf.mxu0
      %v1430 = vadd.f32 0.0, %v1429
      %1431 = vmatmul.bf16.gmra.mxu0 %v1285
      %v1432 = vpop.f32.mrf.mxu0
      %v1433 = vadd.f32 0.0, %v1432
      %v1434 = vpop.f32.mrf.mxu0
      %v1435 = vadd.f32 0.0, %v1434
      %1436 = vmatmul.bf16.gmra.mxu0 %v1288
      %v1437 = vpop.f32.mrf.mxu0
      %v1438 = vadd.f32 0.0, %v1437
      %v1439 = vpop.f32.mrf.mxu0
      %v1440 = vadd.f32 0.0, %v1439
      %1441 = vmatmul.bf16.gmra.mxu0 %v1291
      %v1442 = vpop.f32.mrf.mxu0
      %v1443 = vadd.f32 0.0, %v1442
      %v1444 = vpop.f32.mrf.mxu0
      %v1445 = vadd.f32 0.0, %v1444
      %1446 = vmatmul.bf16.gmra.mxu0 %v1294
      %v1447 = vpop.f32.mrf.mxu0
      %v1448 = vadd.f32 0.0, %v1447
      %v1449 = vpop.f32.mrf.mxu0
      %v1450 = vadd.f32 0.0, %v1449
      %1451 = vdwg.mxu0
      %v1452 = vadd.f32 %v1127, %v1315
      %v1453 = vadd.f32 %v1128, %v1364
      %v1454 = vadd.f32 %v1129, %v1413
      %v1455 = vadd.f32 %v1130, %v1317
      %v1456 = vadd.f32 %v1131, %v1366
      %v1457 = vadd.f32 %v1132, %v1415
      %v1458 = vadd.f32 %v1133, %v1320
      %v1459 = vadd.f32 %v1134, %v1369
      %v1460 = vadd.f32 %v1135, %v1418
      %v1461 = vadd.f32 %v1136, %v1322
      %v1462 = vadd.f32 %v1137, %v1371
      %v1463 = vadd.f32 %v1138, %v1420
      %v1464 = vadd.f32 %v1139, %v1325
      %v1465 = vadd.f32 %v1140, %v1374
      %v1466 = vadd.f32 %v1141, %v1423
      %v1467 = vadd.f32 %v1142, %v1327
      %v1468 = vadd.f32 %v1143, %v1376
      %v1469 = vadd.f32 %v1144, %v1425
      %v1470 = vadd.f32 %v1145, %v1330
      %v1471 = vadd.f32 %v1146, %v1379
      %v1472 = vadd.f32 %v1147, %v1428
      %v1473 = vadd.f32 %v1148, %v1332
      %v1474 = vadd.f32 %v1149, %v1381
      %v1475 = vadd.f32 %v1150, %v1430
      %v1476 = vadd.f32 %v1151, %v1335
      %v1477 = vadd.f32 %v1152, %v1384
      %v1478 = vadd.f32 %v1153, %v1433
      %v1479 = vadd.f32 %v1154, %v1337
      %v1480 = vadd.f32 %v1155, %v1386
      %v1481 = vadd.f32 %v1156, %v1435
      %v1482 = vadd.f32 %v1157, %v1340
      %v1483 = vadd.f32 %v1158, %v1389
      %v1484 = vadd.f32 %v1159, %v1438
      %v1485 = vadd.f32 %v1160, %v1342
      %v1486 = vadd.f32 %v1161, %v1391
      %v1487 = vadd.f32 %v1162, %v1440
      %v1488 = vadd.f32 %v1163, %v1345
      %v1489 = vadd.f32 %v1164, %v1394
      %v1490 = vadd.f32 %v1165, %v1443
      %v1491 = vadd.f32 %v1166, %v1347
      %v1492 = vadd.f32 %v1167, %v1396
      %v1493 = vadd.f32 %v1168, %v1445
      %v1494 = vadd.f32 %v1169, %v1350
      %v1495 = vadd.f32 %v1170, %v1399
      %v1496 = vadd.f32 %v1171, %v1448
      %v1497 = vadd.f32 %v1172, %v1352
      %v1498 = vadd.f32 %v1173, %v1401
      %v1499 = vadd.f32 %v1174, %v1450
      %s1500 = scalar_lea.vmem %s1, 256
      %v1501 = vld [vmem:[%s1500] sm:$0xf]
      %v1502 = vld [vmem:[%s1500 + $0x4] sm:$0xf]
      %v1503 = vld [vmem:[%s1500 + $0x8] sm:$0xf]
      %v1504 = vld [vmem:[%s1500 + $0xc] sm:$0xf]
      %v1505 = vld [vmem:[%s1500 + $0x10] sm:$0xf]
      %v1506 = vld [vmem:[%s1500 + $0x14] sm:$0xf]
      %v1507 = vld [vmem:[%s1500 + $0x18] sm:$0xf]
      %v1508 = vld [vmem:[%s1500 + $0x1c] sm:$0xf]
      %v1509 = vld [vmem:[%s1500 + $0x20] sm:$0xf]
      %v1510 = vld [vmem:[%s1500 + $0x24] sm:$0xf]
      %v1511 = vld [vmem:[%s1500 + $0x28] sm:$0xf]
      %v1512 = vld [vmem:[%s1500 + $0x2c] sm:$0xf]
      %v1513 = vld [vmem:[%s1500 + $0x30] sm:$0xf]
      %v1514 = vld [vmem:[%s1500 + $0x34] sm:$0xf]
      %v1515 = vld [vmem:[%s1500 + $0x38] sm:$0xf]
      %v1516 = vld [vmem:[%s1500 + $0x3c] sm:$0xf]
      %v1533 = vunpack.c.l.b16 %v1501
      %v1534 = vunpack.c.l.b16 %v1502
      %v1535 = vunpack.c.l.b16 %v1503
      %v1536 = vunpack.c.l.b16 %v1504
      %v1537 = vunpack.c.l.b16 %v1505
      %v1538 = vunpack.c.l.b16 %v1506
      %v1539 = vunpack.c.l.b16 %v1507
      %v1540 = vunpack.c.l.b16 %v1508
      %v1541 = vunpack.c.l.b16 %v1509
      %v1542 = vunpack.c.l.b16 %v1510
      %v1543 = vunpack.c.l.b16 %v1511
      %v1544 = vunpack.c.l.b16 %v1512
      %v1545 = vunpack.c.l.b16 %v1513
      %v1546 = vunpack.c.l.b16 %v1514
      %v1547 = vunpack.c.l.b16 %v1515
      %v1548 = vunpack.c.l.b16 %v1516
      %v1549 = vpack.c.b16 %v1534, %v1533
      %v1550 = vpack.c.b16 %v1536, %v1535
      %v1551 = vpack.c.b16 %v1538, %v1537
      %v1552 = vpack.c.b16 %v1540, %v1539
      %v1553 = vpack.c.b16 %v1542, %v1541
      %v1554 = vpack.c.b16 %v1544, %v1543
      %v1555 = vpack.c.b16 %v1546, %v1545
      %v1556 = vpack.c.b16 %v1548, %v1547
      %1557 = vrot.lane.b32.xlu0 %v377, 103
      %v1558 = vpop.permute.xlu0 %1557
      %1559 = vrot.lane.b32.xlu0 %v378, 103
      %v1560 = vpop.permute.xlu0 %1559
      %1561 = vrot.lane.b32.xlu0 %v379, 103
      %v1562 = vpop.permute.xlu0 %1561
      %1563 = vrot.lane.b32.xlu0 %v380, 103
      %v1564 = vpop.permute.xlu0 %1563
      %1565 = vrot.lane.b32.xlu0 %v381, 103
      %v1566 = vpop.permute.xlu0 %1565
      %1567 = vrot.lane.b32.xlu0 %v382, 103
      %v1568 = vpop.permute.xlu0 %1567
      %1569 = vrot.lane.b32.xlu0 %v383, 103
      %v1570 = vpop.permute.xlu0 %1569
      %1571 = vrot.lane.b32.xlu0 %v384, 103
      %v1572 = vpop.permute.xlu0 %1571
      %1573 = vrot.lane.b32.xlu0 %v385, 103
      %v1574 = vpop.permute.xlu0 %1573
      %1575 = vrot.lane.b32.xlu0 %v386, 103
      %v1576 = vpop.permute.xlu0 %1575
      %1577 = vrot.lane.b32.xlu0 %v387, 103
      %v1578 = vpop.permute.xlu0 %1577
      %1579 = vrot.lane.b32.xlu0 %v388, 103
      %v1580 = vpop.permute.xlu0 %1579
      %vm1581 = vcmask 842752
      %v1582 = vsel %vm1581, %v1558, %v1560
      %v1583 = vsel %vm1581, %v1560, %v1562
      %v1584 = vsel %vm1581, %v1562, %v1564
      %v1585 = vsel %vm1581, %v1566, %v1568
      %v1586 = vsel %vm1581, %v1568, %v1570
      %v1587 = vsel %vm1581, %v1570, %v1572
      %v1588 = vsel %vm1581, %v1574, %v1576
      %v1589 = vsel %vm1581, %v1576, %v1578
      %v1590 = vsel %vm1581, %v1578, %v1580
      %v1598 = vsel %vm429, %v1549, 0
      %v1601 = vsel %vm429, %v1550, 0
      %v1604 = vsel %vm429, %v1551, 0
      %v1607 = vsel %vm429, %v1552, 0
      %v1610 = vsel %vm429, %v1553, 0
      %v1613 = vsel %vm429, %v1554, 0
      %v1616 = vsel %vm429, %v1555, 0
      %v1619 = vsel %vm429, %v1556, 0
      %v1622 = vsel %vm454, %v1588, 0
      %v1625 = vsel %vm454, %v1589, 0
      %v1628 = vsel %vm454, %v1590, 0
      %1630 = vmatpush.bf16.msra.mxu0 0
      %1631 = vmatpush.bf16.msra.mxu0 0
      %1632 = vmatpush.bf16.msra.mxu0 0
      %1633 = vmatpush.bf16.msra.mxu0 0
      %1634 = vmatpush.bf16.msra.mxu0 0
      %1635 = vmatpush.bf16.msra.mxu0 %v1622
      %1636 = vmatpush.bf16.msra.mxu0 %v1585
      %1637 = vmatpush.bf16.msra.mxu0 %v1582
      %1638 = vmatmul.bf16.gmra.mxu0 %v1598
      %v1639 = vpop.f32.mrf.mxu0
      %v1640 = vadd.f32 0.0, %v1639
      %v1641 = vpop.f32.mrf.mxu0
      %v1642 = vadd.f32 0.0, %v1641
      %1643 = vmatmul.bf16.gmra.mxu0 %v1601
      %v1644 = vpop.f32.mrf.mxu0
      %v1645 = vadd.f32 0.0, %v1644
      %v1646 = vpop.f32.mrf.mxu0
      %v1647 = vadd.f32 0.0, %v1646
      %1648 = vmatmul.bf16.gmra.mxu0 %v1604
      %v1649 = vpop.f32.mrf.mxu0
      %v1650 = vadd.f32 0.0, %v1649
      %v1651 = vpop.f32.mrf.mxu0
      %v1652 = vadd.f32 0.0, %v1651
      %1653 = vmatmul.bf16.gmra.mxu0 %v1607
      %v1654 = vpop.f32.mrf.mxu0
      %v1655 = vadd.f32 0.0, %v1654
      %v1656 = vpop.f32.mrf.mxu0
      %v1657 = vadd.f32 0.0, %v1656
      %1658 = vmatmul.bf16.gmra.mxu0 %v1610
      %v1659 = vpop.f32.mrf.mxu0
      %v1660 = vadd.f32 0.0, %v1659
      %v1661 = vpop.f32.mrf.mxu0
      %v1662 = vadd.f32 0.0, %v1661
      %1663 = vmatmul.bf16.gmra.mxu0 %v1613
      %v1664 = vpop.f32.mrf.mxu0
      %v1665 = vadd.f32 0.0, %v1664
      %v1666 = vpop.f32.mrf.mxu0
      %v1667 = vadd.f32 0.0, %v1666
      %1668 = vmatmul.bf16.gmra.mxu0 %v1616
      %v1669 = vpop.f32.mrf.mxu0
      %v1670 = vadd.f32 0.0, %v1669
      %v1671 = vpop.f32.mrf.mxu0
      %v1672 = vadd.f32 0.0, %v1671
      %1673 = vmatmul.bf16.gmra.mxu0 %v1619
      %v1674 = vpop.f32.mrf.mxu0
      %v1675 = vadd.f32 0.0, %v1674
      %v1676 = vpop.f32.mrf.mxu0
      %v1677 = vadd.f32 0.0, %v1676
      %1678 = vdwg.mxu0
      %1679 = vmatpush.bf16.msra.mxu0 0
      %1680 = vmatpush.bf16.msra.mxu0 0
      %1681 = vmatpush.bf16.msra.mxu0 0
      %1682 = vmatpush.bf16.msra.mxu0 0
      %1683 = vmatpush.bf16.msra.mxu0 0
      %1684 = vmatpush.bf16.msra.mxu0 %v1625
      %1685 = vmatpush.bf16.msra.mxu0 %v1586
      %1686 = vmatpush.bf16.msra.mxu0 %v1583
      %1687 = vmatmul.bf16.gmra.mxu0 %v1598
      %v1688 = vpop.f32.mrf.mxu0
      %v1689 = vadd.f32 0.0, %v1688
      %v1690 = vpop.f32.mrf.mxu0
      %v1691 = vadd.f32 0.0, %v1690
      %1692 = vmatmul.bf16.gmra.mxu0 %v1601
      %v1693 = vpop.f32.mrf.mxu0
      %v1694 = vadd.f32 0.0, %v1693
      %v1695 = vpop.f32.mrf.mxu0
      %v1696 = vadd.f32 0.0, %v1695
      %1697 = vmatmul.bf16.gmra.mxu0 %v1604
      %v1698 = vpop.f32.mrf.mxu0
      %v1699 = vadd.f32 0.0, %v1698
      %v1700 = vpop.f32.mrf.mxu0
      %v1701 = vadd.f32 0.0, %v1700
      %1702 = vmatmul.bf16.gmra.mxu0 %v1607
      %v1703 = vpop.f32.mrf.mxu0
      %v1704 = vadd.f32 0.0, %v1703
      %v1705 = vpop.f32.mrf.mxu0
      %v1706 = vadd.f32 0.0, %v1705
      %1707 = vmatmul.bf16.gmra.mxu0 %v1610
      %v1708 = vpop.f32.mrf.mxu0
      %v1709 = vadd.f32 0.0, %v1708
      %v1710 = vpop.f32.mrf.mxu0
      %v1711 = vadd.f32 0.0, %v1710
      %1712 = vmatmul.bf16.gmra.mxu0 %v1613
      %v1713 = vpop.f32.mrf.mxu0
      %v1714 = vadd.f32 0.0, %v1713
      %v1715 = vpop.f32.mrf.mxu0
      %v1716 = vadd.f32 0.0, %v1715
      %1717 = vmatmul.bf16.gmra.mxu0 %v1616
      %v1718 = vpop.f32.mrf.mxu0
      %v1719 = vadd.f32 0.0, %v1718
      %v1720 = vpop.f32.mrf.mxu0
      %v1721 = vadd.f32 0.0, %v1720
      %1722 = vmatmul.bf16.gmra.mxu0 %v1619
      %v1723 = vpop.f32.mrf.mxu0
      %v1724 = vadd.f32 0.0, %v1723
      %v1725 = vpop.f32.mrf.mxu0
      %v1726 = vadd.f32 0.0, %v1725
      %1727 = vdwg.mxu0
      %1728 = vmatpush.bf16.msra.mxu0 0
      %1729 = vmatpush.bf16.msra.mxu0 0
      %1730 = vmatpush.bf16.msra.mxu0 0
      %1731 = vmatpush.bf16.msra.mxu0 0
      %1732 = vmatpush.bf16.msra.mxu0 0
      %1733 = vmatpush.bf16.msra.mxu0 %v1628
      %1734 = vmatpush.bf16.msra.mxu0 %v1587
      %1735 = vmatpush.bf16.msra.mxu0 %v1584
      %1736 = vmatmul.bf16.gmra.mxu0 %v1598
      %v1737 = vpop.f32.mrf.mxu0
      %v1738 = vadd.f32 0.0, %v1737
      %v1739 = vpop.f32.mrf.mxu0
      %v1740 = vadd.f32 0.0, %v1739
      %1741 = vmatmul.bf16.gmra.mxu0 %v1601
      %v1742 = vpop.f32.mrf.mxu0
      %v1743 = vadd.f32 0.0, %v1742
      %v1744 = vpop.f32.mrf.mxu0
      %v1745 = vadd.f32 0.0, %v1744
      %1746 = vmatmul.bf16.gmra.mxu0 %v1604
      %v1747 = vpop.f32.mrf.mxu0
      %v1748 = vadd.f32 0.0, %v1747
      %v1749 = vpop.f32.mrf.mxu0
      %v1750 = vadd.f32 0.0, %v1749
      %1751 = vmatmul.bf16.gmra.mxu0 %v1607
      %v1752 = vpop.f32.mrf.mxu0
      %v1753 = vadd.f32 0.0, %v1752
      %v1754 = vpop.f32.mrf.mxu0
      %v1755 = vadd.f32 0.0, %v1754
      %1756 = vmatmul.bf16.gmra.mxu0 %v1610
      %v1757 = vpop.f32.mrf.mxu0
      %v1758 = vadd.f32 0.0, %v1757
      %v1759 = vpop.f32.mrf.mxu0
      %v1760 = vadd.f32 0.0, %v1759
      %1761 = vmatmul.bf16.gmra.mxu0 %v1613
      %v1762 = vpop.f32.mrf.mxu0
      %v1763 = vadd.f32 0.0, %v1762
      %v1764 = vpop.f32.mrf.mxu0
      %v1765 = vadd.f32 0.0, %v1764
      %1766 = vmatmul.bf16.gmra.mxu0 %v1616
      %v1767 = vpop.f32.mrf.mxu0
      %v1768 = vadd.f32 0.0, %v1767
      %v1769 = vpop.f32.mrf.mxu0
      %v1770 = vadd.f32 0.0, %v1769
      %1771 = vmatmul.bf16.gmra.mxu0 %v1619
      %v1772 = vpop.f32.mrf.mxu0
      %v1773 = vadd.f32 0.0, %v1772
      %v1774 = vpop.f32.mrf.mxu0
      %v1775 = vadd.f32 0.0, %v1774
      %1776 = vdwg.mxu0
      %v1777 = vadd.f32 %v1452, %v1640
      %v1778 = vadd.f32 %v1453, %v1689
      %v1779 = vadd.f32 %v1454, %v1738
      %v1780 = vadd.f32 %v1455, %v1642
      %v1781 = vadd.f32 %v1456, %v1691
      %v1782 = vadd.f32 %v1457, %v1740
      %v1783 = vadd.f32 %v1458, %v1645
      %v1784 = vadd.f32 %v1459, %v1694
      %v1785 = vadd.f32 %v1460, %v1743
      %v1786 = vadd.f32 %v1461, %v1647
      %v1787 = vadd.f32 %v1462, %v1696
      %v1788 = vadd.f32 %v1463, %v1745
      %v1789 = vadd.f32 %v1464, %v1650
      %v1790 = vadd.f32 %v1465, %v1699
      %v1791 = vadd.f32 %v1466, %v1748
      %v1792 = vadd.f32 %v1467, %v1652
      %v1793 = vadd.f32 %v1468, %v1701
      %v1794 = vadd.f32 %v1469, %v1750
      %v1795 = vadd.f32 %v1470, %v1655
      %v1796 = vadd.f32 %v1471, %v1704
      %v1797 = vadd.f32 %v1472, %v1753
      %v1798 = vadd.f32 %v1473, %v1657
      %v1799 = vadd.f32 %v1474, %v1706
      %v1800 = vadd.f32 %v1475, %v1755
      %v1801 = vadd.f32 %v1476, %v1660
      %v1802 = vadd.f32 %v1477, %v1709
      %v1803 = vadd.f32 %v1478, %v1758
      %v1804 = vadd.f32 %v1479, %v1662
      %v1805 = vadd.f32 %v1480, %v1711
      %v1806 = vadd.f32 %v1481, %v1760
      %v1807 = vadd.f32 %v1482, %v1665
      %v1808 = vadd.f32 %v1483, %v1714
      %v1809 = vadd.f32 %v1484, %v1763
      %v1810 = vadd.f32 %v1485, %v1667
      %v1811 = vadd.f32 %v1486, %v1716
      %v1812 = vadd.f32 %v1487, %v1765
      %v1813 = vadd.f32 %v1488, %v1670
      %v1814 = vadd.f32 %v1489, %v1719
      %v1815 = vadd.f32 %v1490, %v1768
      %v1816 = vadd.f32 %v1491, %v1672
      %v1817 = vadd.f32 %v1492, %v1721
      %v1818 = vadd.f32 %v1493, %v1770
      %v1819 = vadd.f32 %v1494, %v1675
      %v1820 = vadd.f32 %v1495, %v1724
      %v1821 = vadd.f32 %v1496, %v1773
      %v1822 = vadd.f32 %v1497, %v1677
      %v1823 = vadd.f32 %v1498, %v1726
      %v1824 = vadd.f32 %v1499, %v1775
      %s1825 = scalar_lea.vmem %s1, 320
      %v1826 = vld [vmem:[%s1825] sm:$0xf]
      %v1827 = vld [vmem:[%s1825 + $0x4] sm:$0xf]
      %v1828 = vld [vmem:[%s1825 + $0x8] sm:$0xf]
      %v1829 = vld [vmem:[%s1825 + $0xc] sm:$0xf]
      %v1830 = vld [vmem:[%s1825 + $0x10] sm:$0xf]
      %v1831 = vld [vmem:[%s1825 + $0x14] sm:$0xf]
      %v1832 = vld [vmem:[%s1825 + $0x18] sm:$0xf]
      %v1833 = vld [vmem:[%s1825 + $0x1c] sm:$0xf]
      %v1834 = vld [vmem:[%s1825 + $0x20] sm:$0xf]
      %v1835 = vld [vmem:[%s1825 + $0x24] sm:$0xf]
      %v1836 = vld [vmem:[%s1825 + $0x28] sm:$0xf]
      %v1837 = vld [vmem:[%s1825 + $0x2c] sm:$0xf]
      %v1838 = vld [vmem:[%s1825 + $0x30] sm:$0xf]
      %v1839 = vld [vmem:[%s1825 + $0x34] sm:$0xf]
      %v1840 = vld [vmem:[%s1825 + $0x38] sm:$0xf]
      %v1841 = vld [vmem:[%s1825 + $0x3c] sm:$0xf]
      %v1858 = vunpack.c.l.b16 %v1826
      %v1859 = vunpack.c.l.b16 %v1827
      %v1860 = vunpack.c.l.b16 %v1828
      %v1861 = vunpack.c.l.b16 %v1829
      %v1862 = vunpack.c.l.b16 %v1830
      %v1863 = vunpack.c.l.b16 %v1831
      %v1864 = vunpack.c.l.b16 %v1832
      %v1865 = vunpack.c.l.b16 %v1833
      %v1866 = vunpack.c.l.b16 %v1834
      %v1867 = vunpack.c.l.b16 %v1835
      %v1868 = vunpack.c.l.b16 %v1836
      %v1869 = vunpack.c.l.b16 %v1837
      %v1870 = vunpack.c.l.b16 %v1838
      %v1871 = vunpack.c.l.b16 %v1839
      %v1872 = vunpack.c.l.b16 %v1840
      %v1873 = vunpack.c.l.b16 %v1841
      %v1874 = vpack.c.b16 %v1859, %v1858
      %v1875 = vpack.c.b16 %v1861, %v1860
      %v1876 = vpack.c.b16 %v1863, %v1862
      %v1877 = vpack.c.b16 %v1865, %v1864
      %v1878 = vpack.c.b16 %v1867, %v1866
      %v1879 = vpack.c.b16 %v1869, %v1868
      %v1880 = vpack.c.b16 %v1871, %v1870
      %v1881 = vpack.c.b16 %v1873, %v1872
      %1882 = vrot.lane.b32.xlu0 %v377, 102
      %v1883 = vpop.permute.xlu0 %1882
      %1884 = vrot.lane.b32.xlu0 %v378, 102
      %v1885 = vpop.permute.xlu0 %1884
      %1886 = vrot.lane.b32.xlu0 %v379, 102
      %v1887 = vpop.permute.xlu0 %1886
      %1888 = vrot.lane.b32.xlu0 %v380, 102
      %v1889 = vpop.permute.xlu0 %1888
      %1890 = vrot.lane.b32.xlu0 %v381, 102
      %v1891 = vpop.permute.xlu0 %1890
      %1892 = vrot.lane.b32.xlu0 %v382, 102
      %v1893 = vpop.permute.xlu0 %1892
      %1894 = vrot.lane.b32.xlu0 %v383, 102
      %v1895 = vpop.permute.xlu0 %1894
      %1896 = vrot.lane.b32.xlu0 %v384, 102
      %v1897 = vpop.permute.xlu0 %1896
      %1898 = vrot.lane.b32.xlu0 %v385, 102
      %v1899 = vpop.permute.xlu0 %1898
      %1900 = vrot.lane.b32.xlu0 %v386, 102
      %v1901 = vpop.permute.xlu0 %1900
      %1902 = vrot.lane.b32.xlu0 %v387, 102
      %v1903 = vpop.permute.xlu0 %1902
      %1904 = vrot.lane.b32.xlu0 %v388, 102
      %v1905 = vpop.permute.xlu0 %1904
      %vm1906 = vcmask 834560
      %v1907 = vsel %vm1906, %v1883, %v1885
      %v1908 = vsel %vm1906, %v1885, %v1887
      %v1909 = vsel %vm1906, %v1887, %v1889
      %v1910 = vsel %vm1906, %v1891, %v1893
      %v1911 = vsel %vm1906, %v1893, %v1895
      %v1912 = vsel %vm1906, %v1895, %v1897
      %v1913 = vsel %vm1906, %v1899, %v1901
      %v1914 = vsel %vm1906, %v1901, %v1903
      %v1915 = vsel %vm1906, %v1903, %v1905
      %v1923 = vsel %vm429, %v1874, 0
      %v1926 = vsel %vm429, %v1875, 0
      %v1929 = vsel %vm429, %v1876, 0
      %v1932 = vsel %vm429, %v1877, 0
      %v1935 = vsel %vm429, %v1878, 0
      %v1938 = vsel %vm429, %v1879, 0
      %v1941 = vsel %vm429, %v1880, 0
      %v1944 = vsel %vm429, %v1881, 0
      %v1947 = vsel %vm454, %v1913, 0
      %v1950 = vsel %vm454, %v1914, 0
      %v1953 = vsel %vm454, %v1915, 0
      %1955 = vmatpush.bf16.msra.mxu0 0
      %1956 = vmatpush.bf16.msra.mxu0 0
      %1957 = vmatpush.bf16.msra.mxu0 0
      %1958 = vmatpush.bf16.msra.mxu0 0
      %1959 = vmatpush.bf16.msra.mxu0 0
      %1960 = vmatpush.bf16.msra.mxu0 %v1947
      %1961 = vmatpush.bf16.msra.mxu0 %v1910
      %1962 = vmatpush.bf16.msra.mxu0 %v1907
      %1963 = vmatmul.bf16.gmra.mxu0 %v1923
      %v1964 = vpop.f32.mrf.mxu0
      %v1965 = vadd.f32 0.0, %v1964
      %v1966 = vpop.f32.mrf.mxu0
      %v1967 = vadd.f32 0.0, %v1966
      %1968 = vmatmul.bf16.gmra.mxu0 %v1926
      %v1969 = vpop.f32.mrf.mxu0
      %v1970 = vadd.f32 0.0, %v1969
      %v1971 = vpop.f32.mrf.mxu0
      %v1972 = vadd.f32 0.0, %v1971
      %1973 = vmatmul.bf16.gmra.mxu0 %v1929
      %v1974 = vpop.f32.mrf.mxu0
      %v1975 = vadd.f32 0.0, %v1974
      %v1976 = vpop.f32.mrf.mxu0
      %v1977 = vadd.f32 0.0, %v1976
      %1978 = vmatmul.bf16.gmra.mxu0 %v1932
      %v1979 = vpop.f32.mrf.mxu0
      %v1980 = vadd.f32 0.0, %v1979
      %v1981 = vpop.f32.mrf.mxu0
      %v1982 = vadd.f32 0.0, %v1981
      %1983 = vmatmul.bf16.gmra.mxu0 %v1935
      %v1984 = vpop.f32.mrf.mxu0
      %v1985 = vadd.f32 0.0, %v1984
      %v1986 = vpop.f32.mrf.mxu0
      %v1987 = vadd.f32 0.0, %v1986
      %1988 = vmatmul.bf16.gmra.mxu0 %v1938
      %v1989 = vpop.f32.mrf.mxu0
      %v1990 = vadd.f32 0.0, %v1989
      %v1991 = vpop.f32.mrf.mxu0
      %v1992 = vadd.f32 0.0, %v1991
      %1993 = vmatmul.bf16.gmra.mxu0 %v1941
      %v1994 = vpop.f32.mrf.mxu0
      %v1995 = vadd.f32 0.0, %v1994
      %v1996 = vpop.f32.mrf.mxu0
      %v1997 = vadd.f32 0.0, %v1996
      %1998 = vmatmul.bf16.gmra.mxu0 %v1944
      %v1999 = vpop.f32.mrf.mxu0
      %v2000 = vadd.f32 0.0, %v1999
      %v2001 = vpop.f32.mrf.mxu0
      %v2002 = vadd.f32 0.0, %v2001
      %2003 = vdwg.mxu0
      %2004 = vmatpush.bf16.msra.mxu0 0
      %2005 = vmatpush.bf16.msra.mxu0 0
      %2006 = vmatpush.bf16.msra.mxu0 0
      %2007 = vmatpush.bf16.msra.mxu0 0
      %2008 = vmatpush.bf16.msra.mxu0 0
      %2009 = vmatpush.bf16.msra.mxu0 %v1950
      %2010 = vmatpush.bf16.msra.mxu0 %v1911
      %2011 = vmatpush.bf16.msra.mxu0 %v1908
      %2012 = vmatmul.bf16.gmra.mxu0 %v1923
      %v2013 = vpop.f32.mrf.mxu0
      %v2014 = vadd.f32 0.0, %v2013
      %v2015 = vpop.f32.mrf.mxu0
      %v2016 = vadd.f32 0.0, %v2015
      %2017 = vmatmul.bf16.gmra.mxu0 %v1926
      %v2018 = vpop.f32.mrf.mxu0
      %v2019 = vadd.f32 0.0, %v2018
      %v2020 = vpop.f32.mrf.mxu0
      %v2021 = vadd.f32 0.0, %v2020
      %2022 = vmatmul.bf16.gmra.mxu0 %v1929
      %v2023 = vpop.f32.mrf.mxu0
      %v2024 = vadd.f32 0.0, %v2023
      %v2025 = vpop.f32.mrf.mxu0
      %v2026 = vadd.f32 0.0, %v2025
      %2027 = vmatmul.bf16.gmra.mxu0 %v1932
      %v2028 = vpop.f32.mrf.mxu0
      %v2029 = vadd.f32 0.0, %v2028
      %v2030 = vpop.f32.mrf.mxu0
      %v2031 = vadd.f32 0.0, %v2030
      %2032 = vmatmul.bf16.gmra.mxu0 %v1935
      %v2033 = vpop.f32.mrf.mxu0
      %v2034 = vadd.f32 0.0, %v2033
      %v2035 = vpop.f32.mrf.mxu0
      %v2036 = vadd.f32 0.0, %v2035
      %2037 = vmatmul.bf16.gmra.mxu0 %v1938
      %v2038 = vpop.f32.mrf.mxu0
      %v2039 = vadd.f32 0.0, %v2038
      %v2040 = vpop.f32.mrf.mxu0
      %v2041 = vadd.f32 0.0, %v2040
      %2042 = vmatmul.bf16.gmra.mxu0 %v1941
      %v2043 = vpop.f32.mrf.mxu0
      %v2044 = vadd.f32 0.0, %v2043
      %v2045 = vpop.f32.mrf.mxu0
      %v2046 = vadd.f32 0.0, %v2045
      %2047 = vmatmul.bf16.gmra.mxu0 %v1944
      %v2048 = vpop.f32.mrf.mxu0
      %v2049 = vadd.f32 0.0, %v2048
      %v2050 = vpop.f32.mrf.mxu0
      %v2051 = vadd.f32 0.0, %v2050
      %2052 = vdwg.mxu0
      %2053 = vmatpush.bf16.msra.mxu0 0
      %2054 = vmatpush.bf16.msra.mxu0 0
      %2055 = vmatpush.bf16.msra.mxu0 0
      %2056 = vmatpush.bf16.msra.mxu0 0
      %2057 = vmatpush.bf16.msra.mxu0 0
      %2058 = vmatpush.bf16.msra.mxu0 %v1953
      %2059 = vmatpush.bf16.msra.mxu0 %v1912
      %2060 = vmatpush.bf16.msra.mxu0 %v1909
      %2061 = vmatmul.bf16.gmra.mxu0 %v1923
      %v2062 = vpop.f32.mrf.mxu0
      %v2063 = vadd.f32 0.0, %v2062
      %v2064 = vpop.f32.mrf.mxu0
      %v2065 = vadd.f32 0.0, %v2064
      %2066 = vmatmul.bf16.gmra.mxu0 %v1926
      %v2067 = vpop.f32.mrf.mxu0
      %v2068 = vadd.f32 0.0, %v2067
      %v2069 = vpop.f32.mrf.mxu0
      %v2070 = vadd.f32 0.0, %v2069
      %2071 = vmatmul.bf16.gmra.mxu0 %v1929
      %v2072 = vpop.f32.mrf.mxu0
      %v2073 = vadd.f32 0.0, %v2072
      %v2074 = vpop.f32.mrf.mxu0
      %v2075 = vadd.f32 0.0, %v2074
      %2076 = vmatmul.bf16.gmra.mxu0 %v1932
      %v2077 = vpop.f32.mrf.mxu0
      %v2078 = vadd.f32 0.0, %v2077
      %v2079 = vpop.f32.mrf.mxu0
      %v2080 = vadd.f32 0.0, %v2079
      %2081 = vmatmul.bf16.gmra.mxu0 %v1935
      %v2082 = vpop.f32.mrf.mxu0
      %v2083 = vadd.f32 0.0, %v2082
      %v2084 = vpop.f32.mrf.mxu0
      %v2085 = vadd.f32 0.0, %v2084
      %2086 = vmatmul.bf16.gmra.mxu0 %v1938
      %v2087 = vpop.f32.mrf.mxu0
      %v2088 = vadd.f32 0.0, %v2087
      %v2089 = vpop.f32.mrf.mxu0
      %v2090 = vadd.f32 0.0, %v2089
      %2091 = vmatmul.bf16.gmra.mxu0 %v1941
      %v2092 = vpop.f32.mrf.mxu0
      %v2093 = vadd.f32 0.0, %v2092
      %v2094 = vpop.f32.mrf.mxu0
      %v2095 = vadd.f32 0.0, %v2094
      %2096 = vmatmul.bf16.gmra.mxu0 %v1944
      %v2097 = vpop.f32.mrf.mxu0
      %v2098 = vadd.f32 0.0, %v2097
      %v2099 = vpop.f32.mrf.mxu0
      %v2100 = vadd.f32 0.0, %v2099
      %2101 = vdwg.mxu0
      %v2102 = vadd.f32 %v1777, %v1965
      %v2103 = vadd.f32 %v1778, %v2014
      %v2104 = vadd.f32 %v1779, %v2063
      %v2105 = vadd.f32 %v1780, %v1967
      %v2106 = vadd.f32 %v1781, %v2016
      %v2107 = vadd.f32 %v1782, %v2065
      %v2108 = vadd.f32 %v1783, %v1970
      %v2109 = vadd.f32 %v1784, %v2019
      %v2110 = vadd.f32 %v1785, %v2068
      %v2111 = vadd.f32 %v1786, %v1972
      %v2112 = vadd.f32 %v1787, %v2021
      %v2113 = vadd.f32 %v1788, %v2070
      %v2114 = vadd.f32 %v1789, %v1975
      %v2115 = vadd.f32 %v1790, %v2024
      %v2116 = vadd.f32 %v1791, %v2073
      %v2117 = vadd.f32 %v1792, %v1977
      %v2118 = vadd.f32 %v1793, %v2026
      %v2119 = vadd.f32 %v1794, %v2075
      %v2120 = vadd.f32 %v1795, %v1980
      %v2121 = vadd.f32 %v1796, %v2029
      %v2122 = vadd.f32 %v1797, %v2078
      %v2123 = vadd.f32 %v1798, %v1982
      %v2124 = vadd.f32 %v1799, %v2031
      %v2125 = vadd.f32 %v1800, %v2080
      %v2126 = vadd.f32 %v1801, %v1985
      %v2127 = vadd.f32 %v1802, %v2034
      %v2128 = vadd.f32 %v1803, %v2083
      %v2129 = vadd.f32 %v1804, %v1987
      %v2130 = vadd.f32 %v1805, %v2036
      %v2131 = vadd.f32 %v1806, %v2085
      %v2132 = vadd.f32 %v1807, %v1990
      %v2133 = vadd.f32 %v1808, %v2039
      %v2134 = vadd.f32 %v1809, %v2088
      %v2135 = vadd.f32 %v1810, %v1992
      %v2136 = vadd.f32 %v1811, %v2041
      %v2137 = vadd.f32 %v1812, %v2090
      %v2138 = vadd.f32 %v1813, %v1995
      %v2139 = vadd.f32 %v1814, %v2044
      %v2140 = vadd.f32 %v1815, %v2093
      %v2141 = vadd.f32 %v1816, %v1997
      %v2142 = vadd.f32 %v1817, %v2046
      %v2143 = vadd.f32 %v1818, %v2095
      %v2144 = vadd.f32 %v1819, %v2000
      %v2145 = vadd.f32 %v1820, %v2049
      %v2146 = vadd.f32 %v1821, %v2098
      %v2147 = vadd.f32 %v1822, %v2002
      %v2148 = vadd.f32 %v1823, %v2051
      %v2149 = vadd.f32 %v1824, %v2100
      %s2150 = scalar_lea.vmem %s1, 384
      %v2151 = vld [vmem:[%s2150] sm:$0xf]
      %v2152 = vld [vmem:[%s2150 + $0x4] sm:$0xf]
      %v2153 = vld [vmem:[%s2150 + $0x8] sm:$0xf]
      %v2154 = vld [vmem:[%s2150 + $0xc] sm:$0xf]
      %v2155 = vld [vmem:[%s2150 + $0x10] sm:$0xf]
      %v2156 = vld [vmem:[%s2150 + $0x14] sm:$0xf]
      %v2157 = vld [vmem:[%s2150 + $0x18] sm:$0xf]
      %v2158 = vld [vmem:[%s2150 + $0x1c] sm:$0xf]
      %v2159 = vld [vmem:[%s2150 + $0x20] sm:$0xf]
      %v2160 = vld [vmem:[%s2150 + $0x24] sm:$0xf]
      %v2161 = vld [vmem:[%s2150 + $0x28] sm:$0xf]
      %v2162 = vld [vmem:[%s2150 + $0x2c] sm:$0xf]
      %v2163 = vld [vmem:[%s2150 + $0x30] sm:$0xf]
      %v2164 = vld [vmem:[%s2150 + $0x34] sm:$0xf]
      %v2165 = vld [vmem:[%s2150 + $0x38] sm:$0xf]
      %v2166 = vld [vmem:[%s2150 + $0x3c] sm:$0xf]
      %v2183 = vunpack.c.l.b16 %v2151
      %v2184 = vunpack.c.l.b16 %v2152
      %v2185 = vunpack.c.l.b16 %v2153
      %v2186 = vunpack.c.l.b16 %v2154
      %v2187 = vunpack.c.l.b16 %v2155
      %v2188 = vunpack.c.l.b16 %v2156
      %v2189 = vunpack.c.l.b16 %v2157
      %v2190 = vunpack.c.l.b16 %v2158
      %v2191 = vunpack.c.l.b16 %v2159
      %v2192 = vunpack.c.l.b16 %v2160
      %v2193 = vunpack.c.l.b16 %v2161
      %v2194 = vunpack.c.l.b16 %v2162
      %v2195 = vunpack.c.l.b16 %v2163
      %v2196 = vunpack.c.l.b16 %v2164
      %v2197 = vunpack.c.l.b16 %v2165
      %v2198 = vunpack.c.l.b16 %v2166
      %v2199 = vpack.c.b16 %v2184, %v2183
      %v2200 = vpack.c.b16 %v2186, %v2185
      %v2201 = vpack.c.b16 %v2188, %v2187
      %v2202 = vpack.c.b16 %v2190, %v2189
      %v2203 = vpack.c.b16 %v2192, %v2191
      %v2204 = vpack.c.b16 %v2194, %v2193
      %v2205 = vpack.c.b16 %v2196, %v2195
      %v2206 = vpack.c.b16 %v2198, %v2197
      %2207 = vrot.lane.b32.xlu0 %v377, 80
      %v2208 = vpop.permute.xlu0 %2207
      %2209 = vrot.lane.b32.xlu0 %v378, 80
      %v2210 = vpop.permute.xlu0 %2209
      %2211 = vrot.lane.b32.xlu0 %v379, 80
      %v2212 = vpop.permute.xlu0 %2211
      %2213 = vrot.lane.b32.xlu0 %v380, 80
      %v2214 = vpop.permute.xlu0 %2213
      %2215 = vrot.lane.b32.xlu0 %v381, 80
      %v2216 = vpop.permute.xlu0 %2215
      %2217 = vrot.lane.b32.xlu0 %v382, 80
      %v2218 = vpop.permute.xlu0 %2217
      %2219 = vrot.lane.b32.xlu0 %v383, 80
      %v2220 = vpop.permute.xlu0 %2219
      %2221 = vrot.lane.b32.xlu0 %v384, 80
      %v2222 = vpop.permute.xlu0 %2221
      %2223 = vrot.lane.b32.xlu0 %v385, 80
      %v2224 = vpop.permute.xlu0 %2223
      %2225 = vrot.lane.b32.xlu0 %v386, 80
      %v2226 = vpop.permute.xlu0 %2225
      %2227 = vrot.lane.b32.xlu0 %v387, 80
      %v2228 = vpop.permute.xlu0 %2227
      %2229 = vrot.lane.b32.xlu0 %v388, 80
      %v2230 = vpop.permute.xlu0 %2229
      %vm2231 = vcmask 654336
      %v2232 = vsel %vm2231, %v2208, %v2210
      %v2233 = vsel %vm2231, %v2210, %v2212
      %v2234 = vsel %vm2231, %v2212, %v2214
      %v2235 = vsel %vm2231, %v2216, %v2218
      %v2236 = vsel %vm2231, %v2218, %v2220
      %v2237 = vsel %vm2231, %v2220, %v2222
      %v2238 = vsel %vm2231, %v2224, %v2226
      %v2239 = vsel %vm2231, %v2226, %v2228
      %v2240 = vsel %vm2231, %v2228, %v2230
      %v2248 = vsel %vm429, %v2199, 0
      %v2251 = vsel %vm429, %v2200, 0
      %v2254 = vsel %vm429, %v2201, 0
      %v2257 = vsel %vm429, %v2202, 0
      %v2260 = vsel %vm429, %v2203, 0
      %v2263 = vsel %vm429, %v2204, 0
      %v2266 = vsel %vm429, %v2205, 0
      %v2269 = vsel %vm429, %v2206, 0
      %v2272 = vsel %vm454, %v2238, 0
      %v2275 = vsel %vm454, %v2239, 0
      %v2278 = vsel %vm454, %v2240, 0
      %2280 = vmatpush.bf16.msra.mxu0 0
      %2281 = vmatpush.bf16.msra.mxu0 0
      %2282 = vmatpush.bf16.msra.mxu0 0
      %2283 = vmatpush.bf16.msra.mxu0 0
      %2284 = vmatpush.bf16.msra.mxu0 0
      %2285 = vmatpush.bf16.msra.mxu0 %v2272
      %2286 = vmatpush.bf16.msra.mxu0 %v2235
      %2287 = vmatpush.bf16.msra.mxu0 %v2232
      %2288 = vmatmul.bf16.gmra.mxu0 %v2248
      %v2289 = vpop.f32.mrf.mxu0
      %v2290 = vadd.f32 0.0, %v2289
      %v2291 = vpop.f32.mrf.mxu0
      %v2292 = vadd.f32 0.0, %v2291
      %2293 = vmatmul.bf16.gmra.mxu0 %v2251
      %v2294 = vpop.f32.mrf.mxu0
      %v2295 = vadd.f32 0.0, %v2294
      %v2296 = vpop.f32.mrf.mxu0
      %v2297 = vadd.f32 0.0, %v2296
      %2298 = vmatmul.bf16.gmra.mxu0 %v2254
      %v2299 = vpop.f32.mrf.mxu0
      %v2300 = vadd.f32 0.0, %v2299
      %v2301 = vpop.f32.mrf.mxu0
      %v2302 = vadd.f32 0.0, %v2301
      %2303 = vmatmul.bf16.gmra.mxu0 %v2257
      %v2304 = vpop.f32.mrf.mxu0
      %v2305 = vadd.f32 0.0, %v2304
      %v2306 = vpop.f32.mrf.mxu0
      %v2307 = vadd.f32 0.0, %v2306
      %2308 = vmatmul.bf16.gmra.mxu0 %v2260
      %v2309 = vpop.f32.mrf.mxu0
      %v2310 = vadd.f32 0.0, %v2309
      %v2311 = vpop.f32.mrf.mxu0
      %v2312 = vadd.f32 0.0, %v2311
      %2313 = vmatmul.bf16.gmra.mxu0 %v2263
      %v2314 = vpop.f32.mrf.mxu0
      %v2315 = vadd.f32 0.0, %v2314
      %v2316 = vpop.f32.mrf.mxu0
      %v2317 = vadd.f32 0.0, %v2316
      %2318 = vmatmul.bf16.gmra.mxu0 %v2266
      %v2319 = vpop.f32.mrf.mxu0
      %v2320 = vadd.f32 0.0, %v2319
      %v2321 = vpop.f32.mrf.mxu0
      %v2322 = vadd.f32 0.0, %v2321
      %2323 = vmatmul.bf16.gmra.mxu0 %v2269
      %v2324 = vpop.f32.mrf.mxu0
      %v2325 = vadd.f32 0.0, %v2324
      %v2326 = vpop.f32.mrf.mxu0
      %v2327 = vadd.f32 0.0, %v2326
      %2328 = vdwg.mxu0
      %2329 = vmatpush.bf16.msra.mxu0 0
      %2330 = vmatpush.bf16.msra.mxu0 0
      %2331 = vmatpush.bf16.msra.mxu0 0
      %2332 = vmatpush.bf16.msra.mxu0 0
      %2333 = vmatpush.bf16.msra.mxu0 0
      %2334 = vmatpush.bf16.msra.mxu0 %v2275
      %2335 = vmatpush.bf16.msra.mxu0 %v2236
      %2336 = vmatpush.bf16.msra.mxu0 %v2233
      %2337 = vmatmul.bf16.gmra.mxu0 %v2248
      %v2338 = vpop.f32.mrf.mxu0
      %v2339 = vadd.f32 0.0, %v2338
      %v2340 = vpop.f32.mrf.mxu0
      %v2341 = vadd.f32 0.0, %v2340
      %2342 = vmatmul.bf16.gmra.mxu0 %v2251
      %v2343 = vpop.f32.mrf.mxu0
      %v2344 = vadd.f32 0.0, %v2343
      %v2345 = vpop.f32.mrf.mxu0
      %v2346 = vadd.f32 0.0, %v2345
      %2347 = vmatmul.bf16.gmra.mxu0 %v2254
      %v2348 = vpop.f32.mrf.mxu0
      %v2349 = vadd.f32 0.0, %v2348
      %v2350 = vpop.f32.mrf.mxu0
      %v2351 = vadd.f32 0.0, %v2350
      %2352 = vmatmul.bf16.gmra.mxu0 %v2257
      %v2353 = vpop.f32.mrf.mxu0
      %v2354 = vadd.f32 0.0, %v2353
      %v2355 = vpop.f32.mrf.mxu0
      %v2356 = vadd.f32 0.0, %v2355
      %2357 = vmatmul.bf16.gmra.mxu0 %v2260
      %v2358 = vpop.f32.mrf.mxu0
      %v2359 = vadd.f32 0.0, %v2358
      %v2360 = vpop.f32.mrf.mxu0
      %v2361 = vadd.f32 0.0, %v2360
      %2362 = vmatmul.bf16.gmra.mxu0 %v2263
      %v2363 = vpop.f32.mrf.mxu0
      %v2364 = vadd.f32 0.0, %v2363
      %v2365 = vpop.f32.mrf.mxu0
      %v2366 = vadd.f32 0.0, %v2365
      %2367 = vmatmul.bf16.gmra.mxu0 %v2266
      %v2368 = vpop.f32.mrf.mxu0
      %v2369 = vadd.f32 0.0, %v2368
      %v2370 = vpop.f32.mrf.mxu0
      %v2371 = vadd.f32 0.0, %v2370
      %2372 = vmatmul.bf16.gmra.mxu0 %v2269
      %v2373 = vpop.f32.mrf.mxu0
      %v2374 = vadd.f32 0.0, %v2373
      %v2375 = vpop.f32.mrf.mxu0
      %v2376 = vadd.f32 0.0, %v2375
      %2377 = vdwg.mxu0
      %2378 = vmatpush.bf16.msra.mxu0 0
      %2379 = vmatpush.bf16.msra.mxu0 0
      %2380 = vmatpush.bf16.msra.mxu0 0
      %2381 = vmatpush.bf16.msra.mxu0 0
      %2382 = vmatpush.bf16.msra.mxu0 0
      %2383 = vmatpush.bf16.msra.mxu0 %v2278
      %2384 = vmatpush.bf16.msra.mxu0 %v2237
      %2385 = vmatpush.bf16.msra.mxu0 %v2234
      %2386 = vmatmul.bf16.gmra.mxu0 %v2248
      %v2387 = vpop.f32.mrf.mxu0
      %v2388 = vadd.f32 0.0, %v2387
      %v2389 = vpop.f32.mrf.mxu0
      %v2390 = vadd.f32 0.0, %v2389
      %2391 = vmatmul.bf16.gmra.mxu0 %v2251
      %v2392 = vpop.f32.mrf.mxu0
      %v2393 = vadd.f32 0.0, %v2392
      %v2394 = vpop.f32.mrf.mxu0
      %v2395 = vadd.f32 0.0, %v2394
      %2396 = vmatmul.bf16.gmra.mxu0 %v2254
      %v2397 = vpop.f32.mrf.mxu0
      %v2398 = vadd.f32 0.0, %v2397
      %v2399 = vpop.f32.mrf.mxu0
      %v2400 = vadd.f32 0.0, %v2399
      %2401 = vmatmul.bf16.gmra.mxu0 %v2257
      %v2402 = vpop.f32.mrf.mxu0
      %v2403 = vadd.f32 0.0, %v2402
      %v2404 = vpop.f32.mrf.mxu0
      %v2405 = vadd.f32 0.0, %v2404
      %2406 = vmatmul.bf16.gmra.mxu0 %v2260
      %v2407 = vpop.f32.mrf.mxu0
      %v2408 = vadd.f32 0.0, %v2407
      %v2409 = vpop.f32.mrf.mxu0
      %v2410 = vadd.f32 0.0, %v2409
      %2411 = vmatmul.bf16.gmra.mxu0 %v2263
      %v2412 = vpop.f32.mrf.mxu0
      %v2413 = vadd.f32 0.0, %v2412
      %v2414 = vpop.f32.mrf.mxu0
      %v2415 = vadd.f32 0.0, %v2414
      %2416 = vmatmul.bf16.gmra.mxu0 %v2266
      %v2417 = vpop.f32.mrf.mxu0
      %v2418 = vadd.f32 0.0, %v2417
      %v2419 = vpop.f32.mrf.mxu0
      %v2420 = vadd.f32 0.0, %v2419
      %2421 = vmatmul.bf16.gmra.mxu0 %v2269
      %v2422 = vpop.f32.mrf.mxu0
      %v2423 = vadd.f32 0.0, %v2422
      %v2424 = vpop.f32.mrf.mxu0
      %v2425 = vadd.f32 0.0, %v2424
      %2426 = vdwg.mxu0
      %v2427 = vadd.f32 %v2102, %v2290
      %v2428 = vadd.f32 %v2103, %v2339
      %v2429 = vadd.f32 %v2104, %v2388
      %v2430 = vadd.f32 %v2105, %v2292
      %v2431 = vadd.f32 %v2106, %v2341
      %v2432 = vadd.f32 %v2107, %v2390
      %v2433 = vadd.f32 %v2108, %v2295
      %v2434 = vadd.f32 %v2109, %v2344
      %v2435 = vadd.f32 %v2110, %v2393
      %v2436 = vadd.f32 %v2111, %v2297
      %v2437 = vadd.f32 %v2112, %v2346
      %v2438 = vadd.f32 %v2113, %v2395
      %v2439 = vadd.f32 %v2114, %v2300
      %v2440 = vadd.f32 %v2115, %v2349
      %v2441 = vadd.f32 %v2116, %v2398
      %v2442 = vadd.f32 %v2117, %v2302
      %v2443 = vadd.f32 %v2118, %v2351
      %v2444 = vadd.f32 %v2119, %v2400
      %v2445 = vadd.f32 %v2120, %v2305
      %v2446 = vadd.f32 %v2121, %v2354
      %v2447 = vadd.f32 %v2122, %v2403
      %v2448 = vadd.f32 %v2123, %v2307
      %v2449 = vadd.f32 %v2124, %v2356
      %v2450 = vadd.f32 %v2125, %v2405
      %v2451 = vadd.f32 %v2126, %v2310
      %v2452 = vadd.f32 %v2127, %v2359
      %v2453 = vadd.f32 %v2128, %v2408
      %v2454 = vadd.f32 %v2129, %v2312
      %v2455 = vadd.f32 %v2130, %v2361
      %v2456 = vadd.f32 %v2131, %v2410
      %v2457 = vadd.f32 %v2132, %v2315
      %v2458 = vadd.f32 %v2133, %v2364
      %v2459 = vadd.f32 %v2134, %v2413
      %v2460 = vadd.f32 %v2135, %v2317
      %v2461 = vadd.f32 %v2136, %v2366
      %v2462 = vadd.f32 %v2137, %v2415
      %v2463 = vadd.f32 %v2138, %v2320
      %v2464 = vadd.f32 %v2139, %v2369
      %v2465 = vadd.f32 %v2140, %v2418
      %v2466 = vadd.f32 %v2141, %v2322
      %v2467 = vadd.f32 %v2142, %v2371
      %v2468 = vadd.f32 %v2143, %v2420
      %v2469 = vadd.f32 %v2144, %v2325
      %v2470 = vadd.f32 %v2145, %v2374
      %v2471 = vadd.f32 %v2146, %v2423
      %v2472 = vadd.f32 %v2147, %v2327
      %v2473 = vadd.f32 %v2148, %v2376
      %v2474 = vadd.f32 %v2149, %v2425
      %s2475 = scalar_lea.vmem %s1, 448
      %v2476 = vld [vmem:[%s2475] sm:$0xf]
      %v2477 = vld [vmem:[%s2475 + $0x4] sm:$0xf]
      %v2478 = vld [vmem:[%s2475 + $0x8] sm:$0xf]
      %v2479 = vld [vmem:[%s2475 + $0xc] sm:$0xf]
      %v2480 = vld [vmem:[%s2475 + $0x10] sm:$0xf]
      %v2481 = vld [vmem:[%s2475 + $0x14] sm:$0xf]
      %v2482 = vld [vmem:[%s2475 + $0x18] sm:$0xf]
      %v2483 = vld [vmem:[%s2475 + $0x1c] sm:$0xf]
      %v2484 = vld [vmem:[%s2475 + $0x20] sm:$0xf]
      %v2485 = vld [vmem:[%s2475 + $0x24] sm:$0xf]
      %v2486 = vld [vmem:[%s2475 + $0x28] sm:$0xf]
      %v2487 = vld [vmem:[%s2475 + $0x2c] sm:$0xf]
      %v2488 = vld [vmem:[%s2475 + $0x30] sm:$0xf]
      %v2489 = vld [vmem:[%s2475 + $0x34] sm:$0xf]
      %v2490 = vld [vmem:[%s2475 + $0x38] sm:$0xf]
      %v2491 = vld [vmem:[%s2475 + $0x3c] sm:$0xf]
      %v2508 = vunpack.c.l.b16 %v2476
      %v2509 = vunpack.c.l.b16 %v2477
      %v2510 = vunpack.c.l.b16 %v2478
      %v2511 = vunpack.c.l.b16 %v2479
      %v2512 = vunpack.c.l.b16 %v2480
      %v2513 = vunpack.c.l.b16 %v2481
      %v2514 = vunpack.c.l.b16 %v2482
      %v2515 = vunpack.c.l.b16 %v2483
      %v2516 = vunpack.c.l.b16 %v2484
      %v2517 = vunpack.c.l.b16 %v2485
      %v2518 = vunpack.c.l.b16 %v2486
      %v2519 = vunpack.c.l.b16 %v2487
      %v2520 = vunpack.c.l.b16 %v2488
      %v2521 = vunpack.c.l.b16 %v2489
      %v2522 = vunpack.c.l.b16 %v2490
      %v2523 = vunpack.c.l.b16 %v2491
      %v2524 = vpack.c.b16 %v2509, %v2508
      %v2525 = vpack.c.b16 %v2511, %v2510
      %v2526 = vpack.c.b16 %v2513, %v2512
      %v2527 = vpack.c.b16 %v2515, %v2514
      %v2528 = vpack.c.b16 %v2517, %v2516
      %v2529 = vpack.c.b16 %v2519, %v2518
      %v2530 = vpack.c.b16 %v2521, %v2520
      %v2531 = vpack.c.b16 %v2523, %v2522
      %2532 = vrot.lane.b32.xlu0 %v377, 79
      %v2533 = vpop.permute.xlu0 %2532
      %2534 = vrot.lane.b32.xlu0 %v378, 79
      %v2535 = vpop.permute.xlu0 %2534
      %2536 = vrot.lane.b32.xlu0 %v379, 79
      %v2537 = vpop.permute.xlu0 %2536
      %2538 = vrot.lane.b32.xlu0 %v380, 79
      %v2539 = vpop.permute.xlu0 %2538
      %2540 = vrot.lane.b32.xlu0 %v381, 79
      %v2541 = vpop.permute.xlu0 %2540
      %2542 = vrot.lane.b32.xlu0 %v382, 79
      %v2543 = vpop.permute.xlu0 %2542
      %2544 = vrot.lane.b32.xlu0 %v383, 79
      %v2545 = vpop.permute.xlu0 %2544
      %2546 = vrot.lane.b32.xlu0 %v384, 79
      %v2547 = vpop.permute.xlu0 %2546
      %2548 = vrot.lane.b32.xlu0 %v385, 79
      %v2549 = vpop.permute.xlu0 %2548
      %2550 = vrot.lane.b32.xlu0 %v386, 79
      %v2551 = vpop.permute.xlu0 %2550
      %2552 = vrot.lane.b32.xlu0 %v387, 79
      %v2553 = vpop.permute.xlu0 %2552
      %2554 = vrot.lane.b32.xlu0 %v388, 79
      %v2555 = vpop.permute.xlu0 %2554
      %vm2556 = vcmask 646144
      %v2557 = vsel %vm2556, %v2533, %v2535
      %v2558 = vsel %vm2556, %v2535, %v2537
      %v2559 = vsel %vm2556, %v2537, %v2539
      %v2560 = vsel %vm2556, %v2541, %v2543
      %v2561 = vsel %vm2556, %v2543, %v2545
      %v2562 = vsel %vm2556, %v2545, %v2547
      %v2563 = vsel %vm2556, %v2549, %v2551
      %v2564 = vsel %vm2556, %v2551, %v2553
      %v2565 = vsel %vm2556, %v2553, %v2555
      %v2573 = vsel %vm429, %v2524, 0
      %v2576 = vsel %vm429, %v2525, 0
      %v2579 = vsel %vm429, %v2526, 0
      %v2582 = vsel %vm429, %v2527, 0
      %v2585 = vsel %vm429, %v2528, 0
      %v2588 = vsel %vm429, %v2529, 0
      %v2591 = vsel %vm429, %v2530, 0
      %v2594 = vsel %vm429, %v2531, 0
      %v2597 = vsel %vm454, %v2563, 0
      %v2600 = vsel %vm454, %v2564, 0
      %v2603 = vsel %vm454, %v2565, 0
      %2605 = vmatpush.bf16.msra.mxu0 0
      %2606 = vmatpush.bf16.msra.mxu0 0
      %2607 = vmatpush.bf16.msra.mxu0 0
      %2608 = vmatpush.bf16.msra.mxu0 0
      %2609 = vmatpush.bf16.msra.mxu0 0
      %2610 = vmatpush.bf16.msra.mxu0 %v2597
      %2611 = vmatpush.bf16.msra.mxu0 %v2560
      %2612 = vmatpush.bf16.msra.mxu0 %v2557
      %2613 = vmatmul.bf16.gmra.mxu0 %v2573
      %v2614 = vpop.f32.mrf.mxu0
      %v2615 = vadd.f32 0.0, %v2614
      %v2616 = vpop.f32.mrf.mxu0
      %v2617 = vadd.f32 0.0, %v2616
      %2618 = vmatmul.bf16.gmra.mxu0 %v2576
      %v2619 = vpop.f32.mrf.mxu0
      %v2620 = vadd.f32 0.0, %v2619
      %v2621 = vpop.f32.mrf.mxu0
      %v2622 = vadd.f32 0.0, %v2621
      %2623 = vmatmul.bf16.gmra.mxu0 %v2579
      %v2624 = vpop.f32.mrf.mxu0
      %v2625 = vadd.f32 0.0, %v2624
      %v2626 = vpop.f32.mrf.mxu0
      %v2627 = vadd.f32 0.0, %v2626
      %2628 = vmatmul.bf16.gmra.mxu0 %v2582
      %v2629 = vpop.f32.mrf.mxu0
      %v2630 = vadd.f32 0.0, %v2629
      %v2631 = vpop.f32.mrf.mxu0
      %v2632 = vadd.f32 0.0, %v2631
      %2633 = vmatmul.bf16.gmra.mxu0 %v2585
      %v2634 = vpop.f32.mrf.mxu0
      %v2635 = vadd.f32 0.0, %v2634
      %v2636 = vpop.f32.mrf.mxu0
      %v2637 = vadd.f32 0.0, %v2636
      %2638 = vmatmul.bf16.gmra.mxu0 %v2588
      %v2639 = vpop.f32.mrf.mxu0
      %v2640 = vadd.f32 0.0, %v2639
      %v2641 = vpop.f32.mrf.mxu0
      %v2642 = vadd.f32 0.0, %v2641
      %2643 = vmatmul.bf16.gmra.mxu0 %v2591
      %v2644 = vpop.f32.mrf.mxu0
      %v2645 = vadd.f32 0.0, %v2644
      %v2646 = vpop.f32.mrf.mxu0
      %v2647 = vadd.f32 0.0, %v2646
      %2648 = vmatmul.bf16.gmra.mxu0 %v2594
      %v2649 = vpop.f32.mrf.mxu0
      %v2650 = vadd.f32 0.0, %v2649
      %v2651 = vpop.f32.mrf.mxu0
      %v2652 = vadd.f32 0.0, %v2651
      %2653 = vdwg.mxu0
      %2654 = vmatpush.bf16.msra.mxu0 0
      %2655 = vmatpush.bf16.msra.mxu0 0
      %2656 = vmatpush.bf16.msra.mxu0 0
      %2657 = vmatpush.bf16.msra.mxu0 0
      %2658 = vmatpush.bf16.msra.mxu0 0
      %2659 = vmatpush.bf16.msra.mxu0 %v2600
      %2660 = vmatpush.bf16.msra.mxu0 %v2561
      %2661 = vmatpush.bf16.msra.mxu0 %v2558
      %2662 = vmatmul.bf16.gmra.mxu0 %v2573
      %v2663 = vpop.f32.mrf.mxu0
      %v2664 = vadd.f32 0.0, %v2663
      %v2665 = vpop.f32.mrf.mxu0
      %v2666 = vadd.f32 0.0, %v2665
      %2667 = vmatmul.bf16.gmra.mxu0 %v2576
      %v2668 = vpop.f32.mrf.mxu0
      %v2669 = vadd.f32 0.0, %v2668
      %v2670 = vpop.f32.mrf.mxu0
      %v2671 = vadd.f32 0.0, %v2670
      %2672 = vmatmul.bf16.gmra.mxu0 %v2579
      %v2673 = vpop.f32.mrf.mxu0
      %v2674 = vadd.f32 0.0, %v2673
      %v2675 = vpop.f32.mrf.mxu0
      %v2676 = vadd.f32 0.0, %v2675
      %2677 = vmatmul.bf16.gmra.mxu0 %v2582
      %v2678 = vpop.f32.mrf.mxu0
      %v2679 = vadd.f32 0.0, %v2678
      %v2680 = vpop.f32.mrf.mxu0
      %v2681 = vadd.f32 0.0, %v2680
      %2682 = vmatmul.bf16.gmra.mxu0 %v2585
      %v2683 = vpop.f32.mrf.mxu0
      %v2684 = vadd.f32 0.0, %v2683
      %v2685 = vpop.f32.mrf.mxu0
      %v2686 = vadd.f32 0.0, %v2685
      %2687 = vmatmul.bf16.gmra.mxu0 %v2588
      %v2688 = vpop.f32.mrf.mxu0
      %v2689 = vadd.f32 0.0, %v2688
      %v2690 = vpop.f32.mrf.mxu0
      %v2691 = vadd.f32 0.0, %v2690
      %2692 = vmatmul.bf16.gmra.mxu0 %v2591
      %v2693 = vpop.f32.mrf.mxu0
      %v2694 = vadd.f32 0.0, %v2693
      %v2695 = vpop.f32.mrf.mxu0
      %v2696 = vadd.f32 0.0, %v2695
      %2697 = vmatmul.bf16.gmra.mxu0 %v2594
      %v2698 = vpop.f32.mrf.mxu0
      %v2699 = vadd.f32 0.0, %v2698
      %v2700 = vpop.f32.mrf.mxu0
      %v2701 = vadd.f32 0.0, %v2700
      %2702 = vdwg.mxu0
      %2703 = vmatpush.bf16.msra.mxu0 0
      %2704 = vmatpush.bf16.msra.mxu0 0
      %2705 = vmatpush.bf16.msra.mxu0 0
      %2706 = vmatpush.bf16.msra.mxu0 0
      %2707 = vmatpush.bf16.msra.mxu0 0
      %2708 = vmatpush.bf16.msra.mxu0 %v2603
      %2709 = vmatpush.bf16.msra.mxu0 %v2562
      %2710 = vmatpush.bf16.msra.mxu0 %v2559
      %2711 = vmatmul.bf16.gmra.mxu0 %v2573
      %v2712 = vpop.f32.mrf.mxu0
      %v2713 = vadd.f32 0.0, %v2712
      %v2714 = vpop.f32.mrf.mxu0
      %v2715 = vadd.f32 0.0, %v2714
      %2716 = vmatmul.bf16.gmra.mxu0 %v2576
      %v2717 = vpop.f32.mrf.mxu0
      %v2718 = vadd.f32 0.0, %v2717
      %v2719 = vpop.f32.mrf.mxu0
      %v2720 = vadd.f32 0.0, %v2719
      %2721 = vmatmul.bf16.gmra.mxu0 %v2579
      %v2722 = vpop.f32.mrf.mxu0
      %v2723 = vadd.f32 0.0, %v2722
      %v2724 = vpop.f32.mrf.mxu0
      %v2725 = vadd.f32 0.0, %v2724
      %2726 = vmatmul.bf16.gmra.mxu0 %v2582
      %v2727 = vpop.f32.mrf.mxu0
      %v2728 = vadd.f32 0.0, %v2727
      %v2729 = vpop.f32.mrf.mxu0
      %v2730 = vadd.f32 0.0, %v2729
      %2731 = vmatmul.bf16.gmra.mxu0 %v2585
      %v2732 = vpop.f32.mrf.mxu0
      %v2733 = vadd.f32 0.0, %v2732
      %v2734 = vpop.f32.mrf.mxu0
      %v2735 = vadd.f32 0.0, %v2734
      %2736 = vmatmul.bf16.gmra.mxu0 %v2588
      %v2737 = vpop.f32.mrf.mxu0
      %v2738 = vadd.f32 0.0, %v2737
      %v2739 = vpop.f32.mrf.mxu0
      %v2740 = vadd.f32 0.0, %v2739
      %2741 = vmatmul.bf16.gmra.mxu0 %v2591
      %v2742 = vpop.f32.mrf.mxu0
      %v2743 = vadd.f32 0.0, %v2742
      %v2744 = vpop.f32.mrf.mxu0
      %v2745 = vadd.f32 0.0, %v2744
      %2746 = vmatmul.bf16.gmra.mxu0 %v2594
      %v2747 = vpop.f32.mrf.mxu0
      %v2748 = vadd.f32 0.0, %v2747
      %v2749 = vpop.f32.mrf.mxu0
      %v2750 = vadd.f32 0.0, %v2749
      %2751 = vdwg.mxu0
      %v2752 = vadd.f32 %v2427, %v2615
      %v2753 = vadd.f32 %v2428, %v2664
      %v2754 = vadd.f32 %v2429, %v2713
      %v2755 = vadd.f32 %v2430, %v2617
      %v2756 = vadd.f32 %v2431, %v2666
      %v2757 = vadd.f32 %v2432, %v2715
      %v2758 = vadd.f32 %v2433, %v2620
      %v2759 = vadd.f32 %v2434, %v2669
      %v2760 = vadd.f32 %v2435, %v2718
      %v2761 = vadd.f32 %v2436, %v2622
      %v2762 = vadd.f32 %v2437, %v2671
      %v2763 = vadd.f32 %v2438, %v2720
      %v2764 = vadd.f32 %v2439, %v2625
      %v2765 = vadd.f32 %v2440, %v2674
      %v2766 = vadd.f32 %v2441, %v2723
      %v2767 = vadd.f32 %v2442, %v2627
      %v2768 = vadd.f32 %v2443, %v2676
      %v2769 = vadd.f32 %v2444, %v2725
      %v2770 = vadd.f32 %v2445, %v2630
      %v2771 = vadd.f32 %v2446, %v2679
      %v2772 = vadd.f32 %v2447, %v2728
      %v2773 = vadd.f32 %v2448, %v2632
      %v2774 = vadd.f32 %v2449, %v2681
      %v2775 = vadd.f32 %v2450, %v2730
      %v2776 = vadd.f32 %v2451, %v2635
      %v2777 = vadd.f32 %v2452, %v2684
      %v2778 = vadd.f32 %v2453, %v2733
      %v2779 = vadd.f32 %v2454, %v2637
      %v2780 = vadd.f32 %v2455, %v2686
      %v2781 = vadd.f32 %v2456, %v2735
      %v2782 = vadd.f32 %v2457, %v2640
      %v2783 = vadd.f32 %v2458, %v2689
      %v2784 = vadd.f32 %v2459, %v2738
      %v2785 = vadd.f32 %v2460, %v2642
      %v2786 = vadd.f32 %v2461, %v2691
      %v2787 = vadd.f32 %v2462, %v2740
      %v2788 = vadd.f32 %v2463, %v2645
      %v2789 = vadd.f32 %v2464, %v2694
      %v2790 = vadd.f32 %v2465, %v2743
      %v2791 = vadd.f32 %v2466, %v2647
      %v2792 = vadd.f32 %v2467, %v2696
      %v2793 = vadd.f32 %v2468, %v2745
      %v2794 = vadd.f32 %v2469, %v2650
      %v2795 = vadd.f32 %v2470, %v2699
      %v2796 = vadd.f32 %v2471, %v2748
      %v2797 = vadd.f32 %v2472, %v2652
      %v2798 = vadd.f32 %v2473, %v2701
      %v2799 = vadd.f32 %v2474, %v2750
      %s2800 = scalar_lea.vmem %s1, 512
      %v2801 = vld [vmem:[%s2800] sm:$0xf]
      %v2802 = vld [vmem:[%s2800 + $0x4] sm:$0xf]
      %v2803 = vld [vmem:[%s2800 + $0x8] sm:$0xf]
      %v2804 = vld [vmem:[%s2800 + $0xc] sm:$0xf]
      %v2805 = vld [vmem:[%s2800 + $0x10] sm:$0xf]
      %v2806 = vld [vmem:[%s2800 + $0x14] sm:$0xf]
      %v2807 = vld [vmem:[%s2800 + $0x18] sm:$0xf]
      %v2808 = vld [vmem:[%s2800 + $0x1c] sm:$0xf]
      %v2809 = vld [vmem:[%s2800 + $0x20] sm:$0xf]
      %v2810 = vld [vmem:[%s2800 + $0x24] sm:$0xf]
      %v2811 = vld [vmem:[%s2800 + $0x28] sm:$0xf]
      %v2812 = vld [vmem:[%s2800 + $0x2c] sm:$0xf]
      %v2813 = vld [vmem:[%s2800 + $0x30] sm:$0xf]
      %v2814 = vld [vmem:[%s2800 + $0x34] sm:$0xf]
      %v2815 = vld [vmem:[%s2800 + $0x38] sm:$0xf]
      %v2816 = vld [vmem:[%s2800 + $0x3c] sm:$0xf]
      %v2833 = vunpack.c.l.b16 %v2801
      %v2834 = vunpack.c.l.b16 %v2802
      %v2835 = vunpack.c.l.b16 %v2803
      %v2836 = vunpack.c.l.b16 %v2804
      %v2837 = vunpack.c.l.b16 %v2805
      %v2838 = vunpack.c.l.b16 %v2806
      %v2839 = vunpack.c.l.b16 %v2807
      %v2840 = vunpack.c.l.b16 %v2808
      %v2841 = vunpack.c.l.b16 %v2809
      %v2842 = vunpack.c.l.b16 %v2810
      %v2843 = vunpack.c.l.b16 %v2811
      %v2844 = vunpack.c.l.b16 %v2812
      %v2845 = vunpack.c.l.b16 %v2813
      %v2846 = vunpack.c.l.b16 %v2814
      %v2847 = vunpack.c.l.b16 %v2815
      %v2848 = vunpack.c.l.b16 %v2816
      %v2849 = vpack.c.b16 %v2834, %v2833
      %v2850 = vpack.c.b16 %v2836, %v2835
      %v2851 = vpack.c.b16 %v2838, %v2837
      %v2852 = vpack.c.b16 %v2840, %v2839
      %v2853 = vpack.c.b16 %v2842, %v2841
      %v2854 = vpack.c.b16 %v2844, %v2843
      %v2855 = vpack.c.b16 %v2846, %v2845
      %v2856 = vpack.c.b16 %v2848, %v2847
      %2857 = vrot.lane.b32.xlu0 %v377, 78
      %v2858 = vpop.permute.xlu0 %2857
      %2859 = vrot.lane.b32.xlu0 %v378, 78
      %v2860 = vpop.permute.xlu0 %2859
      %2861 = vrot.lane.b32.xlu0 %v379, 78
      %v2862 = vpop.permute.xlu0 %2861
      %2863 = vrot.lane.b32.xlu0 %v380, 78
      %v2864 = vpop.permute.xlu0 %2863
      %2865 = vrot.lane.b32.xlu0 %v381, 78
      %v2866 = vpop.permute.xlu0 %2865
      %2867 = vrot.lane.b32.xlu0 %v382, 78
      %v2868 = vpop.permute.xlu0 %2867
      %2869 = vrot.lane.b32.xlu0 %v383, 78
      %v2870 = vpop.permute.xlu0 %2869
      %2871 = vrot.lane.b32.xlu0 %v384, 78
      %v2872 = vpop.permute.xlu0 %2871
      %2873 = vrot.lane.b32.xlu0 %v385, 78
      %v2874 = vpop.permute.xlu0 %2873
      %2875 = vrot.lane.b32.xlu0 %v386, 78
      %v2876 = vpop.permute.xlu0 %2875
      %2877 = vrot.lane.b32.xlu0 %v387, 78
      %v2878 = vpop.permute.xlu0 %2877
      %2879 = vrot.lane.b32.xlu0 %v388, 78
      %v2880 = vpop.permute.xlu0 %2879
      %vm2881 = vcmask 637952
      %v2882 = vsel %vm2881, %v2858, %v2860
      %v2883 = vsel %vm2881, %v2860, %v2862
      %v2884 = vsel %vm2881, %v2862, %v2864
      %v2885 = vsel %vm2881, %v2866, %v2868
      %v2886 = vsel %vm2881, %v2868, %v2870
      %v2887 = vsel %vm2881, %v2870, %v2872
      %v2888 = vsel %vm2881, %v2874, %v2876
      %v2889 = vsel %vm2881, %v2876, %v2878
      %v2890 = vsel %vm2881, %v2878, %v2880
      %v2898 = vsel %vm429, %v2849, 0
      %v2901 = vsel %vm429, %v2850, 0
      %v2904 = vsel %vm429, %v2851, 0
      %v2907 = vsel %vm429, %v2852, 0
      %v2910 = vsel %vm429, %v2853, 0
      %v2913 = vsel %vm429, %v2854, 0
      %v2916 = vsel %vm429, %v2855, 0
      %v2919 = vsel %vm429, %v2856, 0
      %v2922 = vsel %vm454, %v2888, 0
      %v2925 = vsel %vm454, %v2889, 0
      %v2928 = vsel %vm454, %v2890, 0
      %2930 = vmatpush.bf16.msra.mxu0 0
      %2931 = vmatpush.bf16.msra.mxu0 0
      %2932 = vmatpush.bf16.msra.mxu0 0
      %2933 = vmatpush.bf16.msra.mxu0 0
      %2934 = vmatpush.bf16.msra.mxu0 0
      %2935 = vmatpush.bf16.msra.mxu0 %v2922
      %2936 = vmatpush.bf16.msra.mxu0 %v2885
      %2937 = vmatpush.bf16.msra.mxu0 %v2882
      %2938 = vmatmul.bf16.gmra.mxu0 %v2898
      %v2939 = vpop.f32.mrf.mxu0
      %v2940 = vadd.f32 0.0, %v2939
      %v2941 = vpop.f32.mrf.mxu0
      %v2942 = vadd.f32 0.0, %v2941
      %2943 = vmatmul.bf16.gmra.mxu0 %v2901
      %v2944 = vpop.f32.mrf.mxu0
      %v2945 = vadd.f32 0.0, %v2944
      %v2946 = vpop.f32.mrf.mxu0
      %v2947 = vadd.f32 0.0, %v2946
      %2948 = vmatmul.bf16.gmra.mxu0 %v2904
      %v2949 = vpop.f32.mrf.mxu0
      %v2950 = vadd.f32 0.0, %v2949
      %v2951 = vpop.f32.mrf.mxu0
      %v2952 = vadd.f32 0.0, %v2951
      %2953 = vmatmul.bf16.gmra.mxu0 %v2907
      %v2954 = vpop.f32.mrf.mxu0
      %v2955 = vadd.f32 0.0, %v2954
      %v2956 = vpop.f32.mrf.mxu0
      %v2957 = vadd.f32 0.0, %v2956
      %2958 = vmatmul.bf16.gmra.mxu0 %v2910
      %v2959 = vpop.f32.mrf.mxu0
      %v2960 = vadd.f32 0.0, %v2959
      %v2961 = vpop.f32.mrf.mxu0
      %v2962 = vadd.f32 0.0, %v2961
      %2963 = vmatmul.bf16.gmra.mxu0 %v2913
      %v2964 = vpop.f32.mrf.mxu0
      %v2965 = vadd.f32 0.0, %v2964
      %v2966 = vpop.f32.mrf.mxu0
      %v2967 = vadd.f32 0.0, %v2966
      %2968 = vmatmul.bf16.gmra.mxu0 %v2916
      %v2969 = vpop.f32.mrf.mxu0
      %v2970 = vadd.f32 0.0, %v2969
      %v2971 = vpop.f32.mrf.mxu0
      %v2972 = vadd.f32 0.0, %v2971
      %2973 = vmatmul.bf16.gmra.mxu0 %v2919
      %v2974 = vpop.f32.mrf.mxu0
      %v2975 = vadd.f32 0.0, %v2974
      %v2976 = vpop.f32.mrf.mxu0
      %v2977 = vadd.f32 0.0, %v2976
      %2978 = vdwg.mxu0
      %2979 = vmatpush.bf16.msra.mxu0 0
      %2980 = vmatpush.bf16.msra.mxu0 0
      %2981 = vmatpush.bf16.msra.mxu0 0
      %2982 = vmatpush.bf16.msra.mxu0 0
      %2983 = vmatpush.bf16.msra.mxu0 0
      %2984 = vmatpush.bf16.msra.mxu0 %v2925
      %2985 = vmatpush.bf16.msra.mxu0 %v2886
      %2986 = vmatpush.bf16.msra.mxu0 %v2883
      %2987 = vmatmul.bf16.gmra.mxu0 %v2898
      %v2988 = vpop.f32.mrf.mxu0
      %v2989 = vadd.f32 0.0, %v2988
      %v2990 = vpop.f32.mrf.mxu0
      %v2991 = vadd.f32 0.0, %v2990
      %2992 = vmatmul.bf16.gmra.mxu0 %v2901
      %v2993 = vpop.f32.mrf.mxu0
      %v2994 = vadd.f32 0.0, %v2993
      %v2995 = vpop.f32.mrf.mxu0
      %v2996 = vadd.f32 0.0, %v2995
      %2997 = vmatmul.bf16.gmra.mxu0 %v2904
      %v2998 = vpop.f32.mrf.mxu0
      %v2999 = vadd.f32 0.0, %v2998
      %v3000 = vpop.f32.mrf.mxu0
      %v3001 = vadd.f32 0.0, %v3000
      %3002 = vmatmul.bf16.gmra.mxu0 %v2907
      %v3003 = vpop.f32.mrf.mxu0
      %v3004 = vadd.f32 0.0, %v3003
      %v3005 = vpop.f32.mrf.mxu0
      %v3006 = vadd.f32 0.0, %v3005
      %3007 = vmatmul.bf16.gmra.mxu0 %v2910
      %v3008 = vpop.f32.mrf.mxu0
      %v3009 = vadd.f32 0.0, %v3008
      %v3010 = vpop.f32.mrf.mxu0
      %v3011 = vadd.f32 0.0, %v3010
      %3012 = vmatmul.bf16.gmra.mxu0 %v2913
      %v3013 = vpop.f32.mrf.mxu0
      %v3014 = vadd.f32 0.0, %v3013
      %v3015 = vpop.f32.mrf.mxu0
      %v3016 = vadd.f32 0.0, %v3015
      %3017 = vmatmul.bf16.gmra.mxu0 %v2916
      %v3018 = vpop.f32.mrf.mxu0
      %v3019 = vadd.f32 0.0, %v3018
      %v3020 = vpop.f32.mrf.mxu0
      %v3021 = vadd.f32 0.0, %v3020
      %3022 = vmatmul.bf16.gmra.mxu0 %v2919
      %v3023 = vpop.f32.mrf.mxu0
      %v3024 = vadd.f32 0.0, %v3023
      %v3025 = vpop.f32.mrf.mxu0
      %v3026 = vadd.f32 0.0, %v3025
      %3027 = vdwg.mxu0
      %3028 = vmatpush.bf16.msra.mxu0 0
      %3029 = vmatpush.bf16.msra.mxu0 0
      %3030 = vmatpush.bf16.msra.mxu0 0
      %3031 = vmatpush.bf16.msra.mxu0 0
      %3032 = vmatpush.bf16.msra.mxu0 0
      %3033 = vmatpush.bf16.msra.mxu0 %v2928
      %3034 = vmatpush.bf16.msra.mxu0 %v2887
      %3035 = vmatpush.bf16.msra.mxu0 %v2884
      %3036 = vmatmul.bf16.gmra.mxu0 %v2898
      %v3037 = vpop.f32.mrf.mxu0
      %v3038 = vadd.f32 0.0, %v3037
      %v3039 = vpop.f32.mrf.mxu0
      %v3040 = vadd.f32 0.0, %v3039
      %3041 = vmatmul.bf16.gmra.mxu0 %v2901
      %v3042 = vpop.f32.mrf.mxu0
      %v3043 = vadd.f32 0.0, %v3042
      %v3044 = vpop.f32.mrf.mxu0
      %v3045 = vadd.f32 0.0, %v3044
      %3046 = vmatmul.bf16.gmra.mxu0 %v2904
      %v3047 = vpop.f32.mrf.mxu0
      %v3048 = vadd.f32 0.0, %v3047
      %v3049 = vpop.f32.mrf.mxu0
      %v3050 = vadd.f32 0.0, %v3049
      %3051 = vmatmul.bf16.gmra.mxu0 %v2907
      %v3052 = vpop.f32.mrf.mxu0
      %v3053 = vadd.f32 0.0, %v3052
      %v3054 = vpop.f32.mrf.mxu0
      %v3055 = vadd.f32 0.0, %v3054
      %3056 = vmatmul.bf16.gmra.mxu0 %v2910
      %v3057 = vpop.f32.mrf.mxu0
      %v3058 = vadd.f32 0.0, %v3057
      %v3059 = vpop.f32.mrf.mxu0
      %v3060 = vadd.f32 0.0, %v3059
      %3061 = vmatmul.bf16.gmra.mxu0 %v2913
      %v3062 = vpop.f32.mrf.mxu0
      %v3063 = vadd.f32 0.0, %v3062
      %v3064 = vpop.f32.mrf.mxu0
      %v3065 = vadd.f32 0.0, %v3064
      %3066 = vmatmul.bf16.gmra.mxu0 %v2916
      %v3067 = vpop.f32.mrf.mxu0
      %v3068 = vadd.f32 0.0, %v3067
      %v3069 = vpop.f32.mrf.mxu0
      %v3070 = vadd.f32 0.0, %v3069
      %3071 = vmatmul.bf16.gmra.mxu0 %v2919
      %v3072 = vpop.f32.mrf.mxu0
      %v3073 = vadd.f32 0.0, %v3072
      %v3074 = vpop.f32.mrf.mxu0
      %v3075 = vadd.f32 0.0, %v3074
      %3076 = vdwg.mxu0
      %v3077 = vadd.f32 %v2752, %v2940
      %v3078 = vadd.f32 %v2753, %v2989
      %v3079 = vadd.f32 %v2754, %v3038
      %v3080 = vadd.f32 %v2755, %v2942
      %v3081 = vadd.f32 %v2756, %v2991
      %v3082 = vadd.f32 %v2757, %v3040
      %v3083 = vadd.f32 %v2758, %v2945
      %v3084 = vadd.f32 %v2759, %v2994
      %v3085 = vadd.f32 %v2760, %v3043
      %v3086 = vadd.f32 %v2761, %v2947
      %v3087 = vadd.f32 %v2762, %v2996
      %v3088 = vadd.f32 %v2763, %v3045
      %v3089 = vadd.f32 %v2764, %v2950
      %v3090 = vadd.f32 %v2765, %v2999
      %v3091 = vadd.f32 %v2766, %v3048
      %v3092 = vadd.f32 %v2767, %v2952
      %v3093 = vadd.f32 %v2768, %v3001
      %v3094 = vadd.f32 %v2769, %v3050
      %v3095 = vadd.f32 %v2770, %v2955
      %v3096 = vadd.f32 %v2771, %v3004
      %v3097 = vadd.f32 %v2772, %v3053
      %v3098 = vadd.f32 %v2773, %v2957
      %v3099 = vadd.f32 %v2774, %v3006
      %v3100 = vadd.f32 %v2775, %v3055
      %v3101 = vadd.f32 %v2776, %v2960
      %v3102 = vadd.f32 %v2777, %v3009
      %v3103 = vadd.f32 %v2778, %v3058
      %v3104 = vadd.f32 %v2779, %v2962
      %v3105 = vadd.f32 %v2780, %v3011
      %v3106 = vadd.f32 %v2781, %v3060
      %v3107 = vadd.f32 %v2782, %v2965
      %v3108 = vadd.f32 %v2783, %v3014
      %v3109 = vadd.f32 %v2784, %v3063
      %v3110 = vadd.f32 %v2785, %v2967
      %v3111 = vadd.f32 %v2786, %v3016
      %v3112 = vadd.f32 %v2787, %v3065
      %v3113 = vadd.f32 %v2788, %v2970
      %v3114 = vadd.f32 %v2789, %v3019
      %v3115 = vadd.f32 %v2790, %v3068
      %v3116 = vadd.f32 %v2791, %v2972
      %v3117 = vadd.f32 %v2792, %v3021
      %v3118 = vadd.f32 %v2793, %v3070
      %v3119 = vadd.f32 %v2794, %v2975
      %v3120 = vadd.f32 %v2795, %v3024
      %v3121 = vadd.f32 %v2796, %v3073
      %v3122 = vadd.f32 %v2797, %v2977
      %v3123 = vadd.f32 %v2798, %v3026
      %v3124 = vadd.f32 %v2799, %v3075
      %v3125 = vld [vmem:[%s2] sm:$0xff]
      %v3126 = vld [vmem:[%s2 + $0x8] sm:$0xff]
      %v3127 = vld [vmem:[%s2 + $0x10] sm:$0xff]
      %v3128 = vld [vmem:[%s2 + $0x18] sm:$0xff]
      %v3129 = vld [vmem:[%s2 + $0x20] sm:$0xff]
      %v3130 = vld [vmem:[%s2 + $0x28] sm:$0xff]
      %v3131 = vld [vmem:[%s2 + $0x30] sm:$0xff]
      %v3132 = vld [vmem:[%s2 + $0x38] sm:$0xff]
      %v3133 = vld [vmem:[%s2 + $0x40] sm:$0xff]
      %v3134 = vld [vmem:[%s2 + $0x48] sm:$0xff]
      %v3135 = vld [vmem:[%s2 + $0x50] sm:$0xff]
      %v3136 = vld [vmem:[%s2 + $0x58] sm:$0xff]
      %v3137 = vld [vmem:[%s2 + $0x60] sm:$0xff]
      %v3138 = vld [vmem:[%s2 + $0x68] sm:$0xff]
      %v3139 = vld [vmem:[%s2 + $0x70] sm:$0xff]
      %v3140 = vld [vmem:[%s2 + $0x78] sm:$0xff]
      %3142 = vset.pattern.permute.xlu0 0
      %3143 = vperm.xlu0 %3142, %v3125
      %v3144 = vpop.permute.xlu0 %3143
      %3147 = vset.pattern.permute.xlu0 0
      %3148 = vperm.xlu0 %3147, %v3126
      %v3149 = vpop.permute.xlu0 %3148
      %3152 = vset.pattern.permute.xlu0 0
      %3153 = vperm.xlu0 %3152, %v3127
      %v3154 = vpop.permute.xlu0 %3153
      %3157 = vset.pattern.permute.xlu0 0
      %3158 = vperm.xlu0 %3157, %v3128
      %v3159 = vpop.permute.xlu0 %3158
      %3162 = vset.pattern.permute.xlu0 0
      %3163 = vperm.xlu0 %3162, %v3129
      %v3164 = vpop.permute.xlu0 %3163
      %3167 = vset.pattern.permute.xlu0 0
      %3168 = vperm.xlu0 %3167, %v3130
      %v3169 = vpop.permute.xlu0 %3168
      %3172 = vset.pattern.permute.xlu0 0
      %3173 = vperm.xlu0 %3172, %v3131
      %v3174 = vpop.permute.xlu0 %3173
      %3177 = vset.pattern.permute.xlu0 0
      %3178 = vperm.xlu0 %3177, %v3132
      %v3179 = vpop.permute.xlu0 %3178
      %3182 = vset.pattern.permute.xlu0 0
      %3183 = vperm.xlu0 %3182, %v3133
      %v3184 = vpop.permute.xlu0 %3183
      %3187 = vset.pattern.permute.xlu0 0
      %3188 = vperm.xlu0 %3187, %v3134
      %v3189 = vpop.permute.xlu0 %3188
      %3192 = vset.pattern.permute.xlu0 0
      %3193 = vperm.xlu0 %3192, %v3135
      %v3194 = vpop.permute.xlu0 %3193
      %3197 = vset.pattern.permute.xlu0 0
      %3198 = vperm.xlu0 %3197, %v3136
      %v3199 = vpop.permute.xlu0 %3198
      %3202 = vset.pattern.permute.xlu0 0
      %3203 = vperm.xlu0 %3202, %v3137
      %v3204 = vpop.permute.xlu0 %3203
      %3207 = vset.pattern.permute.xlu0 0
      %3208 = vperm.xlu0 %3207, %v3138
      %v3209 = vpop.permute.xlu0 %3208
      %3212 = vset.pattern.permute.xlu0 0
      %3213 = vperm.xlu0 %3212, %v3139
      %v3214 = vpop.permute.xlu0 %3213
      %3217 = vset.pattern.permute.xlu0 0
      %3218 = vperm.xlu0 %3217, %v3140
      %v3219 = vpop.permute.xlu0 %3218
      %v3221 = vadd.f32 %v3077, %v3144
      %v3222 = vadd.f32 %v3078, %v3144
      %v3223 = vadd.f32 %v3079, %v3144
      %v3224 = vadd.f32 %v3080, %v3149
      %v3225 = vadd.f32 %v3081, %v3149
      %v3226 = vadd.f32 %v3082, %v3149
      %v3227 = vadd.f32 %v3083, %v3154
      %v3228 = vadd.f32 %v3084, %v3154
      %v3229 = vadd.f32 %v3085, %v3154
      %v3230 = vadd.f32 %v3086, %v3159
      %v3231 = vadd.f32 %v3087, %v3159
      %v3232 = vadd.f32 %v3088, %v3159
      %v3233 = vadd.f32 %v3089, %v3164
      %v3234 = vadd.f32 %v3090, %v3164
      %v3235 = vadd.f32 %v3091, %v3164
      %v3236 = vadd.f32 %v3092, %v3169
      %v3237 = vadd.f32 %v3093, %v3169
      %v3238 = vadd.f32 %v3094, %v3169
      %v3239 = vadd.f32 %v3095, %v3174
      %v3240 = vadd.f32 %v3096, %v3174
      %v3241 = vadd.f32 %v3097, %v3174
      %v3242 = vadd.f32 %v3098, %v3179
      %v3243 = vadd.f32 %v3099, %v3179
      %v3244 = vadd.f32 %v3100, %v3179
      %v3245 = vadd.f32 %v3101, %v3184
      %v3246 = vadd.f32 %v3102, %v3184
      %v3247 = vadd.f32 %v3103, %v3184
      %v3248 = vadd.f32 %v3104, %v3189
      %v3249 = vadd.f32 %v3105, %v3189
      %v3250 = vadd.f32 %v3106, %v3189
      %v3251 = vadd.f32 %v3107, %v3194
      %v3252 = vadd.f32 %v3108, %v3194
      %v3253 = vadd.f32 %v3109, %v3194
      %v3254 = vadd.f32 %v3110, %v3199
      %v3255 = vadd.f32 %v3111, %v3199
      %v3256 = vadd.f32 %v3112, %v3199
      %v3257 = vadd.f32 %v3113, %v3204
      %v3258 = vadd.f32 %v3114, %v3204
      %v3259 = vadd.f32 %v3115, %v3204
      %v3260 = vadd.f32 %v3116, %v3209
      %v3261 = vadd.f32 %v3117, %v3209
      %v3262 = vadd.f32 %v3118, %v3209
      %v3263 = vadd.f32 %v3119, %v3214
      %v3264 = vadd.f32 %v3120, %v3214
      %v3265 = vadd.f32 %v3121, %v3214
      %v3266 = vadd.f32 %v3122, %v3219
      %v3267 = vadd.f32 %v3123, %v3219
      %v3268 = vadd.f32 %v3124, %v3219
      %v3269 = vxor.u32 %v3221, 2147483648
      %v3270 = vxor.u32 %v3222, 2147483648
      %v3271 = vxor.u32 %v3223, 2147483648
      %v3272 = vxor.u32 %v3224, 2147483648
      %v3273 = vxor.u32 %v3225, 2147483648
      %v3274 = vxor.u32 %v3226, 2147483648
      %v3275 = vxor.u32 %v3227, 2147483648
      %v3276 = vxor.u32 %v3228, 2147483648
      %v3277 = vxor.u32 %v3229, 2147483648
      %v3278 = vxor.u32 %v3230, 2147483648
      %v3279 = vxor.u32 %v3231, 2147483648
      %v3280 = vxor.u32 %v3232, 2147483648
      %v3281 = vxor.u32 %v3233, 2147483648
      %v3282 = vxor.u32 %v3234, 2147483648
      %v3283 = vxor.u32 %v3235, 2147483648
      %v3284 = vxor.u32 %v3236, 2147483648
      %v3285 = vxor.u32 %v3237, 2147483648
      %v3286 = vxor.u32 %v3238, 2147483648
      %v3287 = vxor.u32 %v3239, 2147483648
      %v3288 = vxor.u32 %v3240, 2147483648
      %v3289 = vxor.u32 %v3241, 2147483648
      %v3290 = vxor.u32 %v3242, 2147483648
      %v3291 = vxor.u32 %v3243, 2147483648
      %v3292 = vxor.u32 %v3244, 2147483648
      %v3293 = vxor.u32 %v3245, 2147483648
      %v3294 = vxor.u32 %v3246, 2147483648
      %v3295 = vxor.u32 %v3247, 2147483648
      %v3296 = vxor.u32 %v3248, 2147483648
      %v3297 = vxor.u32 %v3249, 2147483648
      %v3298 = vxor.u32 %v3250, 2147483648
      %v3299 = vxor.u32 %v3251, 2147483648
      %v3300 = vxor.u32 %v3252, 2147483648
      %v3301 = vxor.u32 %v3253, 2147483648
      %v3302 = vxor.u32 %v3254, 2147483648
      %v3303 = vxor.u32 %v3255, 2147483648
      %v3304 = vxor.u32 %v3256, 2147483648
      %v3305 = vmul.f32 %v3269, 1.442695
      %v3306 = vpow.pop %v3305
      %v3307 = vmul.f32 %v3270, 1.442695
      %v3308 = vpow.pop %v3307
      %v3309 = vmul.f32 %v3271, 1.442695
      %v3310 = vpow.pop %v3309
      %v3311 = vmul.f32 %v3272, 1.442695
      %v3312 = vpow.pop %v3311
      %v3313 = vmul.f32 %v3273, 1.442695
      %v3314 = vpow.pop %v3313
      %v3315 = vmul.f32 %v3274, 1.442695
      %v3316 = vpow.pop %v3315
      %v3317 = vmul.f32 %v3275, 1.442695
      %v3318 = vpow.pop %v3317
      %v3319 = vmul.f32 %v3276, 1.442695
      %v3320 = vpow.pop %v3319
      %v3321 = vmul.f32 %v3277, 1.442695
      %v3322 = vpow.pop %v3321
      %v3323 = vmul.f32 %v3278, 1.442695
      %v3324 = vpow.pop %v3323
      %v3325 = vmul.f32 %v3279, 1.442695
      %v3326 = vpow.pop %v3325
      %v3327 = vmul.f32 %v3280, 1.442695
      %v3328 = vpow.pop %v3327
      %v3329 = vmul.f32 %v3281, 1.442695
      %v3330 = vpow.pop %v3329
      %v3331 = vmul.f32 %v3282, 1.442695
      %v3332 = vpow.pop %v3331
      %v3333 = vmul.f32 %v3283, 1.442695
      %v3334 = vpow.pop %v3333
      %v3335 = vmul.f32 %v3284, 1.442695
      %v3336 = vpow.pop %v3335
      %v3337 = vmul.f32 %v3285, 1.442695
      %v3338 = vpow.pop %v3337
      %v3339 = vmul.f32 %v3286, 1.442695
      %v3340 = vpow.pop %v3339
      %v3341 = vmul.f32 %v3287, 1.442695
      %v3342 = vpow.pop %v3341
      %v3343 = vmul.f32 %v3288, 1.442695
      %v3344 = vpow.pop %v3343
      %v3345 = vmul.f32 %v3289, 1.442695
      %v3346 = vpow.pop %v3345
      %v3347 = vmul.f32 %v3290, 1.442695
      %v3348 = vpow.pop %v3347
      %v3349 = vmul.f32 %v3291, 1.442695
      %v3350 = vpow.pop %v3349
      %v3351 = vmul.f32 %v3292, 1.442695
      %v3352 = vpow.pop %v3351
      %v3353 = vmul.f32 %v3293, 1.442695
      %v3354 = vpow.pop %v3353
      %v3355 = vmul.f32 %v3294, 1.442695
      %v3356 = vpow.pop %v3355
      %v3357 = vmul.f32 %v3295, 1.442695
      %v3358 = vpow.pop %v3357
      %v3359 = vmul.f32 %v3296, 1.442695
      %v3360 = vpow.pop %v3359
      %v3361 = vmul.f32 %v3297, 1.442695
      %v3362 = vpow.pop %v3361
      %v3363 = vmul.f32 %v3298, 1.442695
      %v3364 = vpow.pop %v3363
      %v3365 = vmul.f32 %v3299, 1.442695
      %v3366 = vpow.pop %v3365
      %v3367 = vmul.f32 %v3300, 1.442695
      %v3368 = vpow.pop %v3367
      %v3369 = vmul.f32 %v3301, 1.442695
      %v3370 = vpow.pop %v3369
      %v3371 = vmul.f32 %v3302, 1.442695
      %v3372 = vpow.pop %v3371
      %v3373 = vmul.f32 %v3303, 1.442695
      %v3374 = vpow.pop %v3373
      %v3375 = vmul.f32 %v3304, 1.442695
      %v3376 = vpow.pop %v3375
      %v3377 = vadd.f32 %v3306, 1.0
      %v3378 = vadd.f32 %v3308, 1.0
      %v3379 = vadd.f32 %v3310, 1.0
      %v3380 = vadd.f32 %v3312, 1.0
      %v3381 = vadd.f32 %v3314, 1.0
      %v3382 = vadd.f32 %v3316, 1.0
      %v3383 = vadd.f32 %v3318, 1.0
      %v3384 = vadd.f32 %v3320, 1.0
      %v3385 = vadd.f32 %v3322, 1.0
      %v3386 = vadd.f32 %v3324, 1.0
      %v3387 = vadd.f32 %v3326, 1.0
      %v3388 = vadd.f32 %v3328, 1.0
      %v3389 = vadd.f32 %v3330, 1.0
      %v3390 = vadd.f32 %v3332, 1.0
      %v3391 = vadd.f32 %v3334, 1.0
      %v3392 = vadd.f32 %v3336, 1.0
      %v3393 = vadd.f32 %v3338, 1.0
      %v3394 = vadd.f32 %v3340, 1.0
      %v3395 = vadd.f32 %v3342, 1.0
      %v3396 = vadd.f32 %v3344, 1.0
      %v3397 = vadd.f32 %v3346, 1.0
      %v3398 = vadd.f32 %v3348, 1.0
      %v3399 = vadd.f32 %v3350, 1.0
      %v3400 = vadd.f32 %v3352, 1.0
      %v3401 = vadd.f32 %v3354, 1.0
      %v3402 = vadd.f32 %v3356, 1.0
      %v3403 = vadd.f32 %v3358, 1.0
      %v3404 = vadd.f32 %v3360, 1.0
      %v3405 = vadd.f32 %v3362, 1.0
      %v3406 = vadd.f32 %v3364, 1.0
      %v3407 = vadd.f32 %v3366, 1.0
      %v3408 = vadd.f32 %v3368, 1.0
      %v3409 = vadd.f32 %v3370, 1.0
      %v3410 = vadd.f32 %v3372, 1.0
      %v3411 = vadd.f32 %v3374, 1.0
      %v3412 = vadd.f32 %v3376, 1.0
      %v3413 = vrcp.pop %v3377
      %v3414 = vmul.f32 %v3377, %v3413
      %v3415 = vsub.f32 1.0, %v3414
      %v3416 = vmul.f32 %v3413, %v3415
      %v3417 = vadd.f32 %v3413, %v3416
      %vm3418 = vweird.f32 %v3377
      %vm3419 = vweird.f32 %v3413
      %vm3420 = vmor %vm3418, %vm3419
      %v3421 = vsel %vm3420, %v3413, %v3417
      %v3422 = vand.u32 2147483647, %v3377
      %vm3423 = vcmp.eq.f32.partialorder %v3422, 8.507059e+37
      %v3424 = vand.u32 %v3377, 2147483648
      %v3425 = vor.u32 1.1754944e-38, %v3424
      %v3426 = vsel %vm3423, %v3425, %v3421
      %v3427 = vmul.f32 1.0, %v3426
      %v3428 = vrcp.pop %v3378
      %v3429 = vmul.f32 %v3378, %v3428
      %v3430 = vsub.f32 1.0, %v3429
      %v3431 = vmul.f32 %v3428, %v3430
      %v3432 = vadd.f32 %v3428, %v3431
      %vm3433 = vweird.f32 %v3378
      %vm3434 = vweird.f32 %v3428
      %vm3435 = vmor %vm3433, %vm3434
      %v3436 = vsel %vm3435, %v3428, %v3432
      %v3437 = vand.u32 2147483647, %v3378
      %vm3438 = vcmp.eq.f32.partialorder %v3437, 8.507059e+37
      %v3439 = vand.u32 %v3378, 2147483648
      %v3440 = vor.u32 1.1754944e-38, %v3439
      %v3441 = vsel %vm3438, %v3440, %v3436
      %v3442 = vmul.f32 1.0, %v3441
      %v3443 = vrcp.pop %v3379
      %v3444 = vmul.f32 %v3379, %v3443
      %v3445 = vsub.f32 1.0, %v3444
      %v3446 = vmul.f32 %v3443, %v3445
      %v3447 = vadd.f32 %v3443, %v3446
      %vm3448 = vweird.f32 %v3379
      %vm3449 = vweird.f32 %v3443
      %vm3450 = vmor %vm3448, %vm3449
      %v3451 = vsel %vm3450, %v3443, %v3447
      %v3452 = vand.u32 2147483647, %v3379
      %vm3453 = vcmp.eq.f32.partialorder %v3452, 8.507059e+37
      %v3454 = vand.u32 %v3379, 2147483648
      %v3455 = vor.u32 1.1754944e-38, %v3454
      %v3456 = vsel %vm3453, %v3455, %v3451
      %v3457 = vmul.f32 1.0, %v3456
      %v3458 = vrcp.pop %v3380
      %v3459 = vmul.f32 %v3380, %v3458
      %v3460 = vsub.f32 1.0, %v3459
      %v3461 = vmul.f32 %v3458, %v3460
      %v3462 = vadd.f32 %v3458, %v3461
      %vm3463 = vweird.f32 %v3380
      %vm3464 = vweird.f32 %v3458
      %vm3465 = vmor %vm3463, %vm3464
      %v3466 = vsel %vm3465, %v3458, %v3462
      %v3467 = vand.u32 2147483647, %v3380
      %vm3468 = vcmp.eq.f32.partialorder %v3467, 8.507059e+37
      %v3469 = vand.u32 %v3380, 2147483648
      %v3470 = vor.u32 1.1754944e-38, %v3469
      %v3471 = vsel %vm3468, %v3470, %v3466
      %v3472 = vmul.f32 1.0, %v3471
      %v3473 = vrcp.pop %v3381
      %v3474 = vmul.f32 %v3381, %v3473
      %v3475 = vsub.f32 1.0, %v3474
      %v3476 = vmul.f32 %v3473, %v3475
      %v3477 = vadd.f32 %v3473, %v3476
      %vm3478 = vweird.f32 %v3381
      %vm3479 = vweird.f32 %v3473
      %vm3480 = vmor %vm3478, %vm3479
      %v3481 = vsel %vm3480, %v3473, %v3477
      %v3482 = vand.u32 2147483647, %v3381
      %vm3483 = vcmp.eq.f32.partialorder %v3482, 8.507059e+37
      %v3484 = vand.u32 %v3381, 2147483648
      %v3485 = vor.u32 1.1754944e-38, %v3484
      %v3486 = vsel %vm3483, %v3485, %v3481
      %v3487 = vmul.f32 1.0, %v3486
      %v3488 = vrcp.pop %v3382
      %v3489 = vmul.f32 %v3382, %v3488
      %v3490 = vsub.f32 1.0, %v3489
      %v3491 = vmul.f32 %v3488, %v3490
      %v3492 = vadd.f32 %v3488, %v3491
      %vm3493 = vweird.f32 %v3382
      %vm3494 = vweird.f32 %v3488
      %vm3495 = vmor %vm3493, %vm3494
      %v3496 = vsel %vm3495, %v3488, %v3492
      %v3497 = vand.u32 2147483647, %v3382
      %vm3498 = vcmp.eq.f32.partialorder %v3497, 8.507059e+37
      %v3499 = vand.u32 %v3382, 2147483648
      %v3500 = vor.u32 1.1754944e-38, %v3499
      %v3501 = vsel %vm3498, %v3500, %v3496
      %v3502 = vmul.f32 1.0, %v3501
      %v3503 = vrcp.pop %v3383
      %v3504 = vmul.f32 %v3383, %v3503
      %v3505 = vsub.f32 1.0, %v3504
      %v3506 = vmul.f32 %v3503, %v3505
      %v3507 = vadd.f32 %v3503, %v3506
      %vm3508 = vweird.f32 %v3383
      %vm3509 = vweird.f32 %v3503
      %vm3510 = vmor %vm3508, %vm3509
      %v3511 = vsel %vm3510, %v3503, %v3507
      %v3512 = vand.u32 2147483647, %v3383
      %vm3513 = vcmp.eq.f32.partialorder %v3512, 8.507059e+37
      %v3514 = vand.u32 %v3383, 2147483648
      %v3515 = vor.u32 1.1754944e-38, %v3514
      %v3516 = vsel %vm3513, %v3515, %v3511
      %v3517 = vmul.f32 1.0, %v3516
      %v3518 = vrcp.pop %v3384
      %v3519 = vmul.f32 %v3384, %v3518
      %v3520 = vsub.f32 1.0, %v3519
      %v3521 = vmul.f32 %v3518, %v3520
      %v3522 = vadd.f32 %v3518, %v3521
      %vm3523 = vweird.f32 %v3384
      %vm3524 = vweird.f32 %v3518
      %vm3525 = vmor %vm3523, %vm3524
      %v3526 = vsel %vm3525, %v3518, %v3522
      %v3527 = vand.u32 2147483647, %v3384
      %vm3528 = vcmp.eq.f32.partialorder %v3527, 8.507059e+37
      %v3529 = vand.u32 %v3384, 2147483648
      %v3530 = vor.u32 1.1754944e-38, %v3529
      %v3531 = vsel %vm3528, %v3530, %v3526
      %v3532 = vmul.f32 1.0, %v3531
      %v3533 = vrcp.pop %v3385
      %v3534 = vmul.f32 %v3385, %v3533
      %v3535 = vsub.f32 1.0, %v3534
      %v3536 = vmul.f32 %v3533, %v3535
      %v3537 = vadd.f32 %v3533, %v3536
      %vm3538 = vweird.f32 %v3385
      %vm3539 = vweird.f32 %v3533
      %vm3540 = vmor %vm3538, %vm3539
      %v3541 = vsel %vm3540, %v3533, %v3537
      %v3542 = vand.u32 2147483647, %v3385
      %vm3543 = vcmp.eq.f32.partialorder %v3542, 8.507059e+37
      %v3544 = vand.u32 %v3385, 2147483648
      %v3545 = vor.u32 1.1754944e-38, %v3544
      %v3546 = vsel %vm3543, %v3545, %v3541
      %v3547 = vmul.f32 1.0, %v3546
      %v3548 = vrcp.pop %v3386
      %v3549 = vmul.f32 %v3386, %v3548
      %v3550 = vsub.f32 1.0, %v3549
      %v3551 = vmul.f32 %v3548, %v3550
      %v3552 = vadd.f32 %v3548, %v3551
      %vm3553 = vweird.f32 %v3386
      %vm3554 = vweird.f32 %v3548
      %vm3555 = vmor %vm3553, %vm3554
      %v3556 = vsel %vm3555, %v3548, %v3552
      %v3557 = vand.u32 2147483647, %v3386
      %vm3558 = vcmp.eq.f32.partialorder %v3557, 8.507059e+37
      %v3559 = vand.u32 %v3386, 2147483648
      %v3560 = vor.u32 1.1754944e-38, %v3559
      %v3561 = vsel %vm3558, %v3560, %v3556
      %v3562 = vmul.f32 1.0, %v3561
      %v3563 = vrcp.pop %v3387
      %v3564 = vmul.f32 %v3387, %v3563
      %v3565 = vsub.f32 1.0, %v3564
      %v3566 = vmul.f32 %v3563, %v3565
      %v3567 = vadd.f32 %v3563, %v3566
      %vm3568 = vweird.f32 %v3387
      %vm3569 = vweird.f32 %v3563
      %vm3570 = vmor %vm3568, %vm3569
      %v3571 = vsel %vm3570, %v3563, %v3567
      %v3572 = vand.u32 2147483647, %v3387
      %vm3573 = vcmp.eq.f32.partialorder %v3572, 8.507059e+37
      %v3574 = vand.u32 %v3387, 2147483648
      %v3575 = vor.u32 1.1754944e-38, %v3574
      %v3576 = vsel %vm3573, %v3575, %v3571
      %v3577 = vmul.f32 1.0, %v3576
      %v3578 = vrcp.pop %v3388
      %v3579 = vmul.f32 %v3388, %v3578
      %v3580 = vsub.f32 1.0, %v3579
      %v3581 = vmul.f32 %v3578, %v3580
      %v3582 = vadd.f32 %v3578, %v3581
      %vm3583 = vweird.f32 %v3388
      %vm3584 = vweird.f32 %v3578
      %vm3585 = vmor %vm3583, %vm3584
      %v3586 = vsel %vm3585, %v3578, %v3582
      %v3587 = vand.u32 2147483647, %v3388
      %vm3588 = vcmp.eq.f32.partialorder %v3587, 8.507059e+37
      %v3589 = vand.u32 %v3388, 2147483648
      %v3590 = vor.u32 1.1754944e-38, %v3589
      %v3591 = vsel %vm3588, %v3590, %v3586
      %v3592 = vmul.f32 1.0, %v3591
      %v3593 = vrcp.pop %v3389
      %v3594 = vmul.f32 %v3389, %v3593
      %v3595 = vsub.f32 1.0, %v3594
      %v3596 = vmul.f32 %v3593, %v3595
      %v3597 = vadd.f32 %v3593, %v3596
      %vm3598 = vweird.f32 %v3389
      %vm3599 = vweird.f32 %v3593
      %vm3600 = vmor %vm3598, %vm3599
      %v3601 = vsel %vm3600, %v3593, %v3597
      %v3602 = vand.u32 2147483647, %v3389
      %vm3603 = vcmp.eq.f32.partialorder %v3602, 8.507059e+37
      %v3604 = vand.u32 %v3389, 2147483648
      %v3605 = vor.u32 1.1754944e-38, %v3604
      %v3606 = vsel %vm3603, %v3605, %v3601
      %v3607 = vmul.f32 1.0, %v3606
      %v3608 = vrcp.pop %v3390
      %v3609 = vmul.f32 %v3390, %v3608
      %v3610 = vsub.f32 1.0, %v3609
      %v3611 = vmul.f32 %v3608, %v3610
      %v3612 = vadd.f32 %v3608, %v3611
      %vm3613 = vweird.f32 %v3390
      %vm3614 = vweird.f32 %v3608
      %vm3615 = vmor %vm3613, %vm3614
      %v3616 = vsel %vm3615, %v3608, %v3612
      %v3617 = vand.u32 2147483647, %v3390
      %vm3618 = vcmp.eq.f32.partialorder %v3617, 8.507059e+37
      %v3619 = vand.u32 %v3390, 2147483648
      %v3620 = vor.u32 1.1754944e-38, %v3619
      %v3621 = vsel %vm3618, %v3620, %v3616
      %v3622 = vmul.f32 1.0, %v3621
      %v3623 = vrcp.pop %v3391
      %v3624 = vmul.f32 %v3391, %v3623
      %v3625 = vsub.f32 1.0, %v3624
      %v3626 = vmul.f32 %v3623, %v3625
      %v3627 = vadd.f32 %v3623, %v3626
      %vm3628 = vweird.f32 %v3391
      %vm3629 = vweird.f32 %v3623
      %vm3630 = vmor %vm3628, %vm3629
      %v3631 = vsel %vm3630, %v3623, %v3627
      %v3632 = vand.u32 2147483647, %v3391
      %vm3633 = vcmp.eq.f32.partialorder %v3632, 8.507059e+37
      %v3634 = vand.u32 %v3391, 2147483648
      %v3635 = vor.u32 1.1754944e-38, %v3634
      %v3636 = vsel %vm3633, %v3635, %v3631
      %v3637 = vmul.f32 1.0, %v3636
      %v3638 = vrcp.pop %v3392
      %v3639 = vmul.f32 %v3392, %v3638
      %v3640 = vsub.f32 1.0, %v3639
      %v3641 = vmul.f32 %v3638, %v3640
      %v3642 = vadd.f32 %v3638, %v3641
      %vm3643 = vweird.f32 %v3392
      %vm3644 = vweird.f32 %v3638
      %vm3645 = vmor %vm3643, %vm3644
      %v3646 = vsel %vm3645, %v3638, %v3642
      %v3647 = vand.u32 2147483647, %v3392
      %vm3648 = vcmp.eq.f32.partialorder %v3647, 8.507059e+37
      %v3649 = vand.u32 %v3392, 2147483648
      %v3650 = vor.u32 1.1754944e-38, %v3649
      %v3651 = vsel %vm3648, %v3650, %v3646
      %v3652 = vmul.f32 1.0, %v3651
      %v3653 = vrcp.pop %v3393
      %v3654 = vmul.f32 %v3393, %v3653
      %v3655 = vsub.f32 1.0, %v3654
      %v3656 = vmul.f32 %v3653, %v3655
      %v3657 = vadd.f32 %v3653, %v3656
      %vm3658 = vweird.f32 %v3393
      %vm3659 = vweird.f32 %v3653
      %vm3660 = vmor %vm3658, %vm3659
      %v3661 = vsel %vm3660, %v3653, %v3657
      %v3662 = vand.u32 2147483647, %v3393
      %vm3663 = vcmp.eq.f32.partialorder %v3662, 8.507059e+37
      %v3664 = vand.u32 %v3393, 2147483648
      %v3665 = vor.u32 1.1754944e-38, %v3664
      %v3666 = vsel %vm3663, %v3665, %v3661
      %v3667 = vmul.f32 1.0, %v3666
      %v3668 = vrcp.pop %v3394
      %v3669 = vmul.f32 %v3394, %v3668
      %v3670 = vsub.f32 1.0, %v3669
      %v3671 = vmul.f32 %v3668, %v3670
      %v3672 = vadd.f32 %v3668, %v3671
      %vm3673 = vweird.f32 %v3394
      %vm3674 = vweird.f32 %v3668
      %vm3675 = vmor %vm3673, %vm3674
      %v3676 = vsel %vm3675, %v3668, %v3672
      %v3677 = vand.u32 2147483647, %v3394
      %vm3678 = vcmp.eq.f32.partialorder %v3677, 8.507059e+37
      %v3679 = vand.u32 %v3394, 2147483648
      %v3680 = vor.u32 1.1754944e-38, %v3679
      %v3681 = vsel %vm3678, %v3680, %v3676
      %v3682 = vmul.f32 1.0, %v3681
      %v3683 = vrcp.pop %v3395
      %v3684 = vmul.f32 %v3395, %v3683
      %v3685 = vsub.f32 1.0, %v3684
      %v3686 = vmul.f32 %v3683, %v3685
      %v3687 = vadd.f32 %v3683, %v3686
      %vm3688 = vweird.f32 %v3395
      %vm3689 = vweird.f32 %v3683
      %vm3690 = vmor %vm3688, %vm3689
      %v3691 = vsel %vm3690, %v3683, %v3687
      %v3692 = vand.u32 2147483647, %v3395
      %vm3693 = vcmp.eq.f32.partialorder %v3692, 8.507059e+37
      %v3694 = vand.u32 %v3395, 2147483648
      %v3695 = vor.u32 1.1754944e-38, %v3694
      %v3696 = vsel %vm3693, %v3695, %v3691
      %v3697 = vmul.f32 1.0, %v3696
      %v3698 = vrcp.pop %v3396
      %v3699 = vmul.f32 %v3396, %v3698
      %v3700 = vsub.f32 1.0, %v3699
      %v3701 = vmul.f32 %v3698, %v3700
      %v3702 = vadd.f32 %v3698, %v3701
      %vm3703 = vweird.f32 %v3396
      %vm3704 = vweird.f32 %v3698
      %vm3705 = vmor %vm3703, %vm3704
      %v3706 = vsel %vm3705, %v3698, %v3702
      %v3707 = vand.u32 2147483647, %v3396
      %vm3708 = vcmp.eq.f32.partialorder %v3707, 8.507059e+37
      %v3709 = vand.u32 %v3396, 2147483648
      %v3710 = vor.u32 1.1754944e-38, %v3709
      %v3711 = vsel %vm3708, %v3710, %v3706
      %v3712 = vmul.f32 1.0, %v3711
      %v3713 = vrcp.pop %v3397
      %v3714 = vmul.f32 %v3397, %v3713
      %v3715 = vsub.f32 1.0, %v3714
      %v3716 = vmul.f32 %v3713, %v3715
      %v3717 = vadd.f32 %v3713, %v3716
      %vm3718 = vweird.f32 %v3397
      %vm3719 = vweird.f32 %v3713
      %vm3720 = vmor %vm3718, %vm3719
      %v3721 = vsel %vm3720, %v3713, %v3717
      %v3722 = vand.u32 2147483647, %v3397
      %vm3723 = vcmp.eq.f32.partialorder %v3722, 8.507059e+37
      %v3724 = vand.u32 %v3397, 2147483648
      %v3725 = vor.u32 1.1754944e-38, %v3724
      %v3726 = vsel %vm3723, %v3725, %v3721
      %v3727 = vmul.f32 1.0, %v3726
      %v3728 = vrcp.pop %v3398
      %v3729 = vmul.f32 %v3398, %v3728
      %v3730 = vsub.f32 1.0, %v3729
      %v3731 = vmul.f32 %v3728, %v3730
      %v3732 = vadd.f32 %v3728, %v3731
      %vm3733 = vweird.f32 %v3398
      %vm3734 = vweird.f32 %v3728
      %vm3735 = vmor %vm3733, %vm3734
      %v3736 = vsel %vm3735, %v3728, %v3732
      %v3737 = vand.u32 2147483647, %v3398
      %vm3738 = vcmp.eq.f32.partialorder %v3737, 8.507059e+37
      %v3739 = vand.u32 %v3398, 2147483648
      %v3740 = vor.u32 1.1754944e-38, %v3739
      %v3741 = vsel %vm3738, %v3740, %v3736
      %v3742 = vmul.f32 1.0, %v3741
      %v3743 = vrcp.pop %v3399
      %v3744 = vmul.f32 %v3399, %v3743
      %v3745 = vsub.f32 1.0, %v3744
      %v3746 = vmul.f32 %v3743, %v3745
      %v3747 = vadd.f32 %v3743, %v3746
      %vm3748 = vweird.f32 %v3399
      %vm3749 = vweird.f32 %v3743
      %vm3750 = vmor %vm3748, %vm3749
      %v3751 = vsel %vm3750, %v3743, %v3747
      %v3752 = vand.u32 2147483647, %v3399
      %vm3753 = vcmp.eq.f32.partialorder %v3752, 8.507059e+37
      %v3754 = vand.u32 %v3399, 2147483648
      %v3755 = vor.u32 1.1754944e-38, %v3754
      %v3756 = vsel %vm3753, %v3755, %v3751
      %v3757 = vmul.f32 1.0, %v3756
      %v3758 = vrcp.pop %v3400
      %v3759 = vmul.f32 %v3400, %v3758
      %v3760 = vsub.f32 1.0, %v3759
      %v3761 = vmul.f32 %v3758, %v3760
      %v3762 = vadd.f32 %v3758, %v3761
      %vm3763 = vweird.f32 %v3400
      %vm3764 = vweird.f32 %v3758
      %vm3765 = vmor %vm3763, %vm3764
      %v3766 = vsel %vm3765, %v3758, %v3762
      %v3767 = vand.u32 2147483647, %v3400
      %vm3768 = vcmp.eq.f32.partialorder %v3767, 8.507059e+37
      %v3769 = vand.u32 %v3400, 2147483648
      %v3770 = vor.u32 1.1754944e-38, %v3769
      %v3771 = vsel %vm3768, %v3770, %v3766
      %v3772 = vmul.f32 1.0, %v3771
      %v3773 = vrcp.pop %v3401
      %v3774 = vmul.f32 %v3401, %v3773
      %v3775 = vsub.f32 1.0, %v3774
      %v3776 = vmul.f32 %v3773, %v3775
      %v3777 = vadd.f32 %v3773, %v3776
      %vm3778 = vweird.f32 %v3401
      %vm3779 = vweird.f32 %v3773
      %vm3780 = vmor %vm3778, %vm3779
      %v3781 = vsel %vm3780, %v3773, %v3777
      %v3782 = vand.u32 2147483647, %v3401
      %vm3783 = vcmp.eq.f32.partialorder %v3782, 8.507059e+37
      %v3784 = vand.u32 %v3401, 2147483648
      %v3785 = vor.u32 1.1754944e-38, %v3784
      %v3786 = vsel %vm3783, %v3785, %v3781
      %v3787 = vmul.f32 1.0, %v3786
      %v3788 = vrcp.pop %v3402
      %v3789 = vmul.f32 %v3402, %v3788
      %v3790 = vsub.f32 1.0, %v3789
      %v3791 = vmul.f32 %v3788, %v3790
      %v3792 = vadd.f32 %v3788, %v3791
      %vm3793 = vweird.f32 %v3402
      %vm3794 = vweird.f32 %v3788
      %vm3795 = vmor %vm3793, %vm3794
      %v3796 = vsel %vm3795, %v3788, %v3792
      %v3797 = vand.u32 2147483647, %v3402
      %vm3798 = vcmp.eq.f32.partialorder %v3797, 8.507059e+37
      %v3799 = vand.u32 %v3402, 2147483648
      %v3800 = vor.u32 1.1754944e-38, %v3799
      %v3801 = vsel %vm3798, %v3800, %v3796
      %v3802 = vmul.f32 1.0, %v3801
      %v3803 = vrcp.pop %v3403
      %v3804 = vmul.f32 %v3403, %v3803
      %v3805 = vsub.f32 1.0, %v3804
      %v3806 = vmul.f32 %v3803, %v3805
      %v3807 = vadd.f32 %v3803, %v3806
      %vm3808 = vweird.f32 %v3403
      %vm3809 = vweird.f32 %v3803
      %vm3810 = vmor %vm3808, %vm3809
      %v3811 = vsel %vm3810, %v3803, %v3807
      %v3812 = vand.u32 2147483647, %v3403
      %vm3813 = vcmp.eq.f32.partialorder %v3812, 8.507059e+37
      %v3814 = vand.u32 %v3403, 2147483648
      %v3815 = vor.u32 1.1754944e-38, %v3814
      %v3816 = vsel %vm3813, %v3815, %v3811
      %v3817 = vmul.f32 1.0, %v3816
      %v3818 = vrcp.pop %v3404
      %v3819 = vmul.f32 %v3404, %v3818
      %v3820 = vsub.f32 1.0, %v3819
      %v3821 = vmul.f32 %v3818, %v3820
      %v3822 = vadd.f32 %v3818, %v3821
      %vm3823 = vweird.f32 %v3404
      %vm3824 = vweird.f32 %v3818
      %vm3825 = vmor %vm3823, %vm3824
      %v3826 = vsel %vm3825, %v3818, %v3822
      %v3827 = vand.u32 2147483647, %v3404
      %vm3828 = vcmp.eq.f32.partialorder %v3827, 8.507059e+37
      %v3829 = vand.u32 %v3404, 2147483648
      %v3830 = vor.u32 1.1754944e-38, %v3829
      %v3831 = vsel %vm3828, %v3830, %v3826
      %v3832 = vmul.f32 1.0, %v3831
      %v3833 = vrcp.pop %v3405
      %v3834 = vmul.f32 %v3405, %v3833
      %v3835 = vsub.f32 1.0, %v3834
      %v3836 = vmul.f32 %v3833, %v3835
      %v3837 = vadd.f32 %v3833, %v3836
      %vm3838 = vweird.f32 %v3405
      %vm3839 = vweird.f32 %v3833
      %vm3840 = vmor %vm3838, %vm3839
      %v3841 = vsel %vm3840, %v3833, %v3837
      %v3842 = vand.u32 2147483647, %v3405
      %vm3843 = vcmp.eq.f32.partialorder %v3842, 8.507059e+37
      %v3844 = vand.u32 %v3405, 2147483648
      %v3845 = vor.u32 1.1754944e-38, %v3844
      %v3846 = vsel %vm3843, %v3845, %v3841
      %v3847 = vmul.f32 1.0, %v3846
      %v3848 = vrcp.pop %v3406
      %v3849 = vmul.f32 %v3406, %v3848
      %v3850 = vsub.f32 1.0, %v3849
      %v3851 = vmul.f32 %v3848, %v3850
      %v3852 = vadd.f32 %v3848, %v3851
      %vm3853 = vweird.f32 %v3406
      %vm3854 = vweird.f32 %v3848
      %vm3855 = vmor %vm3853, %vm3854
      %v3856 = vsel %vm3855, %v3848, %v3852
      %v3857 = vand.u32 2147483647, %v3406
      %vm3858 = vcmp.eq.f32.partialorder %v3857, 8.507059e+37
      %v3859 = vand.u32 %v3406, 2147483648
      %v3860 = vor.u32 1.1754944e-38, %v3859
      %v3861 = vsel %vm3858, %v3860, %v3856
      %v3862 = vmul.f32 1.0, %v3861
      %v3863 = vrcp.pop %v3407
      %v3864 = vmul.f32 %v3407, %v3863
      %v3865 = vsub.f32 1.0, %v3864
      %v3866 = vmul.f32 %v3863, %v3865
      %v3867 = vadd.f32 %v3863, %v3866
      %vm3868 = vweird.f32 %v3407
      %vm3869 = vweird.f32 %v3863
      %vm3870 = vmor %vm3868, %vm3869
      %v3871 = vsel %vm3870, %v3863, %v3867
      %v3872 = vand.u32 2147483647, %v3407
      %vm3873 = vcmp.eq.f32.partialorder %v3872, 8.507059e+37
      %v3874 = vand.u32 %v3407, 2147483648
      %v3875 = vor.u32 1.1754944e-38, %v3874
      %v3876 = vsel %vm3873, %v3875, %v3871
      %v3877 = vmul.f32 1.0, %v3876
      %v3878 = vrcp.pop %v3408
      %v3879 = vmul.f32 %v3408, %v3878
      %v3880 = vsub.f32 1.0, %v3879
      %v3881 = vmul.f32 %v3878, %v3880
      %v3882 = vadd.f32 %v3878, %v3881
      %vm3883 = vweird.f32 %v3408
      %vm3884 = vweird.f32 %v3878
      %vm3885 = vmor %vm3883, %vm3884
      %v3886 = vsel %vm3885, %v3878, %v3882
      %v3887 = vand.u32 2147483647, %v3408
      %vm3888 = vcmp.eq.f32.partialorder %v3887, 8.507059e+37
      %v3889 = vand.u32 %v3408, 2147483648
      %v3890 = vor.u32 1.1754944e-38, %v3889
      %v3891 = vsel %vm3888, %v3890, %v3886
      %v3892 = vmul.f32 1.0, %v3891
      %v3893 = vrcp.pop %v3409
      %v3894 = vmul.f32 %v3409, %v3893
      %v3895 = vsub.f32 1.0, %v3894
      %v3896 = vmul.f32 %v3893, %v3895
      %v3897 = vadd.f32 %v3893, %v3896
      %vm3898 = vweird.f32 %v3409
      %vm3899 = vweird.f32 %v3893
      %vm3900 = vmor %vm3898, %vm3899
      %v3901 = vsel %vm3900, %v3893, %v3897
      %v3902 = vand.u32 2147483647, %v3409
      %vm3903 = vcmp.eq.f32.partialorder %v3902, 8.507059e+37
      %v3904 = vand.u32 %v3409, 2147483648
      %v3905 = vor.u32 1.1754944e-38, %v3904
      %v3906 = vsel %vm3903, %v3905, %v3901
      %v3907 = vmul.f32 1.0, %v3906
      %v3908 = vrcp.pop %v3410
      %v3909 = vmul.f32 %v3410, %v3908
      %v3910 = vsub.f32 1.0, %v3909
      %v3911 = vmul.f32 %v3908, %v3910
      %v3912 = vadd.f32 %v3908, %v3911
      %vm3913 = vweird.f32 %v3410
      %vm3914 = vweird.f32 %v3908
      %vm3915 = vmor %vm3913, %vm3914
      %v3916 = vsel %vm3915, %v3908, %v3912
      %v3917 = vand.u32 2147483647, %v3410
      %vm3918 = vcmp.eq.f32.partialorder %v3917, 8.507059e+37
      %v3919 = vand.u32 %v3410, 2147483648
      %v3920 = vor.u32 1.1754944e-38, %v3919
      %v3921 = vsel %vm3918, %v3920, %v3916
      %v3922 = vmul.f32 1.0, %v3921
      %v3923 = vrcp.pop %v3411
      %v3924 = vmul.f32 %v3411, %v3923
      %v3925 = vsub.f32 1.0, %v3924
      %v3926 = vmul.f32 %v3923, %v3925
      %v3927 = vadd.f32 %v3923, %v3926
      %vm3928 = vweird.f32 %v3411
      %vm3929 = vweird.f32 %v3923
      %vm3930 = vmor %vm3928, %vm3929
      %v3931 = vsel %vm3930, %v3923, %v3927
      %v3932 = vand.u32 2147483647, %v3411
      %vm3933 = vcmp.eq.f32.partialorder %v3932, 8.507059e+37
      %v3934 = vand.u32 %v3411, 2147483648
      %v3935 = vor.u32 1.1754944e-38, %v3934
      %v3936 = vsel %vm3933, %v3935, %v3931
      %v3937 = vmul.f32 1.0, %v3936
      %v3938 = vrcp.pop %v3412
      %v3939 = vmul.f32 %v3412, %v3938
      %v3940 = vsub.f32 1.0, %v3939
      %v3941 = vmul.f32 %v3938, %v3940
      %v3942 = vadd.f32 %v3938, %v3941
      %vm3943 = vweird.f32 %v3412
      %vm3944 = vweird.f32 %v3938
      %vm3945 = vmor %vm3943, %vm3944
      %v3946 = vsel %vm3945, %v3938, %v3942
      %v3947 = vand.u32 2147483647, %v3412
      %vm3948 = vcmp.eq.f32.partialorder %v3947, 8.507059e+37
      %v3949 = vand.u32 %v3412, 2147483648
      %v3950 = vor.u32 1.1754944e-38, %v3949
      %v3951 = vsel %vm3948, %v3950, %v3946
      %v3952 = vmul.f32 1.0, %v3951
      %v3953 = vtanh.pop %v3257
      %v3954 = vtanh.pop %v3258
      %v3955 = vtanh.pop %v3259
      %v3956 = vtanh.pop %v3260
      %v3957 = vtanh.pop %v3261
      %v3958 = vtanh.pop %v3262
      %v3959 = vtanh.pop %v3263
      %v3960 = vtanh.pop %v3264
      %v3961 = vtanh.pop %v3265
      %v3962 = vtanh.pop %v3266
      %v3963 = vtanh.pop %v3267
      %v3964 = vtanh.pop %v3268
      %v3965 = vld [vmem:[%s247] sm:$0xff]
      %v3966 = vld [vmem:[%s247 + $0x8] sm:$0xff]
      %v3967 = vld [vmem:[%s247 + $0x10] sm:$0xff]
      %v3968 = vld [vmem:[%s247 + $0x18] sm:$0xff]
      %v3969 = vld [vmem:[%s247 + $0x20] sm:$0xff]
      %v3970 = vld [vmem:[%s247 + $0x28] sm:$0xff]
      %v3971 = vld [vmem:[%s247 + $0x30] sm:$0xff]
      %v3972 = vld [vmem:[%s247 + $0x38] sm:$0xff]
      %v3973 = vld [vmem:[%s247 + $0x40] sm:$0xff]
      %v3974 = vld [vmem:[%s247 + $0x48] sm:$0xff]
      %v3975 = vld [vmem:[%s247 + $0x50] sm:$0xff]
      %v3976 = vld [vmem:[%s247 + $0x58] sm:$0xff]
      %v3977 = vmul.f32 %v3607, %v3965
      %v3978 = vmul.f32 %v3622, %v3966
      %v3979 = vmul.f32 %v3637, %v3967
      %v3980 = vmul.f32 %v3652, %v3968
      %v3981 = vmul.f32 %v3667, %v3969
      %v3982 = vmul.f32 %v3682, %v3970
      %v3983 = vmul.f32 %v3697, %v3971
      %v3984 = vmul.f32 %v3712, %v3972
      %v3985 = vmul.f32 %v3727, %v3973
      %v3986 = vmul.f32 %v3742, %v3974
      %v3987 = vmul.f32 %v3757, %v3975
      %v3988 = vmul.f32 %v3772, %v3976
      %v3989 = vmul.f32 %v3427, %v3953
      %v3990 = vmul.f32 %v3442, %v3954
      %v3991 = vmul.f32 %v3457, %v3955
      %v3992 = vmul.f32 %v3472, %v3956
      %v3993 = vmul.f32 %v3487, %v3957
      %v3994 = vmul.f32 %v3502, %v3958
      %v3995 = vmul.f32 %v3517, %v3959
      %v3996 = vmul.f32 %v3532, %v3960
      %v3997 = vmul.f32 %v3547, %v3961
      %v3998 = vmul.f32 %v3562, %v3962
      %v3999 = vmul.f32 %v3577, %v3963
      %v4000 = vmul.f32 %v3592, %v3964
      %v4001 = vadd.f32 %v3977, %v3989
      %v4002 = vadd.f32 %v3978, %v3990
      %v4003 = vadd.f32 %v3979, %v3991
      %v4004 = vadd.f32 %v3980, %v3992
      %v4005 = vadd.f32 %v3981, %v3993
      %v4006 = vadd.f32 %v3982, %v3994
      %v4007 = vadd.f32 %v3983, %v3995
      %v4008 = vadd.f32 %v3984, %v3996
      %v4009 = vadd.f32 %v3985, %v3997
      %v4010 = vadd.f32 %v3986, %v3998
      %v4011 = vadd.f32 %v3987, %v3999
      %v4012 = vadd.f32 %v3988, %v4000
      %v4013 = vtanh.pop %v4001
      %v4014 = vtanh.pop %v4002
      %v4015 = vtanh.pop %v4003
      %v4016 = vtanh.pop %v4004
      %v4017 = vtanh.pop %v4005
      %v4018 = vtanh.pop %v4006
      %v4019 = vtanh.pop %v4007
      %v4020 = vtanh.pop %v4008
      %v4021 = vtanh.pop %v4009
      %v4022 = vtanh.pop %v4010
      %v4023 = vtanh.pop %v4011
      %v4024 = vtanh.pop %v4012
      %v4025 = vmul.f32 %v3787, %v4013
      %v4026 = vmul.f32 %v3802, %v4014
      %v4027 = vmul.f32 %v3817, %v4015
      %v4028 = vmul.f32 %v3832, %v4016
      %v4029 = vmul.f32 %v3847, %v4017
      %v4030 = vmul.f32 %v3862, %v4018
      %v4031 = vmul.f32 %v3877, %v4019
      %v4032 = vmul.f32 %v3892, %v4020
      %v4033 = vmul.f32 %v3907, %v4021
      %v4034 = vmul.f32 %v3922, %v4022
      %v4035 = vmul.f32 %v3937, %v4023
      %v4036 = vmul.f32 %v3952, %v4024
      %4037 = vst [vmem:[%s257] sm:$0xff] %v4001
      %4038 = vst [vmem:[%s257 + $0x8] sm:$0xff] %v4002
      %4039 = vst [vmem:[%s257 + $0x10] sm:$0xff] %v4003
      %4040 = vst [vmem:[%s257 + $0x18] sm:$0xff] %v4004
      %4041 = vst [vmem:[%s257 + $0x20] sm:$0xff] %v4005
      %4042 = vst [vmem:[%s257 + $0x28] sm:$0xff] %v4006
      %4043 = vst [vmem:[%s257 + $0x30] sm:$0xff] %v4007
      %4044 = vst [vmem:[%s257 + $0x38] sm:$0xff] %v4008
      %4045 = vst [vmem:[%s257 + $0x40] sm:$0xff] %v4009
      %4046 = vst [vmem:[%s257 + $0x48] sm:$0xff] %v4010
      %4047 = vst [vmem:[%s257 + $0x50] sm:$0xff] %v4011
      %4048 = vst [vmem:[%s257 + $0x58] sm:$0xff] %v4012
      %v4049 = vpack.c.bf16 %v4026, %v4025
      %v4050 = vpack.c.bf16 %v4027, %v4027
      %v4051 = vpack.c.bf16 %v4029, %v4028
      %v4052 = vpack.c.bf16 %v4030, %v4030
      %v4053 = vpack.c.bf16 %v4032, %v4031
      %v4054 = vpack.c.bf16 %v4033, %v4033
      %v4055 = vpack.c.bf16 %v4035, %v4034
      %v4056 = vpack.c.bf16 %v4036, %v4036
      %4057 = vst [vmem:[%s252] sm:$0xff] %v4049
      %4058 = vst [vmem:[%s252 + $0x8] sm:$0xf] %v4050
      %4059 = vst [vmem:[%s252 + $0xc] sm:$0xff] %v4051
      %4060 = vst [vmem:[%s252 + $0x14] sm:$0xf] %v4052
      %4061 = vst [vmem:[%s252 + $0x18] sm:$0xff] %v4053
      %4062 = vst [vmem:[%s252 + $0x20] sm:$0xf] %v4054
      %4063 = vst [vmem:[%s252 + $0x24] sm:$0xff] %v4055
      %4064 = vst [vmem:[%s252 + $0x2c] sm:$0xf] %v4056
      %p4065 = scmp.lt.s32.totalorder %s17, 1
      %s4066 = scalar_select %p4065, %s17, 1
      %s4067 = smul.addr %s4066, 12
      %s4068 = smul.addr %s4067, 4
      %s4069 = scalar_lea.vmem %s4, %s4068
      %p4070 = scmp.lt.s32.totalorder %s17, 1
      %s4071 = scalar_select %p4070, %s17, 1
      %s4072 = smul.addr %s4071, 12
      %s4073 = smul.addr %s4072, 8
      %s4074 = scalar_lea.vmem %s5, %s4073
      // Predicated region
      $region37: #{rnn_cell_forward.1} parent=35 // pred_check
        %p4075 = pneg %p129
      $region38: #{rnn_cell_forward.1} parent=35 // pred_check_branch
        %4077 = sbr.rel (%p4075) target = $region40
      $region39: #{rnn_cell_forward.1} parent=35 // pred_region
        _
      $region40: #{rnn_cell_forward.1} parent=35 // pred_fallthru
        _
      // Predicated region
      $region41: #{rnn_cell_forward.1} parent=35 // pred_check
        %p4078 = pneg %p155
      $region42: #{rnn_cell_forward.1} parent=35 // pred_check_branch
        %4080 = sbr.rel (%p4078) target = $region44
      $region43: #{rnn_cell_forward.1} parent=35 // pred_region
        _
      $region44: #{rnn_cell_forward.1} parent=35 // pred_fallthru
        _
    $region36: #{rnn_cell_forward.1} parent=5 // pred_fallthru
      _
    %p4081 = scmp.le.s32.totalorder 2, %s12
    // Predicated region
    $region45: #{rnn_cell_forward.1} parent=5 // pred_check
      %p4082 = pneg %p4081
    $region46: #{rnn_cell_forward.1} parent=5 // pred_check_branch
      %4084 = sbr.rel (%p4082) target = $region48
    $region47: #{rnn_cell_forward.1} parent=5 // pred_region
      %s4085 = ssub.s32 %s12, 2
      // Predicated region
      $region49: #{rnn_cell_forward.1} parent=47 // pred_check
        %p4086 = pneg %p135
      $region50: #{rnn_cell_forward.1} parent=47 // pred_check_branch
        %4088 = sbr.rel (%p4086) target = $region52
      $region51: #{rnn_cell_forward.1} parent=47 // pred_region
        %p4089 = scmp.lt.s32.totalorder %s18, 1
        %s4090 = scalar_select %p4089, %s18, 1
        %s4091 = smul.addr %s4090, 12
        %s4092 = smul.addr %s4091, 4
        %s4093 = scalar_lea.vmem %s4, %s4092
      $region52: #{rnn_cell_forward.1} parent=47 // pred_fallthru
        _
      // Predicated region
      $region53: #{rnn_cell_forward.1} parent=47 // pred_check
        %p4094 = pneg %p161
      $region54: #{rnn_cell_forward.1} parent=47 // pred_check_branch
        %4096 = sbr.rel (%p4094) target = $region56
      $region55: #{rnn_cell_forward.1} parent=47 // pred_region
        %p4097 = scmp.lt.s32.totalorder %s18, 1
        %s4098 = scalar_select %p4097, %s18, 1
        %s4099 = smul.addr %s4098, 12
        %s4100 = smul.addr %s4099, 8
        %s4101 = scalar_lea.vmem %s5, %s4100
      $region56: #{rnn_cell_forward.1} parent=47 // pred_fallthru
        _
    $region48: #{rnn_cell_forward.1} parent=5 // pred_fallthru
      _
  $region6: #{rnn_cell_forward.1} parent=0 // loop_footer
    %s16 = sadd.s32 1, %s12
  $region7: #{rnn_cell_forward.1} parent=0 // loop_footer_branch
    %11 = sbr.rel target = $region3
  $region8: #{rnn_cell_forward.1} parent=0 // loop_exit
    _

</llo_original>
